<compile_context>
chip_gen: v6e
topology: v6e:2x2x1
jax: 0.10.0
libtpu: 0.0.40
codegen_flags: <defaults>
</compile_context>

<pallas_src>
import functools

import jax
import jax.numpy as jnp
from jax import lax
from jax.experimental import pallas as pl
from jax.experimental.pallas import tpu as pltpu


# ----------------------------- fused Pallas kernel -----------------------------

def _bottleneck_kernel(x_ref, w1_ref, w9_ref, w3_ref, r2_ref, o_ref,
                       h1pad_ref, *, H, W, Co, use_res):
    HW = H * W
    x = x_ref[0]                                     # (HW, Ci) bf16, loaded once

    # ---- conv1: 1x1 partial conv (mask ratio == 1.0 exactly in f32) + ReLU
    h1 = jnp.dot(x, w1_ref[...], preferred_element_type=jnp.float32)   # (HW, Co)
    h1 = jnp.maximum(h1, 0.0)

    # ---- scatter h1 (bf16) into the zero-padded spatial scratch (pad=2, dil=2)
    # Only the 2-wide border is zeroed; the interior is fully overwritten below.
    zrow = jnp.zeros((2, W + 4, Co), jnp.bfloat16)
    zcol = jnp.zeros((H + 4, 2, Co), jnp.bfloat16)
    h1pad_ref[0:2, :, :] = zrow
    h1pad_ref[H + 2:H + 4, :, :] = zrow
    h1pad_ref[:, 0:2, :] = zcol
    h1pad_ref[:, W + 2:W + 4, :] = zcol
    h1pad_ref[2:2 + H, 2:2 + W, :] = h1.reshape(H, W, Co).astype(jnp.bfloat16)

    # ---- conv2: 3x3 / dilation=2 / padding=2 partial conv as 9 accumulating
    # MXU matmuls on the shifted windows (no packed-tap buffer, no misaligned
    # stores; the shifted loads' sublane realignment rides the idle XLU slot).
    # TODO(synk): pltpu.roll-based W shifts if tap loads ever show up hot.
    acc = jnp.zeros((HW, Co), jnp.float32)
    for t in range(9):                               # static unroll, static slices
        ky, kx = divmod(t, 3)
        tap = h1pad_ref[2 * ky:2 * ky + H, 2 * kx:2 * kx + W, :].reshape(HW, Co)
        acc = acc + jnp.dot(tap, w9_ref[t], preferred_element_type=jnp.float32)
    h2 = jnp.maximum(acc * r2_ref[0], 0.0)           # f32 mask ratio + ReLU

    # ---- conv3: 1x1 partial conv (+ residual + ReLU), bf16 writeback
    out = jnp.dot(h2.astype(jnp.bfloat16), w3_ref[...],
                  preferred_element_type=jnp.float32)
    if use_res:
        out = jnp.maximum(out + x.astype(jnp.float32), 0.0)
    o_ref[0] = out.astype(o_ref.dtype)


# ----------------------------- analytic 3x3 mask ratio -----------------------------
# mask_in=None, multi_channel=False: update_mask = conv(ones, ones_3x3, pad=2,
# dil=2) is separable & analytic; ratio = 9/(um+1e-8) * clamp(um, 0, 1).
# Must stay f32 (border pixels drift if rounded to bf16).

def _mask_ratio_3x3_d2_p2(H, W):
    def cnt(n):
        i = jnp.arange(n)
        return 1.0 + (i >= 2).astype(jnp.float32) + (i <= n - 3).astype(jnp.float32)
    um = cnt(H)[:, None] * cnt(W)[None, :]                  # (H, W) tap counts
    ratio = 9.0 / (um + 1e-8) * jnp.clip(um, 0.0, 1.0)
    return ratio.reshape(1, H * W, 1)                       # (1, H*W, 1) f32


# ----------------------------- VMEM budget (padded shapes) -----------------------------

def _rup(n, m):
    return ((n + m - 1) // m) * m


def _vmem_estimate_bytes(H, W, Ci, Co):
    HW = H * W
    lane = 128
    est = 0
    # double-buffered pipeline blocks (2 buffers each); bf16 sublane tile = 16
    est += 2 * _rup(HW, 16) * _rup(Ci, lane) * 2             # x block (bf16)
    est += 2 * _rup(HW, 16) * _rup(Co, lane) * 2             # out block (bf16)
    est += 2 * _rup(Ci, 16) * _rup(Co, lane) * 2             # w1 (bf16)
    est += 2 * 9 * _rup(Co, 16) * _rup(Co, lane) * 2         # w9 (bf16)
    est += 2 * _rup(Co, 16) * _rup(Co, lane) * 2             # w3 (bf16)
    est += 2 * _rup(HW, 8) * lane * 4                        # r2 (f32, lane-padded)
    # scratch (single buffer)
    est += (H + 4) * _rup(W + 4, 16) * _rup(Co, lane) * 2    # h1pad (bf16)
    # live f32 intermediates / spill headroom (h1, acc, h2, out)
    est += 4 * _rup(HW, 8) * _rup(Co, lane) * 4
    return est


# ----------------------------- PartialBottleneck forward -----------------------------

def partial_bottleneck(x, w1, w2, w3, use_res=True, mask=None, layout="NCHW"):
    # TODO(synk): explicit mask_in (hole-mask) path / return_mask caching not
    # implemented; this covers the module's default forward(x, mask=None).
    assert mask is None
    if layout == "NCHW":
        N, Ci, H, W = x.shape
        x_nhwc = jnp.transpose(x, (0, 2, 3, 1))
    else:                                    # "NHWC" fast path: no wrapper transposes
        N, H, W, Ci = x.shape
        x_nhwc = x
    Co = w1.shape[0]
    assert w1.shape == (Co, Ci, 1, 1) and w2.shape == (Co, Co, 3, 3) \
        and w3.shape == (Co, Co, 1, 1)
    if use_res:
        assert Ci == Co, "residual add requires in_channels == out_channels"
    assert W % 8 == 0, "in-kernel (H*W,C)<->(H,W,C) reshapes assume W % 8 == 0"
    HW = H * W

    # VMEM budget with lane/sublane padding + pipeline buffers; <= 24 MiB keeps
    # headroom on v7x's 64 MiB/TC (one image per TensorCore in flight).
    # TODO(synk): for larger images, tile H with a +/-2-row dilated halo
    # (grid (N, H//th) + manual double-buffering) instead of whole-image blocks.
    est = _vmem_estimate_bytes(H, W, Ci, Co)
    assert est <= 24 * 1024 * 1024, \
        f"estimated VMEM {est/2**20:.1f} MiB too large for whole-image fusion"

    # Layout / precision prep (cheap XLA glue): NHWC f32 -> (N, H*W, C) bf16.
    x_flat = x_nhwc.reshape(N, HW, Ci).astype(jnp.bfloat16)
    w1m = jnp.transpose(w1.reshape(Co, Ci), (1, 0)).astype(jnp.bfloat16)   # (Ci, Co)
    # (Co, Ci2, 3, 3) -> (ky, kx, Ci2, Co) -> (9, Ci2, Co); tap t = 3*ky + kx.
    w9 = jnp.transpose(w2, (2, 3, 1, 0)).reshape(9, Co, Co).astype(jnp.bfloat16)
    w3m = jnp.transpose(w3.reshape(Co, Co), (1, 0)).astype(jnp.bfloat16)   # (Co, Co)
    r2 = _mask_ratio_3x3_d2_p2(H, W)                                       # f32

    # Grid-invariant weights: single-buffer them once they are big enough for
    # the second pipeline buffer to cost real VMEM.
    big_w = Co >= 512

    def _wspec(shape):
        if big_w:
            return pl.BlockSpec(shape, lambda n: (0,) * len(shape),
                                pipeline_mode=pl.Buffered(1))
        return pl.BlockSpec(shape, lambda n: (0,) * len(shape))

    out_flat = pl.pallas_call(
        functools.partial(_bottleneck_kernel, H=H, W=W, Co=Co, use_res=use_res),
        out_shape=jax.ShapeDtypeStruct((N, HW, Co), jnp.bfloat16),
        grid=(N,),
        in_specs=[
            pl.BlockSpec((1, HW, Ci), lambda n: (n, 0, 0)),
            _wspec((Ci, Co)),
            _wspec((9, Co, Co)),
            _wspec((Co, Co)),
            pl.BlockSpec((1, HW, 1), lambda n: (0, 0, 0)),
        ],
        out_specs=pl.BlockSpec((1, HW, Co), lambda n: (n, 0, 0)),
        scratch_shapes=[
            pltpu.VMEM((H + 4, W + 4, Co), jnp.bfloat16),   # zero-bordered h1
        ],
        compiler_params=pltpu.CompilerParams(
            dimension_semantics=("parallel",),    # v7x: shard images across 2 TCs
            vmem_limit_bytes=32 * 1024 * 1024,    # explicit budget, fits v5e..v7x
        ),
    )(x_flat, w1m, w9, w3m, r2)

    out_nhwc = out_flat.reshape(N, H, W, Co)
    if layout == "NCHW":
        # Cast back to f32 fused with the layout transpose (module returns f32).
        return jnp.transpose(out_nhwc, (0, 3, 1, 2)).astype(jnp.float32)
    return out_nhwc                               # bf16 NHWC fast path


# ----------------------------- pure-JAX reference -----------------------------
# Exact PartialConv2d math (mask_in=None, multi_channel=False, bias=False),
# applied under the same bf16-input / f32-accumulate / bf16-output precision
# policy as the kernel (so the comparison isolates structural correctness).

def _ref_pconv(x, w, stride, pad, dil):
    kh, kw = w.shape[2], w.shape[3]
    H, W = x.shape[2], x.shape[3]
    dn = ('NCHW', 'OIHW', 'NCHW')
    mask = jnp.ones((1, 1, H, W), jnp.float32)
    wm = jnp.ones((1, 1, kh, kw), jnp.float32)
    um = lax.conv_general_dilated(mask, wm, (stride, stride),
                                  [(pad, pad), (pad, pad)],
                                  rhs_dilation=(dil, dil), dimension_numbers=dn)
    ratio = (kh * kw) / (um + 1e-8) * jnp.clip(um, 0.0, 1.0)
    raw = lax.conv_general_dilated(x, w, (stride, stride),
                                   [(pad, pad), (pad, pad)],
                                   rhs_dilation=(dil, dil), dimension_numbers=dn)
    return raw * ratio


def _ref_bottleneck(x, w1, w2, w3, use_res=True):
    bf = lambda a: a.astype(jnp.bfloat16).astype(jnp.float32)
    x, w1, w2, w3 = bf(x), bf(w1), bf(w2), bf(w3)
    x1 = x
    h = jnp.maximum(_ref_pconv(x, w1, 1, 0, 1), 0.0)
    h = bf(h)                                   # kernel feeds conv2 in bf16
    h = jnp.maximum(_ref_pconv(h, w2, 1, 2, 2), 0.0)
    h = bf(h)                                   # kernel feeds conv3 in bf16
    h = _ref_pconv(h, w3, 1, 0, 1)
    if use_res:
        h = jnp.maximum(x1 + h, 0.0)
    return bf(h)                                # kernel writes bf16 to HBM


# ----------------------------- main -----------------------------

if __name__ == "__main__":
    key = jax.random.PRNGKey(0)
    N, Cin, Cout, H, W = 2, 8, 8, 16, 16       # residual path needs Cin == Cout
    kx, k1, k2, k3 = jax.random.split(key, 4)
    x = jax.random.normal(kx, (N, Cin, H, W), jnp.float32)

    # Deterministic kaiming_normal_(mode='fan_out', nonlinearity='relu'):
    # std = sqrt(2 / (out_channels * kh * kw)).  (The original module's init
    # loop references a non-existent self.group1; we init deterministically.)
    def kaiming_fan_out(k, shape):
        co, _, kh, kw = shape
        std = (2.0 / (co * kh * kw)) ** 0.5
        return std * jax.random.normal(k, shape, jnp.float32)

    w1 = kaiming_fan_out(k1, (Cout, Cin, 1, 1))
    w2 = kaiming_fan_out(k2, (Cout, Cout, 3, 3))
    w3 = kaiming_fan_out(k3, (Cout, Cout, 1, 1))

    out = jax.jit(partial_bottleneck)(x, w1, w2, w3)
    out = jax.block_until_ready(out)

    ref = _ref_bottleneck(x, w1, w2, w3)
    assert out.shape == (N, Cout, H, W)
    err = float(jnp.max(jnp.abs(out - ref)))
    # bf16 output dtype -> tolerances sized to one bf16 ulp of O(1) values.
    assert bool(jnp.allclose(out, ref, rtol=2e-2, atol=2e-2)), f"max abs err {err}"
    print("KERNEL_OK")
</pallas_src>

<mosaic_0001>
module attributes {stable_mosaic.version = 11 : i64} {
  func.func @_bottleneck_kernel(%arg0: i32, %arg1: memref<1x256x8xbf16, #tpu.memory_space<vmem>>, %arg2: memref<8x8xbf16, #tpu.memory_space<vmem>>, %arg3: memref<9x8x8xbf16, #tpu.memory_space<vmem>>, %arg4: memref<8x8xbf16, #tpu.memory_space<vmem>>, %arg5: memref<1x256x1xf32, #tpu.memory_space<vmem>>, %arg6: memref<1x256x8xbf16, #tpu.memory_space<vmem>>, %arg7: memref<20x20x8xbf16, #tpu.memory_space<vmem>>) attributes {dimension_semantics = [#tpu.dimension_semantics<parallel>], iteration_bounds = array<i64: 2>, scalar_prefetch = 0 : i64, scratch_operands = 1 : i64, tpu.core_type = #tpu.core_type<tc>, window_params = [{transform_indices = @transform_0, window_bounds = array<i64: 1, 256, 8>}, {pipeline_mode = #tpu.pipeline_mode<synchronous>, transform_indices = @transform_1, window_bounds = array<i64: 8, 8>}, {pipeline_mode = #tpu.pipeline_mode<synchronous>, transform_indices = @transform_2, window_bounds = array<i64: 9, 8, 8>}, {pipeline_mode = #tpu.pipeline_mode<synchronous>, transform_indices = @transform_3, window_bounds = array<i64: 8, 8>}, {pipeline_mode = #tpu.pipeline_mode<synchronous>, transform_indices = @transform_4, window_bounds = array<i64: 1, 256, 1>}, {transform_indices = @transform_5, window_bounds = array<i64: 1, 256, 8>}]} {
    %c0 = arith.constant 0 : index
    %c0_0 = arith.constant 0 : index
    %c0_1 = arith.constant 0 : index
    %0 = vector.load %arg1[%c0, %c0_0, %c0_1] : memref<1x256x8xbf16, #tpu.memory_space<vmem>>, vector<1x256x8xbf16>
    %1 = vector.shape_cast %0 : vector<1x256x8xbf16> to vector<256x8xbf16>
    %c0_2 = arith.constant 0 : index
    %c0_3 = arith.constant 0 : index
    %2 = vector.load %arg2[%c0_2, %c0_3] : memref<8x8xbf16, #tpu.memory_space<vmem>>, vector<8x8xbf16>
    %cst = arith.constant dense<0.000000e+00> : vector<256x8xf32>
    %3 = tpu.matmul %1, %2, %cst {dimension_numbers = #tpu.dot_dimension_numbers<[1], [0], [0], [1], [0, 0, 1, 1], [], []>} : vector<256x8xbf16>, vector<8x8xbf16>, vector<256x8xf32> -> vector<256x8xf32>
    %cst_4 = arith.constant 0.000000e+00 : f32
    %4 = vector.broadcast %cst_4 : f32 to vector<256x8xf32>
    %5 = arith.maximumf %3, %4 : vector<256x8xf32>
    %cst_5 = arith.constant 0.000000e+00 : bf16
    %6 = vector.broadcast %cst_5 : bf16 to vector<2x20x8xbf16>
    %cst_6 = arith.constant 0.000000e+00 : bf16
    %7 = vector.broadcast %cst_6 : bf16 to vector<20x2x8xbf16>
    %c0_7 = arith.constant 0 : index
    %c0_8 = arith.constant 0 : index
    %c0_9 = arith.constant 0 : index
    %8 = vector.load %arg7[%c0_7, %c0_8, %c0_9] : memref<20x20x8xbf16, #tpu.memory_space<vmem>>, vector<2x20x8xbf16>
    tpu.vector_store %arg7[%c0_7, %c0_8, %c0_9], %6 {strides = array<i32>} : memref<20x20x8xbf16, #tpu.memory_space<vmem>>, vector<2x20x8xbf16>,
    %c18 = arith.constant 18 : index
    %c0_10 = arith.constant 0 : index
    %c0_11 = arith.constant 0 : index
    %9 = vector.load %arg7[%c18, %c0_10, %c0_11] : memref<20x20x8xbf16, #tpu.memory_space<vmem>>, vector<2x20x8xbf16>
    tpu.vector_store %arg7[%c18, %c0_10, %c0_11], %6 {strides = array<i32>} : memref<20x20x8xbf16, #tpu.memory_space<vmem>>, vector<2x20x8xbf16>,
    %c0_12 = arith.constant 0 : index
    %c0_13 = arith.constant 0 : index
    %c0_14 = arith.constant 0 : index
    %10 = vector.load %arg7[%c0_12, %c0_13, %c0_14] : memref<20x20x8xbf16, #tpu.memory_space<vmem>>, vector<20x2x8xbf16>
    tpu.vector_store %arg7[%c0_12, %c0_13, %c0_14], %7 {strides = array<i32>} : memref<20x20x8xbf16, #tpu.memory_space<vmem>>, vector<20x2x8xbf16>,
    %c0_15 = arith.constant 0 : index
    %c18_16 = arith.constant 18 : index
    %c0_17 = arith.constant 0 : index
    %11 = vector.load %arg7[%c0_15, %c18_16, %c0_17] : memref<20x20x8xbf16, #tpu.memory_space<vmem>>, vector<20x2x8xbf16>
    tpu.vector_store %arg7[%c0_15, %c18_16, %c0_17], %7 {strides = array<i32>} : memref<20x20x8xbf16, #tpu.memory_space<vmem>>, vector<20x2x8xbf16>,
    %12 = vector.shape_cast %5 : vector<256x8xf32> to vector<16x16x8xf32>
    %13 = arith.truncf %12 : vector<16x16x8xf32> to vector<16x16x8xbf16>
    %c2 = arith.constant 2 : index
    %c2_18 = arith.constant 2 : index
    %c0_19 = arith.constant 0 : index
    %14 = vector.load %arg7[%c2, %c2_18, %c0_19] : memref<20x20x8xbf16, #tpu.memory_space<vmem>>, vector<16x16x8xbf16>
    tpu.vector_store %arg7[%c2, %c2_18, %c0_19], %13 {strides = array<i32>} : memref<20x20x8xbf16, #tpu.memory_space<vmem>>, vector<16x16x8xbf16>,
    %cst_20 = arith.constant 0.000000e+00 : f32
    %15 = vector.broadcast %cst_20 : f32 to vector<256x8xf32>
    %c0_21 = arith.constant 0 : index
    %c0_22 = arith.constant 0 : index
    %c0_23 = arith.constant 0 : index
    %16 = vector.load %arg7[%c0_21, %c0_22, %c0_23] : memref<20x20x8xbf16, #tpu.memory_space<vmem>>, vector<16x16x8xbf16>
    %17 = vector.shape_cast %16 : vector<16x16x8xbf16> to vector<256x8xbf16>
    %c0_24 = arith.constant 0 : index
    %c0_25 = arith.constant 0 : index
    %c0_26 = arith.constant 0 : index
    %18 = vector.load %arg3[%c0_24, %c0_25, %c0_26] : memref<9x8x8xbf16, #tpu.memory_space<vmem>>, vector<1x8x8xbf16>
    %19 = vector.shape_cast %18 : vector<1x8x8xbf16> to vector<8x8xbf16>
    %cst_27 = arith.constant dense<0.000000e+00> : vector<256x8xf32>
    %20 = tpu.matmul %17, %19, %cst_27 {dimension_numbers = #tpu.dot_dimension_numbers<[1], [0], [0], [1], [0, 0, 1, 1], [], []>} : vector<256x8xbf16>, vector<8x8xbf16>, vector<256x8xf32> -> vector<256x8xf32>
    %21 = arith.addf %15, %20 : vector<256x8xf32>
    %c0_28 = arith.constant 0 : index
    %c2_29 = arith.constant 2 : index
    %c0_30 = arith.constant 0 : index
    %22 = vector.load %arg7[%c0_28, %c2_29, %c0_30] : memref<20x20x8xbf16, #tpu.memory_space<vmem>>, vector<16x16x8xbf16>
    %23 = vector.shape_cast %22 : vector<16x16x8xbf16> to vector<256x8xbf16>
    %c1 = arith.constant 1 : index
    %c0_31 = arith.constant 0 : index
    %c0_32 = arith.constant 0 : index
    %24 = vector.load %arg3[%c1, %c0_31, %c0_32] : memref<9x8x8xbf16, #tpu.memory_space<vmem>>, vector<1x8x8xbf16>
    %25 = vector.shape_cast %24 : vector<1x8x8xbf16> to vector<8x8xbf16>
    %cst_33 = arith.constant dense<0.000000e+00> : vector<256x8xf32>
    %26 = tpu.matmul %23, %25, %cst_33 {dimension_numbers = #tpu.dot_dimension_numbers<[1], [0], [0], [1], [0, 0, 1, 1], [], []>} : vector<256x8xbf16>, vector<8x8xbf16>, vector<256x8xf32> -> vector<256x8xf32>
    %27 = arith.addf %21, %26 : vector<256x8xf32>
    %c0_34 = arith.constant 0 : index
    %c4 = arith.constant 4 : index
    %c0_35 = arith.constant 0 : index
    %28 = vector.load %arg7[%c0_34, %c4, %c0_35] : memref<20x20x8xbf16, #tpu.memory_space<vmem>>, vector<16x16x8xbf16>
    %29 = vector.shape_cast %28 : vector<16x16x8xbf16> to vector<256x8xbf16>
    %c2_36 = arith.constant 2 : index
    %c0_37 = arith.constant 0 : index
    %c0_38 = arith.constant 0 : index
    %30 = vector.load %arg3[%c2_36, %c0_37, %c0_38] : memref<9x8x8xbf16, #tpu.memory_space<vmem>>, vector<1x8x8xbf16>
    %31 = vector.shape_cast %30 : vector<1x8x8xbf16> to vector<8x8xbf16>
    %cst_39 = arith.constant dense<0.000000e+00> : vector<256x8xf32>
    %32 = tpu.matmul %29, %31, %cst_39 {dimension_numbers = #tpu.dot_dimension_numbers<[1], [0], [0], [1], [0, 0, 1, 1], [], []>} : vector<256x8xbf16>, vector<8x8xbf16>, vector<256x8xf32> -> vector<256x8xf32>
    %33 = arith.addf %27, %32 : vector<256x8xf32>
    %c2_40 = arith.constant 2 : index
    %c0_41 = arith.constant 0 : index
    %c0_42 = arith.constant 0 : index
    %34 = vector.load %arg7[%c2_40, %c0_41, %c0_42] : memref<20x20x8xbf16, #tpu.memory_space<vmem>>, vector<16x16x8xbf16>
    %35 = vector.shape_cast %34 : vector<16x16x8xbf16> to vector<256x8xbf16>
    %c3 = arith.constant 3 : index
    %c0_43 = arith.constant 0 : index
    %c0_44 = arith.constant 0 : index
    %36 = vector.load %arg3[%c3, %c0_43, %c0_44] : memref<9x8x8xbf16, #tpu.memory_space<vmem>>, vector<1x8x8xbf16>
    %37 = vector.shape_cast %36 : vector<1x8x8xbf16> to vector<8x8xbf16>
    %cst_45 = arith.constant dense<0.000000e+00> : vector<256x8xf32>
    %38 = tpu.matmul %35, %37, %cst_45 {dimension_numbers = #tpu.dot_dimension_numbers<[1], [0], [0], [1], [0, 0, 1, 1], [], []>} : vector<256x8xbf16>, vector<8x8xbf16>, vector<256x8xf32> -> vector<256x8xf32>
    %39 = arith.addf %33, %38 : vector<256x8xf32>
    %c2_46 = arith.constant 2 : index
    %c2_47 = arith.constant 2 : index
    %c0_48 = arith.constant 0 : index
    %40 = vector.load %arg7[%c2_46, %c2_47, %c0_48] : memref<20x20x8xbf16, #tpu.memory_space<vmem>>, vector<16x16x8xbf16>
    %41 = vector.shape_cast %40 : vector<16x16x8xbf16> to vector<256x8xbf16>
    %c4_49 = arith.constant 4 : index
    %c0_50 = arith.constant 0 : index
    %c0_51 = arith.constant 0 : index
    %42 = vector.load %arg3[%c4_49, %c0_50, %c0_51] : memref<9x8x8xbf16, #tpu.memory_space<vmem>>, vector<1x8x8xbf16>
    %43 = vector.shape_cast %42 : vector<1x8x8xbf16> to vector<8x8xbf16>
    %cst_52 = arith.constant dense<0.000000e+00> : vector<256x8xf32>
    %44 = tpu.matmul %41, %43, %cst_52 {dimension_numbers = #tpu.dot_dimension_numbers<[1], [0], [0], [1], [0, 0, 1, 1], [], []>} : vector<256x8xbf16>, vector<8x8xbf16>, vector<256x8xf32> -> vector<256x8xf32>
    %45 = arith.addf %39, %44 : vector<256x8xf32>
    %c2_53 = arith.constant 2 : index
    %c4_54 = arith.constant 4 : index
    %c0_55 = arith.constant 0 : index
    %46 = vector.load %arg7[%c2_53, %c4_54, %c0_55] : memref<20x20x8xbf16, #tpu.memory_space<vmem>>, vector<16x16x8xbf16>
    %47 = vector.shape_cast %46 : vector<16x16x8xbf16> to vector<256x8xbf16>
    %c5 = arith.constant 5 : index
    %c0_56 = arith.constant 0 : index
    %c0_57 = arith.constant 0 : index
    %48 = vector.load %arg3[%c5, %c0_56, %c0_57] : memref<9x8x8xbf16, #tpu.memory_space<vmem>>, vector<1x8x8xbf16>
    %49 = vector.shape_cast %48 : vector<1x8x8xbf16> to vector<8x8xbf16>
    %cst_58 = arith.constant dense<0.000000e+00> : vector<256x8xf32>
    %50 = tpu.matmul %47, %49, %cst_58 {dimension_numbers = #tpu.dot_dimension_numbers<[1], [0], [0], [1], [0, 0, 1, 1], [], []>} : vector<256x8xbf16>, vector<8x8xbf16>, vector<256x8xf32> -> vector<256x8xf32>
    %51 = arith.addf %45, %50 : vector<256x8xf32>
    %c4_59 = arith.constant 4 : index
    %c0_60 = arith.constant 0 : index
    %c0_61 = arith.constant 0 : index
    %52 = vector.load %arg7[%c4_59, %c0_60, %c0_61] : memref<20x20x8xbf16, #tpu.memory_space<vmem>>, vector<16x16x8xbf16>
    %53 = vector.shape_cast %52 : vector<16x16x8xbf16> to vector<256x8xbf16>
    %c6 = arith.constant 6 : index
    %c0_62 = arith.constant 0 : index
    %c0_63 = arith.constant 0 : index
    %54 = vector.load %arg3[%c6, %c0_62, %c0_63] : memref<9x8x8xbf16, #tpu.memory_space<vmem>>, vector<1x8x8xbf16>
    %55 = vector.shape_cast %54 : vector<1x8x8xbf16> to vector<8x8xbf16>
    %cst_64 = arith.constant dense<0.000000e+00> : vector<256x8xf32>
    %56 = tpu.matmul %53, %55, %cst_64 {dimension_numbers = #tpu.dot_dimension_numbers<[1], [0], [0], [1], [0, 0, 1, 1], [], []>} : vector<256x8xbf16>, vector<8x8xbf16>, vector<256x8xf32> -> vector<256x8xf32>
    %57 = arith.addf %51, %56 : vector<256x8xf32>
    %c4_65 = arith.constant 4 : index
    %c2_66 = arith.constant 2 : index
    %c0_67 = arith.constant 0 : index
    %58 = vector.load %arg7[%c4_65, %c2_66, %c0_67] : memref<20x20x8xbf16, #tpu.memory_space<vmem>>, vector<16x16x8xbf16>
    %59 = vector.shape_cast %58 : vector<16x16x8xbf16> to vector<256x8xbf16>
    %c7 = arith.constant 7 : index
    %c0_68 = arith.constant 0 : index
    %c0_69 = arith.constant 0 : index
    %60 = vector.load %arg3[%c7, %c0_68, %c0_69] : memref<9x8x8xbf16, #tpu.memory_space<vmem>>, vector<1x8x8xbf16>
    %61 = vector.shape_cast %60 : vector<1x8x8xbf16> to vector<8x8xbf16>
    %cst_70 = arith.constant dense<0.000000e+00> : vector<256x8xf32>
    %62 = tpu.matmul %59, %61, %cst_70 {dimension_numbers = #tpu.dot_dimension_numbers<[1], [0], [0], [1], [0, 0, 1, 1], [], []>} : vector<256x8xbf16>, vector<8x8xbf16>, vector<256x8xf32> -> vector<256x8xf32>
    %63 = arith.addf %57, %62 : vector<256x8xf32>
    %c4_71 = arith.constant 4 : index
    %c4_72 = arith.constant 4 : index
    %c0_73 = arith.constant 0 : index
    %64 = vector.load %arg7[%c4_71, %c4_72, %c0_73] : memref<20x20x8xbf16, #tpu.memory_space<vmem>>, vector<16x16x8xbf16>
    %65 = vector.shape_cast %64 : vector<16x16x8xbf16> to vector<256x8xbf16>
    %c8 = arith.constant 8 : index
    %c0_74 = arith.constant 0 : index
    %c0_75 = arith.constant 0 : index
    %66 = vector.load %arg3[%c8, %c0_74, %c0_75] : memref<9x8x8xbf16, #tpu.memory_space<vmem>>, vector<1x8x8xbf16>
    %67 = vector.shape_cast %66 : vector<1x8x8xbf16> to vector<8x8xbf16>
    %cst_76 = arith.constant dense<0.000000e+00> : vector<256x8xf32>
    %68 = tpu.matmul %65, %67, %cst_76 {dimension_numbers = #tpu.dot_dimension_numbers<[1], [0], [0], [1], [0, 0, 1, 1], [], []>} : vector<256x8xbf16>, vector<8x8xbf16>, vector<256x8xf32> -> vector<256x8xf32>
    %69 = arith.addf %63, %68 : vector<256x8xf32>
    %c0_77 = arith.constant 0 : index
    %c0_78 = arith.constant 0 : index
    %c0_79 = arith.constant 0 : index
    %70 = vector.load %arg5[%c0_77, %c0_78, %c0_79] : memref<1x256x1xf32, #tpu.memory_space<vmem>>, vector<1x256x1xf32>
    %71 = vector.shape_cast %70 : vector<1x256x1xf32> to vector<256x1xf32>
    %72 = vector.broadcast %71 : vector<256x1xf32> to vector<256x8xf32>
    %73 = arith.mulf %69, %72 : vector<256x8xf32>
    %cst_80 = arith.constant 0.000000e+00 : f32
    %74 = vector.broadcast %cst_80 : f32 to vector<256x8xf32>
    %75 = arith.maximumf %73, %74 : vector<256x8xf32>
    %76 = arith.truncf %75 : vector<256x8xf32> to vector<256x8xbf16>
    %c0_81 = arith.constant 0 : index
    %c0_82 = arith.constant 0 : index
    %77 = vector.load %arg4[%c0_81, %c0_82] : memref<8x8xbf16, #tpu.memory_space<vmem>>, vector<8x8xbf16>
    %cst_83 = arith.constant dense<0.000000e+00> : vector<256x8xf32>
    %78 = tpu.matmul %76, %77, %cst_83 {dimension_numbers = #tpu.dot_dimension_numbers<[1], [0], [0], [1], [0, 0, 1, 1], [], []>} : vector<256x8xbf16>, vector<8x8xbf16>, vector<256x8xf32> -> vector<256x8xf32>
    %79 = arith.extf %1 : vector<256x8xbf16> to vector<256x8xf32>
    %80 = arith.addf %78, %79 : vector<256x8xf32>
    %cst_84 = arith.constant 0.000000e+00 : f32
    %81 = vector.broadcast %cst_84 : f32 to vector<256x8xf32>
    %82 = arith.maximumf %80, %81 : vector<256x8xf32>
    %83 = arith.truncf %82 : vector<256x8xf32> to vector<256x8xbf16>
    %c0_85 = arith.constant 0 : index
    %c0_86 = arith.constant 0 : index
    %c0_87 = arith.constant 0 : index
    %84 = vector.load %arg6[%c0_85, %c0_86, %c0_87] : memref<1x256x8xbf16, #tpu.memory_space<vmem>>, vector<1x256x8xbf16>
    %85 = vector.shape_cast %84 : vector<1x256x8xbf16> to vector<256x8xbf16>
    %86 = vector.shape_cast %83 : vector<256x8xbf16> to vector<1x256x8xbf16>
    tpu.vector_store %arg6[%c0_85, %c0_86, %c0_87], %86 {strides = array<i32>} : memref<1x256x8xbf16, #tpu.memory_space<vmem>>, vector<1x256x8xbf16>,
    return
  }
  func.func @transform_0(%arg0: i32) -> (i32, i32, i32) {
    %c0_i32 = arith.constant 0 : i32
    %c0_i32_0 = arith.constant 0 : i32
    %c0_i32_1 = arith.constant 0 : i32
    return %arg0, %c0_i32, %c0_i32_0 : i32, i32, i32
  }
  func.func @transform_1(%arg0: i32) -> (i32, i32) {
    %c0_i32 = arith.constant 0 : i32
    %c0_i32_0 = arith.constant 0 : i32
    %c0_i32_1 = arith.constant 0 : i32
    return %c0_i32, %c0_i32_0 : i32, i32
  }
  func.func @transform_2(%arg0: i32) -> (i32, i32, i32) {
    %c0_i32 = arith.constant 0 : i32
    %c0_i32_0 = arith.constant 0 : i32
    %c0_i32_1 = arith.constant 0 : i32
    %c0_i32_2 = arith.constant 0 : i32
    return %c0_i32, %c0_i32_0, %c0_i32_1 : i32, i32, i32
  }
  func.func @transform_3(%arg0: i32) -> (i32, i32) {
    %c0_i32 = arith.constant 0 : i32
    %c0_i32_0 = arith.constant 0 : i32
    %c0_i32_1 = arith.constant 0 : i32
    return %c0_i32, %c0_i32_0 : i32, i32
  }
  func.func @transform_4(%arg0: i32) -> (i32, i32, i32) {
    %c0_i32 = arith.constant 0 : i32
    %c0_i32_0 = arith.constant 0 : i32
    %c0_i32_1 = arith.constant 0 : i32
    %c0_i32_2 = arith.constant 0 : i32
    return %c0_i32, %c0_i32_0, %c0_i32_1 : i32, i32, i32
  }
  func.func @transform_5(%arg0: i32) -> (i32, i32, i32) {
    %c0_i32 = arith.constant 0 : i32
    %c0_i32_0 = arith.constant 0 : i32
    %c0_i32_1 = arith.constant 0 : i32
    return %arg0, %c0_i32, %c0_i32_0 : i32, i32, i32
  }
}

</mosaic_0001>

<llo_original>
// kernel: partial_bottleneck.1
$region0: #{partial_bottleneck.1}
  #allocation0 [shape = 'u32[]', space=smem, size = 0x4, offset = 0x4, fixed_abs, tag = 'smem constant byte address 0x4 - core index']
  #allocation1 [shape = 'u32[144,128]{1,0:T(1,128)}', space=vmem, size = 0x12000, scoped, tag = 'internal scratch']
  #allocation2 [shape = 'bf16[20,20,8]{2,1,0:T(8,128)(2,1)}', space=vmem, size = 0x1e000, scoped, tag = 'scratch operand']
  %s0 = inlined_call_operand.vmem [shape: bf16[2,256,8], index: 0, kind: input, shape index: {}]
  %s1 = inlined_call_operand.vmem [shape: bf16[8,8], index: 1, kind: input, shape index: {}]
  %s2 = inlined_call_operand.vmem [shape: bf16[9,8,8], index: 2, kind: input, shape index: {}]
  %s3 = inlined_call_operand.vmem [shape: bf16[8,8], index: 3, kind: input, shape index: {}]
  %s4 = inlined_call_operand.vmem [shape: f32[1,256,1], index: 4, kind: input, shape index: {}]
  %s5 = inlined_call_operand.vmem [shape: bf16[2,256,8], index: 5, kind: output, shape index: {}]
  %s6 = sld [smem:[#allocation0]]
  $region53: #{partial_bottleneck.1} parent=0
    _
  %s8 = ssub.s32 1, %s6
  %s9 = scalar_select 0, %s8, %s6
  loop: start=0, step=1, limit=4
  $region2: #{partial_bottleneck.1} parent=0 // loop_pre_header
    _
  $region3: #{partial_bottleneck.1} parent=0 // loop_header
    %s11 = sphi 0, %s15
    %p12 = scmp.ge.s32.totalorder %s11, 4
    %s21 = sphi 0, %s23
    %s24 = sphi 0, %s21
    %s25 = sphi 0, %s24
    %s41 = sphi 0, %s25
    %s45 = sphi 0, %s45
    %s47 = sphi 0, %s45
    %s48 = sphi 0, %s47
    %s62 = sphi 0, %s48
    %s66 = sphi 0, %s66
    %s68 = sphi 0, %s66
    %s69 = sphi 0, %s68
    %s83 = sphi 0, %s69
    %s87 = sphi 0, %s87
    %s89 = sphi 0, %s87
    %s90 = sphi 0, %s89
    %s104 = sphi 0, %s90
    %s108 = sphi 0, %s108
    %s110 = sphi 0, %s108
    %s111 = sphi 0, %s110
    %s125 = sphi 0, %s111
    %s131 = sphi 0, %s133
    %s134 = sphi 0, %s131
    %s135 = sphi 0, %s134
    %s151 = sphi 0, %s135
  $region4: #{partial_bottleneck.1} parent=0 // loop_header_branch
    %14 = sbr.rel (%p12) target = $region8
  $region5: #{partial_bottleneck.1} parent=0 // loop_body
    %s16 = ssub.s32 %s11, 1
    %s17 = ssub.s32 %s11, 2
    %s18 = sadd.s32 %s11, 1
    %s19 = ssub.s32 %s11, %s18
    %p20 = scmp.eq.s32.totalorder %s19, 0
    %s22 = sadd.s32 %s21, 1
    %s23 = scalar_select %p20, %s21, %s22
    %p26 = pneg %p20
    %p27 = scmp.eq.s32.totalorder %s11, 1
    %p28 = por %p26, %p27
    %p29 = scmp.ne.s32.totalorder %s21, %s24
    %p30 = scmp.eq.s32.totalorder %s11, 0
    %p31 = por %p29, %p30
    %p32 = scmp.ne.s32.totalorder %s21, %s24
    %p33 = scmp.eq.s32.totalorder %s16, 1
    %p34 = por %p32, %p33
    %p35 = scmp.ne.s32.totalorder %s24, %s25
    %p36 = scmp.eq.s32.totalorder %s16, 0
    %p37 = por %p35, %p36
    %p38 = scmp.ne.s32.totalorder %s24, %s25
    %p39 = scmp.eq.s32.totalorder %s17, 1
    %p40 = por %p38, %p39
    %p42 = scmp.ne.s32.totalorder %s25, %s41
    %p43 = scmp.eq.s32.totalorder %s17, 0
    %p44 = por %p42, %p43
    %s46 = sadd.s32 %s45, 1
    %p49 = scmp.eq.s32.totalorder %s11, 1
    %p50 = scmp.ne.s32.totalorder %s45, %s47
    %p51 = scmp.eq.s32.totalorder %s11, 0
    %p52 = por %p50, %p51
    %p53 = scmp.ne.s32.totalorder %s45, %s47
    %p54 = scmp.eq.s32.totalorder %s16, 1
    %p55 = por %p53, %p54
    %p56 = scmp.ne.s32.totalorder %s47, %s48
    %p57 = scmp.eq.s32.totalorder %s16, 0
    %p58 = por %p56, %p57
    %p59 = scmp.ne.s32.totalorder %s47, %s48
    %p60 = scmp.eq.s32.totalorder %s17, 1
    %p61 = por %p59, %p60
    %p63 = scmp.ne.s32.totalorder %s48, %s62
    %p64 = scmp.eq.s32.totalorder %s17, 0
    %p65 = por %p63, %p64
    %s67 = sadd.s32 %s66, 1
    %p70 = scmp.eq.s32.totalorder %s11, 1
    %p71 = scmp.ne.s32.totalorder %s66, %s68
    %p72 = scmp.eq.s32.totalorder %s11, 0
    %p73 = por %p71, %p72
    %p74 = scmp.ne.s32.totalorder %s66, %s68
    %p75 = scmp.eq.s32.totalorder %s16, 1
    %p76 = por %p74, %p75
    %p77 = scmp.ne.s32.totalorder %s68, %s69
    %p78 = scmp.eq.s32.totalorder %s16, 0
    %p79 = por %p77, %p78
    %p80 = scmp.ne.s32.totalorder %s68, %s69
    %p81 = scmp.eq.s32.totalorder %s17, 1
    %p82 = por %p80, %p81
    %p84 = scmp.ne.s32.totalorder %s69, %s83
    %p85 = scmp.eq.s32.totalorder %s17, 0
    %p86 = por %p84, %p85
    %s88 = sadd.s32 %s87, 1
    %p91 = scmp.eq.s32.totalorder %s11, 1
    %p92 = scmp.ne.s32.totalorder %s87, %s89
    %p93 = scmp.eq.s32.totalorder %s11, 0
    %p94 = por %p92, %p93
    %p95 = scmp.ne.s32.totalorder %s87, %s89
    %p96 = scmp.eq.s32.totalorder %s16, 1
    %p97 = por %p95, %p96
    %p98 = scmp.ne.s32.totalorder %s89, %s90
    %p99 = scmp.eq.s32.totalorder %s16, 0
    %p100 = por %p98, %p99
    %p101 = scmp.ne.s32.totalorder %s89, %s90
    %p102 = scmp.eq.s32.totalorder %s17, 1
    %p103 = por %p101, %p102
    %p105 = scmp.ne.s32.totalorder %s90, %s104
    %p106 = scmp.eq.s32.totalorder %s17, 0
    %p107 = por %p105, %p106
    %s109 = sadd.s32 %s108, 1
    %p112 = scmp.eq.s32.totalorder %s11, 1
    %p113 = scmp.ne.s32.totalorder %s108, %s110
    %p114 = scmp.eq.s32.totalorder %s11, 0
    %p115 = por %p113, %p114
    %p116 = scmp.ne.s32.totalorder %s108, %s110
    %p117 = scmp.eq.s32.totalorder %s16, 1
    %p118 = por %p116, %p117
    %p119 = scmp.ne.s32.totalorder %s110, %s111
    %p120 = scmp.eq.s32.totalorder %s16, 0
    %p121 = por %p119, %p120
    %p122 = scmp.ne.s32.totalorder %s110, %s111
    %p123 = scmp.eq.s32.totalorder %s17, 1
    %p124 = por %p122, %p123
    %p126 = scmp.ne.s32.totalorder %s111, %s125
    %p127 = scmp.eq.s32.totalorder %s17, 0
    %p128 = por %p126, %p127
    %s129 = ssub.s32 %s11, %s18
    %p130 = scmp.eq.s32.totalorder %s129, 0
    %s132 = sadd.s32 %s131, 1
    %s133 = scalar_select %p130, %s131, %s132
    %p136 = pneg %p130
    %p137 = scmp.eq.s32.totalorder %s11, 1
    %p138 = por %p136, %p137
    %p139 = scmp.ne.s32.totalorder %s131, %s134
    %p140 = scmp.eq.s32.totalorder %s11, 0
    %p141 = por %p139, %p140
    %p142 = scmp.ne.s32.totalorder %s131, %s134
    %p143 = scmp.eq.s32.totalorder %s16, 1
    %p144 = por %p142, %p143
    %p145 = scmp.ne.s32.totalorder %s134, %s135
    %p146 = scmp.eq.s32.totalorder %s16, 0
    %p147 = por %p145, %p146
    %p148 = scmp.ne.s32.totalorder %s134, %s135
    %p149 = scmp.eq.s32.totalorder %s17, 1
    %p150 = por %p148, %p149
    %p152 = scmp.ne.s32.totalorder %s135, %s151
    %p153 = scmp.eq.s32.totalorder %s17, 0
    %p154 = por %p152, %p153
    %p155 = scmp.le.s32.totalorder 1, %s11
    %p156 = scmp.lt.s32.totalorder %s11, 3
    %p157 = pnand %p155, %p156
    %p158 = pneg %p157
    // Predicated region
    $region9: #{partial_bottleneck.1} parent=5 // pred_check
      _
    $region10: #{partial_bottleneck.1} parent=5 // pred_check_branch
      %160 = sbr.rel (%p157) target = $region12
    $region11: #{partial_bottleneck.1} parent=5 // pred_region
      %s161 = ssub.s32 %s11, 1
      // Predicated region
      $region13: #{partial_bottleneck.1} parent=11 // pred_check
        %p162 = pneg %p58
      $region14: #{partial_bottleneck.1} parent=11 // pred_check_branch
        %164 = sbr.rel (%p162) target = $region16
      $region15: #{partial_bottleneck.1} parent=11 // pred_region
        _
      $region16: #{partial_bottleneck.1} parent=11 // pred_fallthru
        _
      // Predicated region
      $region17: #{partial_bottleneck.1} parent=11 // pred_check
        %p165 = pneg %p79
      $region18: #{partial_bottleneck.1} parent=11 // pred_check_branch
        %167 = sbr.rel (%p165) target = $region20
      $region19: #{partial_bottleneck.1} parent=11 // pred_region
        _
      $region20: #{partial_bottleneck.1} parent=11 // pred_fallthru
        _
      // Predicated region
      $region21: #{partial_bottleneck.1} parent=11 // pred_check
        %p168 = pneg %p100
      $region22: #{partial_bottleneck.1} parent=11 // pred_check_branch
        %170 = sbr.rel (%p168) target = $region24
      $region23: #{partial_bottleneck.1} parent=11 // pred_region
        _
      $region24: #{partial_bottleneck.1} parent=11 // pred_fallthru
        _
      // Predicated region
      $region25: #{partial_bottleneck.1} parent=11 // pred_check
        %p171 = pneg %p121
      $region26: #{partial_bottleneck.1} parent=11 // pred_check_branch
        %173 = sbr.rel (%p171) target = $region28
      $region27: #{partial_bottleneck.1} parent=11 // pred_region
        _
      $region28: #{partial_bottleneck.1} parent=11 // pred_fallthru
        _
    $region12: #{partial_bottleneck.1} parent=5 // pred_fallthru
      _
    %p174 = scmp.lt.s32.totalorder %s11, 2
    // Predicated region
    $region29: #{partial_bottleneck.1} parent=5 // pred_check
      %p175 = pneg %p174
    $region30: #{partial_bottleneck.1} parent=5 // pred_check_branch
      %177 = sbr.rel (%p175) target = $region32
    $region31: #{partial_bottleneck.1} parent=5 // pred_region
      // Predicated region
      $region33: #{partial_bottleneck.1} parent=31 // pred_check
        %p178 = pneg %p31
      $region34: #{partial_bottleneck.1} parent=31 // pred_check_branch
        %180 = sbr.rel (%p178) target = $region36
      $region35: #{partial_bottleneck.1} parent=31 // pred_region
        %p181 = scmp.lt.s32.totalorder %s11, 1
        %s182 = scalar_select %p181, %s11, 1
        %s183 = smul.addr %s182, 32
        %s184 = smul.addr %s183, 4
        %s185 = scalar_lea.vmem %s0, %s184
      $region36: #{partial_bottleneck.1} parent=31 // pred_fallthru
        _
    $region32: #{partial_bottleneck.1} parent=5 // pred_fallthru
      _
    %p186 = scmp.le.s32.totalorder 1, %s11
    %p187 = scmp.lt.s32.totalorder %s11, 3
    %p188 = pnand %p186, %p187
    %p189 = pneg %p188
    // Predicated region
    $region37: #{partial_bottleneck.1} parent=5 // pred_check
      _
    $region38: #{partial_bottleneck.1} parent=5 // pred_check_branch
      %191 = sbr.rel (%p188) target = $region40
    $region39: #{partial_bottleneck.1} parent=5 // pred_region
      %s192 = ssub.s32 %s11, 1
      %p193 = scmp.lt.s32.totalorder %s16, 1
      %s194 = scalar_select %p193, %s16, 1
      %s195 = smul.addr %s194, 32
      %s196 = smul.addr %s195, 4
      %s197 = scalar_lea.vmem %s0, %s196
      %p198 = pneg %p37
      %p199 = pneg %p34
      %p200 = pneg %p58
      %p201 = pneg %p55
      %p202 = pneg %p79
      %p203 = pneg %p76
      %p204 = pneg %p100
      %p205 = pneg %p97
      %p206 = pneg %p121
      %p207 = pneg %p118
      %p208 = pneg %p147
      %p209 = pneg %p144
      %p210 = scmp.lt.s32.totalorder %s16, 1
      %s211 = scalar_select %p210, %s16, 1
      %s212 = smul.addr %s211, 32
      %s213 = smul.addr %s212, 4
      %s214 = scalar_lea.vmem %s5, %s213
      %p215 = scmp.lt.s32.totalorder %s16, 1
      %s216 = scalar_select %p215, %s16, 1
      %s217 = smul.addr %s216, 32
      %s218 = smul.addr %s217, 4
      %s219 = scalar_lea.vmem %s0, %s218
      %p220 = scmp.lt.s32.totalorder %s16, 1
      %s221 = scalar_select %p220, %s16, 1
      %s222 = smul.addr %s221, 32
      %s223 = smul.addr %s222, 4
      %s224 = scalar_lea.vmem %s5, %s223
      %v226 = vld [vmem:[%s219] sm:$0xf]
      %v227 = vld [vmem:[%s219 + $0x4] sm:$0xf]
      %v228 = vld [vmem:[%s219 + $0x8] sm:$0xf]
      %v229 = vld [vmem:[%s219 + $0xc] sm:$0xf]
      %v230 = vld [vmem:[%s219 + $0x10] sm:$0xf]
      %v231 = vld [vmem:[%s219 + $0x14] sm:$0xf]
      %v232 = vld [vmem:[%s219 + $0x18] sm:$0xf]
      %v233 = vld [vmem:[%s219 + $0x1c] sm:$0xf]
      %v234 = vld [vmem:[%s219 + $0x20] sm:$0xf]
      %v235 = vld [vmem:[%s219 + $0x24] sm:$0xf]
      %v236 = vld [vmem:[%s219 + $0x28] sm:$0xf]
      %v237 = vld [vmem:[%s219 + $0x2c] sm:$0xf]
      %v238 = vld [vmem:[%s219 + $0x30] sm:$0xf]
      %v239 = vld [vmem:[%s219 + $0x34] sm:$0xf]
      %v240 = vld [vmem:[%s219 + $0x38] sm:$0xf]
      %v241 = vld [vmem:[%s219 + $0x3c] sm:$0xf]
      %v242 = vld [vmem:[%s219 + $0x40] sm:$0xf]
      %v243 = vld [vmem:[%s219 + $0x44] sm:$0xf]
      %v244 = vld [vmem:[%s219 + $0x48] sm:$0xf]
      %v245 = vld [vmem:[%s219 + $0x4c] sm:$0xf]
      %v246 = vld [vmem:[%s219 + $0x50] sm:$0xf]
      %v247 = vld [vmem:[%s219 + $0x54] sm:$0xf]
      %v248 = vld [vmem:[%s219 + $0x58] sm:$0xf]
      %v249 = vld [vmem:[%s219 + $0x5c] sm:$0xf]
      %v250 = vld [vmem:[%s219 + $0x60] sm:$0xf]
      %v251 = vld [vmem:[%s219 + $0x64] sm:$0xf]
      %v252 = vld [vmem:[%s219 + $0x68] sm:$0xf]
      %v253 = vld [vmem:[%s219 + $0x6c] sm:$0xf]
      %v254 = vld [vmem:[%s219 + $0x70] sm:$0xf]
      %v255 = vld [vmem:[%s219 + $0x74] sm:$0xf]
      %v256 = vld [vmem:[%s219 + $0x78] sm:$0xf]
      %v257 = vld [vmem:[%s219 + $0x7c] sm:$0xf]
      %v258 = vld [vmem:[%s1] sm:$0xf]
      %v291 = vunpack.c.l.b16 %v226
      %v292 = vunpack.c.l.b16 %v227
      %v293 = vunpack.c.l.b16 %v228
      %v294 = vunpack.c.l.b16 %v229
      %v295 = vunpack.c.l.b16 %v230
      %v296 = vunpack.c.l.b16 %v231
      %v297 = vunpack.c.l.b16 %v232
      %v298 = vunpack.c.l.b16 %v233
      %v299 = vunpack.c.l.b16 %v234
      %v300 = vunpack.c.l.b16 %v235
      %v301 = vunpack.c.l.b16 %v236
      %v302 = vunpack.c.l.b16 %v237
      %v303 = vunpack.c.l.b16 %v238
      %v304 = vunpack.c.l.b16 %v239
      %v305 = vunpack.c.l.b16 %v240
      %v306 = vunpack.c.l.b16 %v241
      %v307 = vunpack.c.l.b16 %v242
      %v308 = vunpack.c.l.b16 %v243
      %v309 = vunpack.c.l.b16 %v244
      %v310 = vunpack.c.l.b16 %v245
      %v311 = vunpack.c.l.b16 %v246
      %v312 = vunpack.c.l.b16 %v247
      %v313 = vunpack.c.l.b16 %v248
      %v314 = vunpack.c.l.b16 %v249
      %v315 = vunpack.c.l.b16 %v250
      %v316 = vunpack.c.l.b16 %v251
      %v317 = vunpack.c.l.b16 %v252
      %v318 = vunpack.c.l.b16 %v253
      %v319 = vunpack.c.l.b16 %v254
      %v320 = vunpack.c.l.b16 %v255
      %v321 = vunpack.c.l.b16 %v256
      %v322 = vunpack.c.l.b16 %v257
      %v323 = vpack.c.b16 %v292, %v291
      %v324 = vpack.c.b16 %v294, %v293
      %v325 = vpack.c.b16 %v296, %v295
      %v326 = vpack.c.b16 %v298, %v297
      %v327 = vpack.c.b16 %v300, %v299
      %v328 = vpack.c.b16 %v302, %v301
      %v329 = vpack.c.b16 %v304, %v303
      %v330 = vpack.c.b16 %v306, %v305
      %v331 = vpack.c.b16 %v308, %v307
      %v332 = vpack.c.b16 %v310, %v309
      %v333 = vpack.c.b16 %v312, %v311
      %v334 = vpack.c.b16 %v314, %v313
      %v335 = vpack.c.b16 %v316, %v315
      %v336 = vpack.c.b16 %v318, %v317
      %v337 = vpack.c.b16 %v320, %v319
      %v338 = vpack.c.b16 %v322, %v321
      %vm339 = vcmask 64512
      %v341 = vsel %vm339, %v323, 0
      %v344 = vsel %vm339, %v324, 0
      %v347 = vsel %vm339, %v325, 0
      %v350 = vsel %vm339, %v326, 0
      %v353 = vsel %vm339, %v327, 0
      %v356 = vsel %vm339, %v328, 0
      %v359 = vsel %vm339, %v329, 0
      %v362 = vsel %vm339, %v330, 0
      %v365 = vsel %vm339, %v331, 0
      %v368 = vsel %vm339, %v332, 0
      %v371 = vsel %vm339, %v333, 0
      %v374 = vsel %vm339, %v334, 0
      %v377 = vsel %vm339, %v335, 0
      %v380 = vsel %vm339, %v336, 0
      %v383 = vsel %vm339, %v337, 0
      %v386 = vsel %vm339, %v338, 0
      %vm388 = vcmask 1043456
      %v390 = vsel %vm388, %v258, 0
      %392 = vmatprep.subr.bf16.mxu0 0
      %393 = vmatpush1.bf16.msra.mxu0 0
      %394 = vmatprep.subr.bf16.mxu0 0
      %395 = vmatpush1.bf16.msra.mxu0 0
      %396 = vmatprep.subr.bf16.mxu0 0
      %397 = vmatpush1.bf16.msra.mxu0 0
      %398 = vmatprep.subr.bf16.mxu0 0
      %399 = vmatpush1.bf16.msra.mxu0 0
      %400 = vmatprep.subr.bf16.mxu0 0
      %401 = vmatpush1.bf16.msra.mxu0 0
      %402 = vmatprep.subr.bf16.mxu0 0
      %403 = vmatpush1.bf16.msra.mxu0 0
      %404 = vmatprep.subr.bf16.mxu0 0
      %405 = vmatpush1.bf16.msra.mxu0 0
      %406 = vmatprep.subr.bf16.mxu0 0
      %407 = vmatpush1.bf16.msra.mxu0 %v390
      %408 = vmatprep.subr.bf16.mxu0 0
      %409 = vmatpush2.bf16.msra.mxu0 0
      %410 = vmatprep.subr.bf16.mxu0 0
      %411 = vmatpush2.bf16.msra.mxu0 0
      %412 = vmatprep.subr.bf16.mxu0 0
      %413 = vmatpush2.bf16.msra.mxu0 0
      %414 = vmatprep.subr.bf16.mxu0 0
      %415 = vmatpush2.bf16.msra.mxu0 0
      %416 = vmatprep.subr.bf16.mxu0 0
      %417 = vmatpush2.bf16.msra.mxu0 0
      %418 = vmatprep.subr.bf16.mxu0 0
      %419 = vmatpush2.bf16.msra.mxu0 0
      %420 = vmatprep.subr.bf16.mxu0 0
      %421 = vmatpush2.bf16.msra.mxu0 0
      %422 = vmatprep.subr.bf16.mxu0 0
      %423 = vmatpush2.bf16.msra.mxu0 0
      %424 = vmatprep.mubr.bf16.mxu0 0
      %425 = vmatmul.mubr.bf16.gmra.mxu0 %v341
      %v426 = vpop.f32.mrf.mxu0
      %v427 = vadd.f32 0.0, %v426
      %v428 = vpop.f32.mrf.mxu0
      %v429 = vpop.f32.mrf.mxu0
      %v430 = vadd.f32 0.0, %v429
      %v431 = vpop.f32.mrf.mxu0
      %432 = vmatprep.mubr.bf16.mxu0 0
      %433 = vmatmul.mubr.bf16.gmra.mxu0 %v344
      %v434 = vpop.f32.mrf.mxu0
      %v435 = vadd.f32 0.0, %v434
      %v436 = vpop.f32.mrf.mxu0
      %v437 = vpop.f32.mrf.mxu0
      %v438 = vadd.f32 0.0, %v437
      %v439 = vpop.f32.mrf.mxu0
      %440 = vmatprep.mubr.bf16.mxu0 0
      %441 = vmatmul.mubr.bf16.gmra.mxu0 %v347
      %v442 = vpop.f32.mrf.mxu0
      %v443 = vadd.f32 0.0, %v442
      %v444 = vpop.f32.mrf.mxu0
      %v445 = vpop.f32.mrf.mxu0
      %v446 = vadd.f32 0.0, %v445
      %v447 = vpop.f32.mrf.mxu0
      %448 = vmatprep.mubr.bf16.mxu0 0
      %449 = vmatmul.mubr.bf16.gmra.mxu0 %v350
      %v450 = vpop.f32.mrf.mxu0
      %v451 = vadd.f32 0.0, %v450
      %v452 = vpop.f32.mrf.mxu0
      %v453 = vpop.f32.mrf.mxu0
      %v454 = vadd.f32 0.0, %v453
      %v455 = vpop.f32.mrf.mxu0
      %456 = vmatprep.mubr.bf16.mxu0 0
      %457 = vmatmul.mubr.bf16.gmra.mxu0 %v353
      %v458 = vpop.f32.mrf.mxu0
      %v459 = vadd.f32 0.0, %v458
      %v460 = vpop.f32.mrf.mxu0
      %v461 = vpop.f32.mrf.mxu0
      %v462 = vadd.f32 0.0, %v461
      %v463 = vpop.f32.mrf.mxu0
      %464 = vmatprep.mubr.bf16.mxu0 0
      %465 = vmatmul.mubr.bf16.gmra.mxu0 %v356
      %v466 = vpop.f32.mrf.mxu0
      %v467 = vadd.f32 0.0, %v466
      %v468 = vpop.f32.mrf.mxu0
      %v469 = vpop.f32.mrf.mxu0
      %v470 = vadd.f32 0.0, %v469
      %v471 = vpop.f32.mrf.mxu0
      %472 = vmatprep.mubr.bf16.mxu0 0
      %473 = vmatmul.mubr.bf16.gmra.mxu0 %v359
      %v474 = vpop.f32.mrf.mxu0
      %v475 = vadd.f32 0.0, %v474
      %v476 = vpop.f32.mrf.mxu0
      %v477 = vpop.f32.mrf.mxu0
      %v478 = vadd.f32 0.0, %v477
      %v479 = vpop.f32.mrf.mxu0
      %480 = vmatprep.mubr.bf16.mxu0 0
      %481 = vmatmul.mubr.bf16.gmra.mxu0 %v362
      %v482 = vpop.f32.mrf.mxu0
      %v483 = vadd.f32 0.0, %v482
      %v484 = vpop.f32.mrf.mxu0
      %v485 = vpop.f32.mrf.mxu0
      %v486 = vadd.f32 0.0, %v485
      %v487 = vpop.f32.mrf.mxu0
      %488 = vmatprep.mubr.bf16.mxu0 0
      %489 = vmatmul.mubr.bf16.gmra.mxu0 %v365
      %v490 = vpop.f32.mrf.mxu0
      %v491 = vadd.f32 0.0, %v490
      %v492 = vpop.f32.mrf.mxu0
      %v493 = vpop.f32.mrf.mxu0
      %v494 = vadd.f32 0.0, %v493
      %v495 = vpop.f32.mrf.mxu0
      %496 = vmatprep.mubr.bf16.mxu0 0
      %497 = vmatmul.mubr.bf16.gmra.mxu0 %v368
      %v498 = vpop.f32.mrf.mxu0
      %v499 = vadd.f32 0.0, %v498
      %v500 = vpop.f32.mrf.mxu0
      %v501 = vpop.f32.mrf.mxu0
      %v502 = vadd.f32 0.0, %v501
      %v503 = vpop.f32.mrf.mxu0
      %504 = vmatprep.mubr.bf16.mxu0 0
      %505 = vmatmul.mubr.bf16.gmra.mxu0 %v371
      %v506 = vpop.f32.mrf.mxu0
      %v507 = vadd.f32 0.0, %v506
      %v508 = vpop.f32.mrf.mxu0
      %v509 = vpop.f32.mrf.mxu0
      %v510 = vadd.f32 0.0, %v509
      %v511 = vpop.f32.mrf.mxu0
      %512 = vmatprep.mubr.bf16.mxu0 0
      %513 = vmatmul.mubr.bf16.gmra.mxu0 %v374
      %v514 = vpop.f32.mrf.mxu0
      %v515 = vadd.f32 0.0, %v514
      %v516 = vpop.f32.mrf.mxu0
      %v517 = vpop.f32.mrf.mxu0
      %v518 = vadd.f32 0.0, %v517
      %v519 = vpop.f32.mrf.mxu0
      %520 = vmatprep.mubr.bf16.mxu0 0
      %521 = vmatmul.mubr.bf16.gmra.mxu0 %v377
      %v522 = vpop.f32.mrf.mxu0
      %v523 = vadd.f32 0.0, %v522
      %v524 = vpop.f32.mrf.mxu0
      %v525 = vpop.f32.mrf.mxu0
      %v526 = vadd.f32 0.0, %v525
      %v527 = vpop.f32.mrf.mxu0
      %528 = vmatprep.mubr.bf16.mxu0 0
      %529 = vmatmul.mubr.bf16.gmra.mxu0 %v380
      %v530 = vpop.f32.mrf.mxu0
      %v531 = vadd.f32 0.0, %v530
      %v532 = vpop.f32.mrf.mxu0
      %v533 = vpop.f32.mrf.mxu0
      %v534 = vadd.f32 0.0, %v533
      %v535 = vpop.f32.mrf.mxu0
      %536 = vmatprep.mubr.bf16.mxu0 0
      %537 = vmatmul.mubr.bf16.gmra.mxu0 %v383
      %v538 = vpop.f32.mrf.mxu0
      %v539 = vadd.f32 0.0, %v538
      %v540 = vpop.f32.mrf.mxu0
      %v541 = vpop.f32.mrf.mxu0
      %v542 = vadd.f32 0.0, %v541
      %v543 = vpop.f32.mrf.mxu0
      %544 = vmatprep.mubr.bf16.mxu0 0
      %545 = vmatmul.mubr.bf16.gmra.mxu0 %v386
      %v546 = vpop.f32.mrf.mxu0
      %v547 = vadd.f32 0.0, %v546
      %v548 = vpop.f32.mrf.mxu0
      %v549 = vpop.f32.mrf.mxu0
      %v550 = vadd.f32 0.0, %v549
      %v551 = vpop.f32.mrf.mxu0
      %552 = vdwg.mxu0
      %v553 = vmax.f32 %v427, 0.0
      %v554 = vmax.f32 %v430, 0.0
      %v555 = vmax.f32 %v435, 0.0
      %v556 = vmax.f32 %v438, 0.0
      %v557 = vmax.f32 %v443, 0.0
      %v558 = vmax.f32 %v446, 0.0
      %v559 = vmax.f32 %v451, 0.0
      %v560 = vmax.f32 %v454, 0.0
      %v561 = vmax.f32 %v459, 0.0
      %v562 = vmax.f32 %v462, 0.0
      %v563 = vmax.f32 %v467, 0.0
      %v564 = vmax.f32 %v470, 0.0
      %v565 = vmax.f32 %v475, 0.0
      %v566 = vmax.f32 %v478, 0.0
      %v567 = vmax.f32 %v483, 0.0
      %v568 = vmax.f32 %v486, 0.0
      %v569 = vmax.f32 %v491, 0.0
      %v570 = vmax.f32 %v494, 0.0
      %v571 = vmax.f32 %v499, 0.0
      %v572 = vmax.f32 %v502, 0.0
      %v573 = vmax.f32 %v507, 0.0
      %v574 = vmax.f32 %v510, 0.0
      %v575 = vmax.f32 %v515, 0.0
      %v576 = vmax.f32 %v518, 0.0
      %v577 = vmax.f32 %v523, 0.0
      %v578 = vmax.f32 %v526, 0.0
      %v579 = vmax.f32 %v531, 0.0
      %v580 = vmax.f32 %v534, 0.0
      %v581 = vmax.f32 %v539, 0.0
      %v582 = vmax.f32 %v542, 0.0
      %v583 = vmax.f32 %v547, 0.0
      %v584 = vmax.f32 %v550, 0.0
      %vm585 = vcmask 60416
      %586 = vst.msk [vmem:[#allocation2] sm:$0xf] %vm585, 0
      %587 = vst.msk [vmem:[#allocation2 + $0x4] sm:$0xf] %vm585, 0
      %vm588 = vcmask 58368
      %589 = vst.msk [vmem:[#allocation2 + $0x8] sm:$0x3] %vm588, 0
      %590 = vst.msk [vmem:[#allocation2 + $0xc] sm:$0xf] %vm585, 0
      %591 = vst.msk [vmem:[#allocation2 + $0x10] sm:$0xf] %vm585, 0
      %592 = vst.msk [vmem:[#allocation2 + $0x14] sm:$0x3] %vm588, 0
      %s593 = scalar_lea.vmem [#allocation2], 216
      %594 = vst.msk [vmem:[%s593] sm:$0xf] %vm585, 0
      %595 = vst.msk [vmem:[%s593 + $0x4] sm:$0xf] %vm585, 0
      %596 = vst.msk [vmem:[%s593 + $0x8] sm:$0x3] %vm588, 0
      %597 = vst.msk [vmem:[%s593 + $0xc] sm:$0xf] %vm585, 0
      %598 = vst.msk [vmem:[%s593 + $0x10] sm:$0xf] %vm585, 0
      %599 = vst.msk [vmem:[%s593 + $0x14] sm:$0x3] %vm588, 0
      %vm600 = vcmask 57344
      %601 = vst.msk [vmem:[#allocation2] sm:$0x1] %vm600, 0
      %602 = vst.msk [vmem:[#allocation2 + $0xc] sm:$0x1] %vm600, 0
      %603 = vst.msk [vmem:[#allocation2 + $0x18] sm:$0x1] %vm600, 0
      %604 = vst.msk [vmem:[#allocation2 + $0x24] sm:$0x1] %vm600, 0
      %605 = vst.msk [vmem:[#allocation2 + $0x30] sm:$0x1] %vm600, 0
      %606 = vst.msk [vmem:[#allocation2 + $0x3c] sm:$0x1] %vm600, 0
      %607 = vst.msk [vmem:[#allocation2 + $0x48] sm:$0x1] %vm600, 0
      %608 = vst.msk [vmem:[#allocation2 + $0x54] sm:$0x1] %vm600, 0
      %609 = vst.msk [vmem:[#allocation2 + $0x60] sm:$0x1] %vm600, 0
      %610 = vst.msk [vmem:[#allocation2 + $0x6c] sm:$0x1] %vm600, 0
      %611 = vst.msk [vmem:[#allocation2 + $0x78] sm:$0x1] %vm600, 0
      %612 = vst.msk [vmem:[#allocation2 + $0x84] sm:$0x1] %vm600, 0
      %613 = vst.msk [vmem:[#allocation2 + $0x90] sm:$0x1] %vm600, 0
      %614 = vst.msk [vmem:[#allocation2 + $0x9c] sm:$0x1] %vm600, 0
      %615 = vst.msk [vmem:[#allocation2 + $0xa8] sm:$0x1] %vm600, 0
      %616 = vst.msk [vmem:[#allocation2 + $0xb4] sm:$0x1] %vm600, 0
      %617 = vst.msk [vmem:[#allocation2 + $0xc0] sm:$0x1] %vm600, 0
      %618 = vst.msk [vmem:[#allocation2 + $0xcc] sm:$0x1] %vm600, 0
      %619 = vst.msk [vmem:[#allocation2 + $0xd8] sm:$0x1] %vm600, 0
      %620 = vst.msk [vmem:[#allocation2 + $0xe4] sm:$0x1] %vm600, 0
      %vm621 = vcmask 58369
      %622 = vst.msk [vmem:[#allocation2 + $0x8] sm:$0x2] %vm621, 0
      %623 = vst.msk [vmem:[#allocation2 + $0x14] sm:$0x2] %vm621, 0
      %624 = vst.msk [vmem:[#allocation2 + $0x20] sm:$0x2] %vm621, 0
      %625 = vst.msk [vmem:[#allocation2 + $0x2c] sm:$0x2] %vm621, 0
      %626 = vst.msk [vmem:[#allocation2 + $0x38] sm:$0x2] %vm621, 0
      %627 = vst.msk [vmem:[#allocation2 + $0x44] sm:$0x2] %vm621, 0
      %628 = vst.msk [vmem:[#allocation2 + $0x50] sm:$0x2] %vm621, 0
      %629 = vst.msk [vmem:[#allocation2 + $0x5c] sm:$0x2] %vm621, 0
      %630 = vst.msk [vmem:[#allocation2 + $0x68] sm:$0x2] %vm621, 0
      %631 = vst.msk [vmem:[#allocation2 + $0x74] sm:$0x2] %vm621, 0
      %632 = vst.msk [vmem:[#allocation2 + $0x80] sm:$0x2] %vm621, 0
      %633 = vst.msk [vmem:[#allocation2 + $0x8c] sm:$0x2] %vm621, 0
      %634 = vst.msk [vmem:[#allocation2 + $0x98] sm:$0x2] %vm621, 0
      %635 = vst.msk [vmem:[#allocation2 + $0xa4] sm:$0x2] %vm621, 0
      %636 = vst.msk [vmem:[#allocation2 + $0xb0] sm:$0x2] %vm621, 0
      %637 = vst.msk [vmem:[#allocation2 + $0xbc] sm:$0x2] %vm621, 0
      %638 = vst.msk [vmem:[#allocation2 + $0xc8] sm:$0x2] %vm621, 0
      %639 = vst.msk [vmem:[#allocation2 + $0xd4] sm:$0x2] %vm621, 0
      %640 = vst.msk [vmem:[#allocation2 + $0xe0] sm:$0x2] %vm621, 0
      %641 = vst.msk [vmem:[#allocation2 + $0xec] sm:$0x2] %vm621, 0
      %v642 = vpack.c.bf16 %v554, %v553
      %v643 = vpack.c.bf16 %v556, %v555
      %v644 = vpack.c.bf16 %v558, %v557
      %v645 = vpack.c.bf16 %v560, %v559
      %v646 = vpack.c.bf16 %v562, %v561
      %v647 = vpack.c.bf16 %v564, %v563
      %v648 = vpack.c.bf16 %v566, %v565
      %v649 = vpack.c.bf16 %v568, %v567
      %v650 = vpack.c.bf16 %v570, %v569
      %v651 = vpack.c.bf16 %v572, %v571
      %v652 = vpack.c.bf16 %v574, %v573
      %v653 = vpack.c.bf16 %v576, %v575
      %v654 = vpack.c.bf16 %v578, %v577
      %v655 = vpack.c.bf16 %v580, %v579
      %v656 = vpack.c.bf16 %v582, %v581
      %v657 = vpack.c.bf16 %v584, %v583
      %v674 = vunpack.c.l.b16 %v642
      %v675 = vunpack.c.h.b16 %v642
      %v676 = vunpack.c.l.b16 %v643
      %v677 = vunpack.c.h.b16 %v643
      %v678 = vunpack.c.l.b16 %v644
      %v679 = vunpack.c.h.b16 %v644
      %v680 = vunpack.c.l.b16 %v645
      %v681 = vunpack.c.h.b16 %v645
      %v682 = vunpack.c.l.b16 %v646
      %v683 = vunpack.c.h.b16 %v646
      %v684 = vunpack.c.l.b16 %v647
      %v685 = vunpack.c.h.b16 %v647
      %v686 = vunpack.c.l.b16 %v648
      %v687 = vunpack.c.h.b16 %v648
      %v688 = vunpack.c.l.b16 %v649
      %v689 = vunpack.c.h.b16 %v649
      %v690 = vunpack.c.l.b16 %v650
      %v691 = vunpack.c.h.b16 %v650
      %v692 = vunpack.c.l.b16 %v651
      %v693 = vunpack.c.h.b16 %v651
      %v694 = vunpack.c.l.b16 %v652
      %v695 = vunpack.c.h.b16 %v652
      %v696 = vunpack.c.l.b16 %v653
      %v697 = vunpack.c.h.b16 %v653
      %v698 = vunpack.c.l.b16 %v654
      %v699 = vunpack.c.h.b16 %v654
      %v700 = vunpack.c.l.b16 %v655
      %v701 = vunpack.c.h.b16 %v655
      %v702 = vunpack.c.l.b16 %v656
      %v703 = vunpack.c.h.b16 %v656
      %v704 = vunpack.c.l.b16 %v657
      %v705 = vunpack.c.h.b16 %v657
      %v706 = vpack.c.b16 %v674, %v674
      %v707 = vpack.c.b16 %v675, %v675
      %v708 = vpack.c.b16 %v676, %v676
      %v709 = vpack.c.b16 %v677, %v677
      %v710 = vpack.c.b16 %v678, %v678
      %v711 = vpack.c.b16 %v679, %v679
      %v712 = vpack.c.b16 %v680, %v680
      %v713 = vpack.c.b16 %v681, %v681
      %v714 = vpack.c.b16 %v682, %v682
      %v715 = vpack.c.b16 %v683, %v683
      %v716 = vpack.c.b16 %v684, %v684
      %v717 = vpack.c.b16 %v685, %v685
      %v718 = vpack.c.b16 %v686, %v686
      %v719 = vpack.c.b16 %v687, %v687
      %v720 = vpack.c.b16 %v688, %v688
      %v721 = vpack.c.b16 %v689, %v689
      %v722 = vpack.c.b16 %v690, %v690
      %v723 = vpack.c.b16 %v691, %v691
      %v724 = vpack.c.b16 %v692, %v692
      %v725 = vpack.c.b16 %v693, %v693
      %v726 = vpack.c.b16 %v694, %v694
      %v727 = vpack.c.b16 %v695, %v695
      %v728 = vpack.c.b16 %v696, %v696
      %v729 = vpack.c.b16 %v697, %v697
      %v730 = vpack.c.b16 %v698, %v698
      %v731 = vpack.c.b16 %v699, %v699
      %v732 = vpack.c.b16 %v700, %v700
      %v733 = vpack.c.b16 %v701, %v701
      %v734 = vpack.c.b16 %v702, %v702
      %v735 = vpack.c.b16 %v703, %v703
      %v736 = vpack.c.b16 %v704, %v704
      %v737 = vpack.c.b16 %v705, %v705
      %vm738 = vcmask 1040384
      %vm739 = vcmask 1044484
      %vm740 = vmor %vm738, %vm739
      %v741 = vrot.slane %v706, 7
      %v742 = vrot.slane %v741, 4
      %v743 = vrot.slane %v707, 7
      %v744 = vsel %vm740, %v742, %v743
      %v745 = vrot.slane %v743, 4
      %v746 = vrot.slane %v708, 7
      %v747 = vrot.slane %v746, 4
      %v748 = vrot.slane %v709, 7
      %v749 = vsel %vm740, %v747, %v748
      %v750 = vrot.slane %v748, 4
      %v751 = vrot.slane %v710, 7
      %v752 = vrot.slane %v751, 4
      %v753 = vrot.slane %v711, 7
      %v754 = vsel %vm740, %v752, %v753
      %v755 = vrot.slane %v753, 4
      %v756 = vrot.slane %v712, 7
      %v757 = vrot.slane %v756, 4
      %v758 = vrot.slane %v713, 7
      %v759 = vsel %vm740, %v757, %v758
      %v760 = vrot.slane %v758, 4
      %v761 = vrot.slane %v714, 7
      %v762 = vrot.slane %v761, 4
      %v763 = vrot.slane %v715, 7
      %v764 = vsel %vm740, %v762, %v763
      %v765 = vrot.slane %v763, 4
      %v766 = vrot.slane %v716, 7
      %v767 = vrot.slane %v766, 4
      %v768 = vrot.slane %v717, 7
      %v769 = vsel %vm740, %v767, %v768
      %v770 = vrot.slane %v768, 4
      %v771 = vrot.slane %v718, 7
      %v772 = vrot.slane %v771, 4
      %v773 = vrot.slane %v719, 7
      %v774 = vsel %vm740, %v772, %v773
      %v775 = vrot.slane %v773, 4
      %v776 = vrot.slane %v720, 7
      %v777 = vrot.slane %v776, 4
      %v778 = vrot.slane %v721, 7
      %v779 = vsel %vm740, %v777, %v778
      %v780 = vrot.slane %v778, 4
      %v781 = vrot.slane %v722, 7
      %v782 = vrot.slane %v781, 4
      %v783 = vrot.slane %v723, 7
      %v784 = vsel %vm740, %v782, %v783
      %v785 = vrot.slane %v783, 4
      %v786 = vrot.slane %v724, 7
      %v787 = vrot.slane %v786, 4
      %v788 = vrot.slane %v725, 7
      %v789 = vsel %vm740, %v787, %v788
      %v790 = vrot.slane %v788, 4
      %v791 = vrot.slane %v726, 7
      %v792 = vrot.slane %v791, 4
      %v793 = vrot.slane %v727, 7
      %v794 = vsel %vm740, %v792, %v793
      %v795 = vrot.slane %v793, 4
      %v796 = vrot.slane %v728, 7
      %v797 = vrot.slane %v796, 4
      %v798 = vrot.slane %v729, 7
      %v799 = vsel %vm740, %v797, %v798
      %v800 = vrot.slane %v798, 4
      %v801 = vrot.slane %v730, 7
      %v802 = vrot.slane %v801, 4
      %v803 = vrot.slane %v731, 7
      %v804 = vsel %vm740, %v802, %v803
      %v805 = vrot.slane %v803, 4
      %v806 = vrot.slane %v732, 7
      %v807 = vrot.slane %v806, 4
      %v808 = vrot.slane %v733, 7
      %v809 = vsel %vm740, %v807, %v808
      %v810 = vrot.slane %v808, 4
      %v811 = vrot.slane %v734, 7
      %v812 = vrot.slane %v811, 4
      %v813 = vrot.slane %v735, 7
      %v814 = vsel %vm740, %v812, %v813
      %v815 = vrot.slane %v813, 4
      %v816 = vrot.slane %v736, 7
      %v817 = vrot.slane %v816, 4
      %v818 = vrot.slane %v737, 7
      %v819 = vsel %vm740, %v817, %v818
      %v820 = vrot.slane %v818, 4
      %s869 = scalar_lea.vmem [#allocation2], 24
      %vm870 = vcmask 60417
      %871 = vst.msk [vmem:[%s869] sm:$0xe] %vm870, %v741
      %872 = vst.msk [vmem:[%s869 + $0x4] sm:$0xf] %vm585, %v744
      %873 = vst.msk [vmem:[%s869 + $0x8] sm:$0x1] %vm600, %v745
      %874 = vst.msk [vmem:[%s869 + $0xc] sm:$0xe] %vm870, %v746
      %875 = vst.msk [vmem:[%s869 + $0x10] sm:$0xf] %vm585, %v749
      %876 = vst.msk [vmem:[%s869 + $0x14] sm:$0x1] %vm600, %v750
      %877 = vst.msk [vmem:[%s869 + $0x18] sm:$0xe] %vm870, %v751
      %878 = vst.msk [vmem:[%s869 + $0x1c] sm:$0xf] %vm585, %v754
      %879 = vst.msk [vmem:[%s869 + $0x20] sm:$0x1] %vm600, %v755
      %880 = vst.msk [vmem:[%s869 + $0x24] sm:$0xe] %vm870, %v756
      %881 = vst.msk [vmem:[%s869 + $0x28] sm:$0xf] %vm585, %v759
      %882 = vst.msk [vmem:[%s869 + $0x2c] sm:$0x1] %vm600, %v760
      %883 = vst.msk [vmem:[%s869 + $0x30] sm:$0xe] %vm870, %v761
      %884 = vst.msk [vmem:[%s869 + $0x34] sm:$0xf] %vm585, %v764
      %885 = vst.msk [vmem:[%s869 + $0x38] sm:$0x1] %vm600, %v765
      %886 = vst.msk [vmem:[%s869 + $0x3c] sm:$0xe] %vm870, %v766
      %887 = vst.msk [vmem:[%s869 + $0x40] sm:$0xf] %vm585, %v769
      %888 = vst.msk [vmem:[%s869 + $0x44] sm:$0x1] %vm600, %v770
      %889 = vst.msk [vmem:[%s869 + $0x48] sm:$0xe] %vm870, %v771
      %890 = vst.msk [vmem:[%s869 + $0x4c] sm:$0xf] %vm585, %v774
      %891 = vst.msk [vmem:[%s869 + $0x50] sm:$0x1] %vm600, %v775
      %892 = vst.msk [vmem:[%s869 + $0x54] sm:$0xe] %vm870, %v776
      %893 = vst.msk [vmem:[%s869 + $0x58] sm:$0xf] %vm585, %v779
      %894 = vst.msk [vmem:[%s869 + $0x5c] sm:$0x1] %vm600, %v780
      %895 = vst.msk [vmem:[%s869 + $0x60] sm:$0xe] %vm870, %v781
      %896 = vst.msk [vmem:[%s869 + $0x64] sm:$0xf] %vm585, %v784
      %897 = vst.msk [vmem:[%s869 + $0x68] sm:$0x1] %vm600, %v785
      %898 = vst.msk [vmem:[%s869 + $0x6c] sm:$0xe] %vm870, %v786
      %899 = vst.msk [vmem:[%s869 + $0x70] sm:$0xf] %vm585, %v789
      %900 = vst.msk [vmem:[%s869 + $0x74] sm:$0x1] %vm600, %v790
      %901 = vst.msk [vmem:[%s869 + $0x78] sm:$0xe] %vm870, %v791
      %902 = vst.msk [vmem:[%s869 + $0x7c] sm:$0xf] %vm585, %v794
      %903 = vst.msk [vmem:[%s869 + $0x80] sm:$0x1] %vm600, %v795
      %904 = vst.msk [vmem:[%s869 + $0x84] sm:$0xe] %vm870, %v796
      %905 = vst.msk [vmem:[%s869 + $0x88] sm:$0xf] %vm585, %v799
      %906 = vst.msk [vmem:[%s869 + $0x8c] sm:$0x1] %vm600, %v800
      %907 = vst.msk [vmem:[%s869 + $0x90] sm:$0xe] %vm870, %v801
      %908 = vst.msk [vmem:[%s869 + $0x94] sm:$0xf] %vm585, %v804
      %909 = vst.msk [vmem:[%s869 + $0x98] sm:$0x1] %vm600, %v805
      %910 = vst.msk [vmem:[%s869 + $0x9c] sm:$0xe] %vm870, %v806
      %911 = vst.msk [vmem:[%s869 + $0xa0] sm:$0xf] %vm585, %v809
      %912 = vst.msk [vmem:[%s869 + $0xa4] sm:$0x1] %vm600, %v810
      %913 = vst.msk [vmem:[%s869 + $0xa8] sm:$0xe] %vm870, %v811
      %914 = vst.msk [vmem:[%s869 + $0xac] sm:$0xf] %vm585, %v814
      %915 = vst.msk [vmem:[%s869 + $0xb0] sm:$0x1] %vm600, %v815
      %916 = vst.msk [vmem:[%s869 + $0xb4] sm:$0xe] %vm870, %v816
      %917 = vst.msk [vmem:[%s869 + $0xb8] sm:$0xf] %vm585, %v819
      %918 = vst.msk [vmem:[%s869 + $0xbc] sm:$0x1] %vm600, %v820
      %v919 = vld [vmem:[#allocation2] sm:$0xf]
      %v920 = vld [vmem:[#allocation2 + $0x4] sm:$0xf]
      %v921 = vld [vmem:[#allocation2 + $0xc] sm:$0xf]
      %v922 = vld [vmem:[#allocation2 + $0x10] sm:$0xf]
      %v923 = vld [vmem:[#allocation2 + $0x18] sm:$0xf]
      %v924 = vld [vmem:[#allocation2 + $0x1c] sm:$0xf]
      %v925 = vld [vmem:[#allocation2 + $0x24] sm:$0xf]
      %v926 = vld [vmem:[#allocation2 + $0x28] sm:$0xf]
      %v927 = vld [vmem:[#allocation2 + $0x30] sm:$0xf]
      %v928 = vld [vmem:[#allocation2 + $0x34] sm:$0xf]
      %v929 = vld [vmem:[#allocation2 + $0x3c] sm:$0xf]
      %v930 = vld [vmem:[#allocation2 + $0x40] sm:$0xf]
      %v931 = vld [vmem:[#allocation2 + $0x48] sm:$0xf]
      %v932 = vld [vmem:[#allocation2 + $0x4c] sm:$0xf]
      %v933 = vld [vmem:[#allocation2 + $0x54] sm:$0xf]
      %v934 = vld [vmem:[#allocation2 + $0x58] sm:$0xf]
      %v935 = vld [vmem:[#allocation2 + $0x60] sm:$0xf]
      %v936 = vld [vmem:[#allocation2 + $0x64] sm:$0xf]
      %v937 = vld [vmem:[#allocation2 + $0x6c] sm:$0xf]
      %v938 = vld [vmem:[#allocation2 + $0x70] sm:$0xf]
      %v939 = vld [vmem:[#allocation2 + $0x78] sm:$0xf]
      %v940 = vld [vmem:[#allocation2 + $0x7c] sm:$0xf]
      %v941 = vld [vmem:[#allocation2 + $0x84] sm:$0xf]
      %v942 = vld [vmem:[#allocation2 + $0x88] sm:$0xf]
      %v943 = vld [vmem:[#allocation2 + $0x90] sm:$0xf]
      %v944 = vld [vmem:[#allocation2 + $0x94] sm:$0xf]
      %v945 = vld [vmem:[#allocation2 + $0x9c] sm:$0xf]
      %v946 = vld [vmem:[#allocation2 + $0xa0] sm:$0xf]
      %v947 = vld [vmem:[#allocation2 + $0xa8] sm:$0xf]
      %v948 = vld [vmem:[#allocation2 + $0xac] sm:$0xf]
      %v949 = vld [vmem:[#allocation2 + $0xb4] sm:$0xf]
      %v950 = vld [vmem:[#allocation2 + $0xb8] sm:$0xf]
      %v951 = vld [vmem:[%s2] sm:$0xf]
      %v952 = vld [vmem:[#allocation2] sm:$0xe]
      %v953 = vld [vmem:[#allocation2 + $0x8] sm:$0x1]
      %v954 = vld [vmem:[#allocation2 + $0xc] sm:$0xe]
      %v955 = vld [vmem:[#allocation2 + $0x14] sm:$0x1]
      %v956 = vld [vmem:[#allocation2 + $0x18] sm:$0xe]
      %v957 = vld [vmem:[#allocation2 + $0x20] sm:$0x1]
      %v958 = vld [vmem:[#allocation2 + $0x24] sm:$0xe]
      %v959 = vld [vmem:[#allocation2 + $0x2c] sm:$0x1]
      %v960 = vld [vmem:[#allocation2 + $0x30] sm:$0xe]
      %v961 = vld [vmem:[#allocation2 + $0x38] sm:$0x1]
      %v962 = vld [vmem:[#allocation2 + $0x3c] sm:$0xe]
      %v963 = vld [vmem:[#allocation2 + $0x44] sm:$0x1]
      %v964 = vld [vmem:[#allocation2 + $0x48] sm:$0xe]
      %v965 = vld [vmem:[#allocation2 + $0x50] sm:$0x1]
      %v966 = vld [vmem:[#allocation2 + $0x54] sm:$0xe]
      %v967 = vld [vmem:[#allocation2 + $0x5c] sm:$0x1]
      %v968 = vld [vmem:[#allocation2 + $0x60] sm:$0xe]
      %v969 = vld [vmem:[#allocation2 + $0x68] sm:$0x1]
      %v970 = vld [vmem:[#allocation2 + $0x6c] sm:$0xe]
      %v971 = vld [vmem:[#allocation2 + $0x74] sm:$0x1]
      %v972 = vld [vmem:[#allocation2 + $0x78] sm:$0xe]
      %v973 = vld [vmem:[#allocation2 + $0x80] sm:$0x1]
      %v974 = vld [vmem:[#allocation2 + $0x84] sm:$0xe]
      %v975 = vld [vmem:[#allocation2 + $0x8c] sm:$0x1]
      %v976 = vld [vmem:[#allocation2 + $0x90] sm:$0xe]
      %v977 = vld [vmem:[#allocation2 + $0x98] sm:$0x1]
      %v978 = vld [vmem:[#allocation2 + $0x9c] sm:$0xe]
      %v979 = vld [vmem:[#allocation2 + $0xa4] sm:$0x1]
      %v980 = vld [vmem:[#allocation2 + $0xa8] sm:$0xe]
      %v981 = vld [vmem:[#allocation2 + $0xb0] sm:$0x1]
      %v982 = vld [vmem:[#allocation2 + $0xb4] sm:$0xe]
      %v983 = vld [vmem:[#allocation2 + $0xbc] sm:$0x1]
      %vm1032 = vcmask 1042432
      %vm1033 = vcmask 1046532
      %vm1034 = vmor %vm1032, %vm1033
      %v1035 = vrot.slane %v952, 5
      %v1036 = vrot.slane %v1035, 4
      %v1037 = vrot.slane %v920, 5
      %v1038 = vsel %vm1034, %v1036, %v1037
      %v1039 = vrot.slane %v1037, 4
      %v1040 = vrot.slane %v953, 5
      %v1041 = vsel %vm1034, %v1039, %v1040
      %v1042 = vrot.slane %v954, 5
      %v1043 = vrot.slane %v1042, 4
      %v1044 = vrot.slane %v922, 5
      %v1045 = vsel %vm1034, %v1043, %v1044
      %v1046 = vrot.slane %v1044, 4
      %v1047 = vrot.slane %v955, 5
      %v1048 = vsel %vm1034, %v1046, %v1047
      %v1049 = vrot.slane %v956, 5
      %v1050 = vrot.slane %v1049, 4
      %v1051 = vrot.slane %v924, 5
      %v1052 = vsel %vm1034, %v1050, %v1051
      %v1053 = vrot.slane %v1051, 4
      %v1054 = vrot.slane %v957, 5
      %v1055 = vsel %vm1034, %v1053, %v1054
      %v1056 = vrot.slane %v958, 5
      %v1057 = vrot.slane %v1056, 4
      %v1058 = vrot.slane %v926, 5
      %v1059 = vsel %vm1034, %v1057, %v1058
      %v1060 = vrot.slane %v1058, 4
      %v1061 = vrot.slane %v959, 5
      %v1062 = vsel %vm1034, %v1060, %v1061
      %v1063 = vrot.slane %v960, 5
      %v1064 = vrot.slane %v1063, 4
      %v1065 = vrot.slane %v928, 5
      %v1066 = vsel %vm1034, %v1064, %v1065
      %v1067 = vrot.slane %v1065, 4
      %v1068 = vrot.slane %v961, 5
      %v1069 = vsel %vm1034, %v1067, %v1068
      %v1070 = vrot.slane %v962, 5
      %v1071 = vrot.slane %v1070, 4
      %v1072 = vrot.slane %v930, 5
      %v1073 = vsel %vm1034, %v1071, %v1072
      %v1074 = vrot.slane %v1072, 4
      %v1075 = vrot.slane %v963, 5
      %v1076 = vsel %vm1034, %v1074, %v1075
      %v1077 = vrot.slane %v964, 5
      %v1078 = vrot.slane %v1077, 4
      %v1079 = vrot.slane %v932, 5
      %v1080 = vsel %vm1034, %v1078, %v1079
      %v1081 = vrot.slane %v1079, 4
      %v1082 = vrot.slane %v965, 5
      %v1083 = vsel %vm1034, %v1081, %v1082
      %v1084 = vrot.slane %v966, 5
      %v1085 = vrot.slane %v1084, 4
      %v1086 = vrot.slane %v934, 5
      %v1087 = vsel %vm1034, %v1085, %v1086
      %v1088 = vrot.slane %v1086, 4
      %v1089 = vrot.slane %v967, 5
      %v1090 = vsel %vm1034, %v1088, %v1089
      %v1091 = vrot.slane %v968, 5
      %v1092 = vrot.slane %v1091, 4
      %v1093 = vrot.slane %v936, 5
      %v1094 = vsel %vm1034, %v1092, %v1093
      %v1095 = vrot.slane %v1093, 4
      %v1096 = vrot.slane %v969, 5
      %v1097 = vsel %vm1034, %v1095, %v1096
      %v1098 = vrot.slane %v970, 5
      %v1099 = vrot.slane %v1098, 4
      %v1100 = vrot.slane %v938, 5
      %v1101 = vsel %vm1034, %v1099, %v1100
      %v1102 = vrot.slane %v1100, 4
      %v1103 = vrot.slane %v971, 5
      %v1104 = vsel %vm1034, %v1102, %v1103
      %v1105 = vrot.slane %v972, 5
      %v1106 = vrot.slane %v1105, 4
      %v1107 = vrot.slane %v940, 5
      %v1108 = vsel %vm1034, %v1106, %v1107
      %v1109 = vrot.slane %v1107, 4
      %v1110 = vrot.slane %v973, 5
      %v1111 = vsel %vm1034, %v1109, %v1110
      %v1112 = vrot.slane %v974, 5
      %v1113 = vrot.slane %v1112, 4
      %v1114 = vrot.slane %v942, 5
      %v1115 = vsel %vm1034, %v1113, %v1114
      %v1116 = vrot.slane %v1114, 4
      %v1117 = vrot.slane %v975, 5
      %v1118 = vsel %vm1034, %v1116, %v1117
      %v1119 = vrot.slane %v976, 5
      %v1120 = vrot.slane %v1119, 4
      %v1121 = vrot.slane %v944, 5
      %v1122 = vsel %vm1034, %v1120, %v1121
      %v1123 = vrot.slane %v1121, 4
      %v1124 = vrot.slane %v977, 5
      %v1125 = vsel %vm1034, %v1123, %v1124
      %v1126 = vrot.slane %v978, 5
      %v1127 = vrot.slane %v1126, 4
      %v1128 = vrot.slane %v946, 5
      %v1129 = vsel %vm1034, %v1127, %v1128
      %v1130 = vrot.slane %v1128, 4
      %v1131 = vrot.slane %v979, 5
      %v1132 = vsel %vm1034, %v1130, %v1131
      %v1133 = vrot.slane %v980, 5
      %v1134 = vrot.slane %v1133, 4
      %v1135 = vrot.slane %v948, 5
      %v1136 = vsel %vm1034, %v1134, %v1135
      %v1137 = vrot.slane %v1135, 4
      %v1138 = vrot.slane %v981, 5
      %v1139 = vsel %vm1034, %v1137, %v1138
      %v1140 = vrot.slane %v982, 5
      %v1141 = vrot.slane %v1140, 4
      %v1142 = vrot.slane %v950, 5
      %v1143 = vsel %vm1034, %v1141, %v1142
      %v1144 = vrot.slane %v1142, 4
      %v1145 = vrot.slane %v983, 5
      %v1146 = vsel %vm1034, %v1144, %v1145
      %s1147 = scalar_lea.vmem %s2, 4
      %v1148 = vld [vmem:[%s1147] sm:$0xf]
      %v1149 = vunpack.c.l.b16 %v1038
      %v1150 = vunpack.c.l.b16 %v1041
      %v1151 = vunpack.c.l.b16 %v1045
      %v1152 = vunpack.c.l.b16 %v1048
      %v1153 = vunpack.c.l.b16 %v1052
      %v1154 = vunpack.c.l.b16 %v1055
      %v1155 = vunpack.c.l.b16 %v1059
      %v1156 = vunpack.c.l.b16 %v1062
      %v1157 = vunpack.c.l.b16 %v1066
      %v1158 = vunpack.c.l.b16 %v1069
      %v1159 = vunpack.c.l.b16 %v1073
      %v1160 = vunpack.c.l.b16 %v1076
      %v1161 = vunpack.c.l.b16 %v1080
      %v1162 = vunpack.c.l.b16 %v1083
      %v1163 = vunpack.c.l.b16 %v1087
      %v1164 = vunpack.c.l.b16 %v1090
      %v1165 = vunpack.c.l.b16 %v1094
      %v1166 = vunpack.c.l.b16 %v1097
      %v1167 = vunpack.c.l.b16 %v1101
      %v1168 = vunpack.c.l.b16 %v1104
      %v1169 = vunpack.c.l.b16 %v1108
      %v1170 = vunpack.c.l.b16 %v1111
      %v1171 = vunpack.c.l.b16 %v1115
      %v1172 = vunpack.c.l.b16 %v1118
      %v1173 = vunpack.c.l.b16 %v1122
      %v1174 = vunpack.c.l.b16 %v1125
      %v1175 = vunpack.c.l.b16 %v1129
      %v1176 = vunpack.c.l.b16 %v1132
      %v1177 = vunpack.c.l.b16 %v1136
      %v1178 = vunpack.c.l.b16 %v1139
      %v1179 = vunpack.c.l.b16 %v1143
      %v1180 = vunpack.c.l.b16 %v1146
      %v1181 = vpack.c.b16 %v1150, %v1149
      %v1182 = vpack.c.b16 %v1152, %v1151
      %v1183 = vpack.c.b16 %v1154, %v1153
      %v1184 = vpack.c.b16 %v1156, %v1155
      %v1185 = vpack.c.b16 %v1158, %v1157
      %v1186 = vpack.c.b16 %v1160, %v1159
      %v1187 = vpack.c.b16 %v1162, %v1161
      %v1188 = vpack.c.b16 %v1164, %v1163
      %v1189 = vpack.c.b16 %v1166, %v1165
      %v1190 = vpack.c.b16 %v1168, %v1167
      %v1191 = vpack.c.b16 %v1170, %v1169
      %v1192 = vpack.c.b16 %v1172, %v1171
      %v1193 = vpack.c.b16 %v1174, %v1173
      %v1194 = vpack.c.b16 %v1176, %v1175
      %v1195 = vpack.c.b16 %v1178, %v1177
      %v1196 = vpack.c.b16 %v1180, %v1179
      %v1198 = vsel %vm339, %v1181, 0
      %v1201 = vsel %vm339, %v1182, 0
      %v1204 = vsel %vm339, %v1183, 0
      %v1207 = vsel %vm339, %v1184, 0
      %v1210 = vsel %vm339, %v1185, 0
      %v1213 = vsel %vm339, %v1186, 0
      %v1216 = vsel %vm339, %v1187, 0
      %v1219 = vsel %vm339, %v1188, 0
      %v1222 = vsel %vm339, %v1189, 0
      %v1225 = vsel %vm339, %v1190, 0
      %v1228 = vsel %vm339, %v1191, 0
      %v1231 = vsel %vm339, %v1192, 0
      %v1234 = vsel %vm339, %v1193, 0
      %v1237 = vsel %vm339, %v1194, 0
      %v1240 = vsel %vm339, %v1195, 0
      %v1243 = vsel %vm339, %v1196, 0
      %v1246 = vsel %vm388, %v1148, 0
      %1248 = vmatprep.subr.bf16.mxu0 0
      %1249 = vmatpush1.bf16.msra.mxu0 0
      %1250 = vmatprep.subr.bf16.mxu0 0
      %1251 = vmatpush1.bf16.msra.mxu0 0
      %1252 = vmatprep.subr.bf16.mxu0 0
      %1253 = vmatpush1.bf16.msra.mxu0 0
      %1254 = vmatprep.subr.bf16.mxu0 0
      %1255 = vmatpush1.bf16.msra.mxu0 0
      %1256 = vmatprep.subr.bf16.mxu0 0
      %1257 = vmatpush1.bf16.msra.mxu0 0
      %1258 = vmatprep.subr.bf16.mxu0 0
      %1259 = vmatpush1.bf16.msra.mxu0 0
      %1260 = vmatprep.subr.bf16.mxu0 0
      %1261 = vmatpush1.bf16.msra.mxu0 0
      %1262 = vmatprep.subr.bf16.mxu0 0
      %1263 = vmatpush1.bf16.msra.mxu0 %v1246
      %1264 = vmatprep.subr.bf16.mxu0 0
      %1265 = vmatpush2.bf16.msra.mxu0 0
      %1266 = vmatprep.subr.bf16.mxu0 0
      %1267 = vmatpush2.bf16.msra.mxu0 0
      %1268 = vmatprep.subr.bf16.mxu0 0
      %1269 = vmatpush2.bf16.msra.mxu0 0
      %1270 = vmatprep.subr.bf16.mxu0 0
      %1271 = vmatpush2.bf16.msra.mxu0 0
      %1272 = vmatprep.subr.bf16.mxu0 0
      %1273 = vmatpush2.bf16.msra.mxu0 0
      %1274 = vmatprep.subr.bf16.mxu0 0
      %1275 = vmatpush2.bf16.msra.mxu0 0
      %1276 = vmatprep.subr.bf16.mxu0 0
      %1277 = vmatpush2.bf16.msra.mxu0 0
      %1278 = vmatprep.subr.bf16.mxu0 0
      %1279 = vmatpush2.bf16.msra.mxu0 0
      %1280 = vmatprep.mubr.bf16.mxu0 0
      %1281 = vmatmul.mubr.bf16.gmra.mxu0 %v1198
      %v1282 = vpop.f32.mrf.mxu0
      %v1283 = vadd.f32 0.0, %v1282
      %v1284 = vpop.f32.mrf.mxu0
      %v1285 = vpop.f32.mrf.mxu0
      %v1286 = vadd.f32 0.0, %v1285
      %v1287 = vpop.f32.mrf.mxu0
      %1288 = vmatprep.mubr.bf16.mxu0 0
      %1289 = vmatmul.mubr.bf16.gmra.mxu0 %v1201
      %v1290 = vpop.f32.mrf.mxu0
      %v1291 = vadd.f32 0.0, %v1290
      %v1292 = vpop.f32.mrf.mxu0
      %v1293 = vpop.f32.mrf.mxu0
      %v1294 = vadd.f32 0.0, %v1293
      %v1295 = vpop.f32.mrf.mxu0
      %1296 = vmatprep.mubr.bf16.mxu0 0
      %1297 = vmatmul.mubr.bf16.gmra.mxu0 %v1204
      %v1298 = vpop.f32.mrf.mxu0
      %v1299 = vadd.f32 0.0, %v1298
      %v1300 = vpop.f32.mrf.mxu0
      %v1301 = vpop.f32.mrf.mxu0
      %v1302 = vadd.f32 0.0, %v1301
      %v1303 = vpop.f32.mrf.mxu0
      %1304 = vmatprep.mubr.bf16.mxu0 0
      %1305 = vmatmul.mubr.bf16.gmra.mxu0 %v1207
      %v1306 = vpop.f32.mrf.mxu0
      %v1307 = vadd.f32 0.0, %v1306
      %v1308 = vpop.f32.mrf.mxu0
      %v1309 = vpop.f32.mrf.mxu0
      %v1310 = vadd.f32 0.0, %v1309
      %v1311 = vpop.f32.mrf.mxu0
      %1312 = vmatprep.mubr.bf16.mxu0 0
      %1313 = vmatmul.mubr.bf16.gmra.mxu0 %v1210
      %v1314 = vpop.f32.mrf.mxu0
      %v1315 = vadd.f32 0.0, %v1314
      %v1316 = vpop.f32.mrf.mxu0
      %v1317 = vpop.f32.mrf.mxu0
      %v1318 = vadd.f32 0.0, %v1317
      %v1319 = vpop.f32.mrf.mxu0
      %1320 = vmatprep.mubr.bf16.mxu0 0
      %1321 = vmatmul.mubr.bf16.gmra.mxu0 %v1213
      %v1322 = vpop.f32.mrf.mxu0
      %v1323 = vadd.f32 0.0, %v1322
      %v1324 = vpop.f32.mrf.mxu0
      %v1325 = vpop.f32.mrf.mxu0
      %v1326 = vadd.f32 0.0, %v1325
      %v1327 = vpop.f32.mrf.mxu0
      %1328 = vmatprep.mubr.bf16.mxu0 0
      %1329 = vmatmul.mubr.bf16.gmra.mxu0 %v1216
      %v1330 = vpop.f32.mrf.mxu0
      %v1331 = vadd.f32 0.0, %v1330
      %v1332 = vpop.f32.mrf.mxu0
      %v1333 = vpop.f32.mrf.mxu0
      %v1334 = vadd.f32 0.0, %v1333
      %v1335 = vpop.f32.mrf.mxu0
      %1336 = vmatprep.mubr.bf16.mxu0 0
      %1337 = vmatmul.mubr.bf16.gmra.mxu0 %v1219
      %v1338 = vpop.f32.mrf.mxu0
      %v1339 = vadd.f32 0.0, %v1338
      %v1340 = vpop.f32.mrf.mxu0
      %v1341 = vpop.f32.mrf.mxu0
      %v1342 = vadd.f32 0.0, %v1341
      %v1343 = vpop.f32.mrf.mxu0
      %1344 = vmatprep.mubr.bf16.mxu0 0
      %1345 = vmatmul.mubr.bf16.gmra.mxu0 %v1222
      %v1346 = vpop.f32.mrf.mxu0
      %v1347 = vadd.f32 0.0, %v1346
      %v1348 = vpop.f32.mrf.mxu0
      %v1349 = vpop.f32.mrf.mxu0
      %v1350 = vadd.f32 0.0, %v1349
      %v1351 = vpop.f32.mrf.mxu0
      %1352 = vmatprep.mubr.bf16.mxu0 0
      %1353 = vmatmul.mubr.bf16.gmra.mxu0 %v1225
      %v1354 = vpop.f32.mrf.mxu0
      %v1355 = vadd.f32 0.0, %v1354
      %v1356 = vpop.f32.mrf.mxu0
      %v1357 = vpop.f32.mrf.mxu0
      %v1358 = vadd.f32 0.0, %v1357
      %v1359 = vpop.f32.mrf.mxu0
      %1360 = vmatprep.mubr.bf16.mxu0 0
      %1361 = vmatmul.mubr.bf16.gmra.mxu0 %v1228
      %v1362 = vpop.f32.mrf.mxu0
      %v1363 = vadd.f32 0.0, %v1362
      %v1364 = vpop.f32.mrf.mxu0
      %v1365 = vpop.f32.mrf.mxu0
      %v1366 = vadd.f32 0.0, %v1365
      %v1367 = vpop.f32.mrf.mxu0
      %1368 = vmatprep.mubr.bf16.mxu0 0
      %1369 = vmatmul.mubr.bf16.gmra.mxu0 %v1231
      %v1370 = vpop.f32.mrf.mxu0
      %v1371 = vadd.f32 0.0, %v1370
      %v1372 = vpop.f32.mrf.mxu0
      %v1373 = vpop.f32.mrf.mxu0
      %v1374 = vadd.f32 0.0, %v1373
      %v1375 = vpop.f32.mrf.mxu0
      %1376 = vmatprep.mubr.bf16.mxu0 0
      %1377 = vmatmul.mubr.bf16.gmra.mxu0 %v1234
      %v1378 = vpop.f32.mrf.mxu0
      %v1379 = vadd.f32 0.0, %v1378
      %v1380 = vpop.f32.mrf.mxu0
      %v1381 = vpop.f32.mrf.mxu0
      %v1382 = vadd.f32 0.0, %v1381
      %v1383 = vpop.f32.mrf.mxu0
      %1384 = vmatprep.mubr.bf16.mxu0 0
      %1385 = vmatmul.mubr.bf16.gmra.mxu0 %v1237
      %v1386 = vpop.f32.mrf.mxu0
      %v1387 = vadd.f32 0.0, %v1386
      %v1388 = vpop.f32.mrf.mxu0
      %v1389 = vpop.f32.mrf.mxu0
      %v1390 = vadd.f32 0.0, %v1389
      %v1391 = vpop.f32.mrf.mxu0
      %1392 = vmatprep.mubr.bf16.mxu0 0
      %1393 = vmatmul.mubr.bf16.gmra.mxu0 %v1240
      %v1394 = vpop.f32.mrf.mxu0
      %v1395 = vadd.f32 0.0, %v1394
      %v1396 = vpop.f32.mrf.mxu0
      %v1397 = vpop.f32.mrf.mxu0
      %v1398 = vadd.f32 0.0, %v1397
      %v1399 = vpop.f32.mrf.mxu0
      %1400 = vmatprep.mubr.bf16.mxu0 0
      %1401 = vmatmul.mubr.bf16.gmra.mxu0 %v1243
      %v1402 = vpop.f32.mrf.mxu0
      %v1403 = vadd.f32 0.0, %v1402
      %v1404 = vpop.f32.mrf.mxu0
      %v1405 = vpop.f32.mrf.mxu0
      %v1406 = vadd.f32 0.0, %v1405
      %v1407 = vpop.f32.mrf.mxu0
      %1408 = vdwg.mxu0
      %v1425 = vunpack.c.l.b16 %v919
      %v1426 = vunpack.c.l.b16 %v920
      %v1427 = vunpack.c.l.b16 %v921
      %v1428 = vunpack.c.l.b16 %v922
      %v1429 = vunpack.c.l.b16 %v923
      %v1430 = vunpack.c.l.b16 %v924
      %v1431 = vunpack.c.l.b16 %v925
      %v1432 = vunpack.c.l.b16 %v926
      %v1433 = vunpack.c.l.b16 %v927
      %v1434 = vunpack.c.l.b16 %v928
      %v1435 = vunpack.c.l.b16 %v929
      %v1436 = vunpack.c.l.b16 %v930
      %v1437 = vunpack.c.l.b16 %v931
      %v1438 = vunpack.c.l.b16 %v932
      %v1439 = vunpack.c.l.b16 %v933
      %v1440 = vunpack.c.l.b16 %v934
      %v1441 = vunpack.c.l.b16 %v935
      %v1442 = vunpack.c.l.b16 %v936
      %v1443 = vunpack.c.l.b16 %v937
      %v1444 = vunpack.c.l.b16 %v938
      %v1445 = vunpack.c.l.b16 %v939
      %v1446 = vunpack.c.l.b16 %v940
      %v1447 = vunpack.c.l.b16 %v941
      %v1448 = vunpack.c.l.b16 %v942
      %v1449 = vunpack.c.l.b16 %v943
      %v1450 = vunpack.c.l.b16 %v944
      %v1451 = vunpack.c.l.b16 %v945
      %v1452 = vunpack.c.l.b16 %v946
      %v1453 = vunpack.c.l.b16 %v947
      %v1454 = vunpack.c.l.b16 %v948
      %v1455 = vunpack.c.l.b16 %v949
      %v1456 = vunpack.c.l.b16 %v950
      %v1457 = vpack.c.b16 %v1426, %v1425
      %v1458 = vpack.c.b16 %v1428, %v1427
      %v1459 = vpack.c.b16 %v1430, %v1429
      %v1460 = vpack.c.b16 %v1432, %v1431
      %v1461 = vpack.c.b16 %v1434, %v1433
      %v1462 = vpack.c.b16 %v1436, %v1435
      %v1463 = vpack.c.b16 %v1438, %v1437
      %v1464 = vpack.c.b16 %v1440, %v1439
      %v1465 = vpack.c.b16 %v1442, %v1441
      %v1466 = vpack.c.b16 %v1444, %v1443
      %v1467 = vpack.c.b16 %v1446, %v1445
      %v1468 = vpack.c.b16 %v1448, %v1447
      %v1469 = vpack.c.b16 %v1450, %v1449
      %v1470 = vpack.c.b16 %v1452, %v1451
      %v1471 = vpack.c.b16 %v1454, %v1453
      %v1472 = vpack.c.b16 %v1456, %v1455
      %v1474 = vsel %vm339, %v1457, 0
      %v1477 = vsel %vm339, %v1458, 0
      %v1480 = vsel %vm339, %v1459, 0
      %v1483 = vsel %vm339, %v1460, 0
      %v1486 = vsel %vm339, %v1461, 0
      %v1489 = vsel %vm339, %v1462, 0
      %v1492 = vsel %vm339, %v1463, 0
      %v1495 = vsel %vm339, %v1464, 0
      %v1498 = vsel %vm339, %v1465, 0
      %v1501 = vsel %vm339, %v1466, 0
      %v1504 = vsel %vm339, %v1467, 0
      %v1507 = vsel %vm339, %v1468, 0
      %v1510 = vsel %vm339, %v1469, 0
      %v1513 = vsel %vm339, %v1470, 0
      %v1516 = vsel %vm339, %v1471, 0
      %v1519 = vsel %vm339, %v1472, 0
      %v1522 = vsel %vm388, %v951, 0
      %1524 = vmatprep.subr.bf16.mxu0 0
      %1525 = vmatpush1.bf16.msra.mxu0 0
      %1526 = vmatprep.subr.bf16.mxu0 0
      %1527 = vmatpush1.bf16.msra.mxu0 0
      %1528 = vmatprep.subr.bf16.mxu0 0
      %1529 = vmatpush1.bf16.msra.mxu0 0
      %1530 = vmatprep.subr.bf16.mxu0 0
      %1531 = vmatpush1.bf16.msra.mxu0 0
      %1532 = vmatprep.subr.bf16.mxu0 0
      %1533 = vmatpush1.bf16.msra.mxu0 0
      %1534 = vmatprep.subr.bf16.mxu0 0
      %1535 = vmatpush1.bf16.msra.mxu0 0
      %1536 = vmatprep.subr.bf16.mxu0 0
      %1537 = vmatpush1.bf16.msra.mxu0 0
      %1538 = vmatprep.subr.bf16.mxu0 0
      %1539 = vmatpush1.bf16.msra.mxu0 %v1522
      %1540 = vmatprep.subr.bf16.mxu0 0
      %1541 = vmatpush2.bf16.msra.mxu0 0
      %1542 = vmatprep.subr.bf16.mxu0 0
      %1543 = vmatpush2.bf16.msra.mxu0 0
      %1544 = vmatprep.subr.bf16.mxu0 0
      %1545 = vmatpush2.bf16.msra.mxu0 0
      %1546 = vmatprep.subr.bf16.mxu0 0
      %1547 = vmatpush2.bf16.msra.mxu0 0
      %1548 = vmatprep.subr.bf16.mxu0 0
      %1549 = vmatpush2.bf16.msra.mxu0 0
      %1550 = vmatprep.subr.bf16.mxu0 0
      %1551 = vmatpush2.bf16.msra.mxu0 0
      %1552 = vmatprep.subr.bf16.mxu0 0
      %1553 = vmatpush2.bf16.msra.mxu0 0
      %1554 = vmatprep.subr.bf16.mxu0 0
      %1555 = vmatpush2.bf16.msra.mxu0 0
      %1556 = vmatprep.mubr.bf16.mxu0 0
      %1557 = vmatmul.mubr.bf16.gmra.mxu0 %v1474
      %v1558 = vpop.f32.mrf.mxu0
      %v1559 = vadd.f32 %v1283, %v1558
      %v1560 = vpop.f32.mrf.mxu0
      %v1561 = vpop.f32.mrf.mxu0
      %v1562 = vadd.f32 %v1286, %v1561
      %v1563 = vpop.f32.mrf.mxu0
      %1564 = vmatprep.mubr.bf16.mxu0 0
      %1565 = vmatmul.mubr.bf16.gmra.mxu0 %v1477
      %v1566 = vpop.f32.mrf.mxu0
      %v1567 = vadd.f32 %v1291, %v1566
      %v1568 = vpop.f32.mrf.mxu0
      %v1569 = vpop.f32.mrf.mxu0
      %v1570 = vadd.f32 %v1294, %v1569
      %v1571 = vpop.f32.mrf.mxu0
      %1572 = vmatprep.mubr.bf16.mxu0 0
      %1573 = vmatmul.mubr.bf16.gmra.mxu0 %v1480
      %v1574 = vpop.f32.mrf.mxu0
      %v1575 = vadd.f32 %v1299, %v1574
      %v1576 = vpop.f32.mrf.mxu0
      %v1577 = vpop.f32.mrf.mxu0
      %v1578 = vadd.f32 %v1302, %v1577
      %v1579 = vpop.f32.mrf.mxu0
      %1580 = vmatprep.mubr.bf16.mxu0 0
      %1581 = vmatmul.mubr.bf16.gmra.mxu0 %v1483
      %v1582 = vpop.f32.mrf.mxu0
      %v1583 = vadd.f32 %v1307, %v1582
      %v1584 = vpop.f32.mrf.mxu0
      %v1585 = vpop.f32.mrf.mxu0
      %v1586 = vadd.f32 %v1310, %v1585
      %v1587 = vpop.f32.mrf.mxu0
      %1588 = vmatprep.mubr.bf16.mxu0 0
      %1589 = vmatmul.mubr.bf16.gmra.mxu0 %v1486
      %v1590 = vpop.f32.mrf.mxu0
      %v1591 = vadd.f32 %v1315, %v1590
      %v1592 = vpop.f32.mrf.mxu0
      %v1593 = vpop.f32.mrf.mxu0
      %v1594 = vadd.f32 %v1318, %v1593
      %v1595 = vpop.f32.mrf.mxu0
      %1596 = vmatprep.mubr.bf16.mxu0 0
      %1597 = vmatmul.mubr.bf16.gmra.mxu0 %v1489
      %v1598 = vpop.f32.mrf.mxu0
      %v1599 = vadd.f32 %v1323, %v1598
      %v1600 = vpop.f32.mrf.mxu0
      %v1601 = vpop.f32.mrf.mxu0
      %v1602 = vadd.f32 %v1326, %v1601
      %v1603 = vpop.f32.mrf.mxu0
      %1604 = vmatprep.mubr.bf16.mxu0 0
      %1605 = vmatmul.mubr.bf16.gmra.mxu0 %v1492
      %v1606 = vpop.f32.mrf.mxu0
      %v1607 = vadd.f32 %v1331, %v1606
      %v1608 = vpop.f32.mrf.mxu0
      %v1609 = vpop.f32.mrf.mxu0
      %v1610 = vadd.f32 %v1334, %v1609
      %v1611 = vpop.f32.mrf.mxu0
      %1612 = vmatprep.mubr.bf16.mxu0 0
      %1613 = vmatmul.mubr.bf16.gmra.mxu0 %v1495
      %v1614 = vpop.f32.mrf.mxu0
      %v1615 = vadd.f32 %v1339, %v1614
      %v1616 = vpop.f32.mrf.mxu0
      %v1617 = vpop.f32.mrf.mxu0
      %v1618 = vadd.f32 %v1342, %v1617
      %v1619 = vpop.f32.mrf.mxu0
      %1620 = vmatprep.mubr.bf16.mxu0 0
      %1621 = vmatmul.mubr.bf16.gmra.mxu0 %v1498
      %v1622 = vpop.f32.mrf.mxu0
      %v1623 = vadd.f32 %v1347, %v1622
      %v1624 = vpop.f32.mrf.mxu0
      %v1625 = vpop.f32.mrf.mxu0
      %v1626 = vadd.f32 %v1350, %v1625
      %v1627 = vpop.f32.mrf.mxu0
      %1628 = vmatprep.mubr.bf16.mxu0 0
      %1629 = vmatmul.mubr.bf16.gmra.mxu0 %v1501
      %v1630 = vpop.f32.mrf.mxu0
      %v1631 = vadd.f32 %v1355, %v1630
      %v1632 = vpop.f32.mrf.mxu0
      %v1633 = vpop.f32.mrf.mxu0
      %v1634 = vadd.f32 %v1358, %v1633
      %v1635 = vpop.f32.mrf.mxu0
      %1636 = vmatprep.mubr.bf16.mxu0 0
      %1637 = vmatmul.mubr.bf16.gmra.mxu0 %v1504
      %v1638 = vpop.f32.mrf.mxu0
      %v1639 = vadd.f32 %v1363, %v1638
      %v1640 = vpop.f32.mrf.mxu0
      %v1641 = vpop.f32.mrf.mxu0
      %v1642 = vadd.f32 %v1366, %v1641
      %v1643 = vpop.f32.mrf.mxu0
      %1644 = vmatprep.mubr.bf16.mxu0 0
      %1645 = vmatmul.mubr.bf16.gmra.mxu0 %v1507
      %v1646 = vpop.f32.mrf.mxu0
      %v1647 = vadd.f32 %v1371, %v1646
      %v1648 = vpop.f32.mrf.mxu0
      %v1649 = vpop.f32.mrf.mxu0
      %v1650 = vadd.f32 %v1374, %v1649
      %v1651 = vpop.f32.mrf.mxu0
      %1652 = vmatprep.mubr.bf16.mxu0 0
      %1653 = vmatmul.mubr.bf16.gmra.mxu0 %v1510
      %v1654 = vpop.f32.mrf.mxu0
      %v1655 = vadd.f32 %v1379, %v1654
      %v1656 = vpop.f32.mrf.mxu0
      %v1657 = vpop.f32.mrf.mxu0
      %v1658 = vadd.f32 %v1382, %v1657
      %v1659 = vpop.f32.mrf.mxu0
      %1660 = vmatprep.mubr.bf16.mxu0 0
      %1661 = vmatmul.mubr.bf16.gmra.mxu0 %v1513
      %v1662 = vpop.f32.mrf.mxu0
      %v1663 = vadd.f32 %v1387, %v1662
      %v1664 = vpop.f32.mrf.mxu0
      %v1665 = vpop.f32.mrf.mxu0
      %v1666 = vadd.f32 %v1390, %v1665
      %v1667 = vpop.f32.mrf.mxu0
      %1668 = vmatprep.mubr.bf16.mxu0 0
      %1669 = vmatmul.mubr.bf16.gmra.mxu0 %v1516
      %v1670 = vpop.f32.mrf.mxu0
      %v1671 = vadd.f32 %v1395, %v1670
      %v1672 = vpop.f32.mrf.mxu0
      %v1673 = vpop.f32.mrf.mxu0
      %v1674 = vadd.f32 %v1398, %v1673
      %v1675 = vpop.f32.mrf.mxu0
      %1676 = vmatprep.mubr.bf16.mxu0 0
      %1677 = vmatmul.mubr.bf16.gmra.mxu0 %v1519
      %v1678 = vpop.f32.mrf.mxu0
      %v1679 = vadd.f32 %v1403, %v1678
      %v1680 = vpop.f32.mrf.mxu0
      %v1681 = vpop.f32.mrf.mxu0
      %v1682 = vadd.f32 %v1406, %v1681
      %v1683 = vpop.f32.mrf.mxu0
      %1684 = vdwg.mxu0
      %v1685 = vld [vmem:[#allocation2] sm:$0xc]
      %v1686 = vld [vmem:[#allocation2 + $0x8] sm:$0x3]
      %v1687 = vld [vmem:[#allocation2 + $0xc] sm:$0xc]
      %v1688 = vld [vmem:[#allocation2 + $0x14] sm:$0x3]
      %v1689 = vld [vmem:[#allocation2 + $0x18] sm:$0xc]
      %v1690 = vld [vmem:[#allocation2 + $0x20] sm:$0x3]
      %v1691 = vld [vmem:[#allocation2 + $0x24] sm:$0xc]
      %v1692 = vld [vmem:[#allocation2 + $0x2c] sm:$0x3]
      %v1693 = vld [vmem:[#allocation2 + $0x30] sm:$0xc]
      %v1694 = vld [vmem:[#allocation2 + $0x38] sm:$0x3]
      %v1695 = vld [vmem:[#allocation2 + $0x3c] sm:$0xc]
      %v1696 = vld [vmem:[#allocation2 + $0x44] sm:$0x3]
      %v1697 = vld [vmem:[#allocation2 + $0x48] sm:$0xc]
      %v1698 = vld [vmem:[#allocation2 + $0x50] sm:$0x3]
      %v1699 = vld [vmem:[#allocation2 + $0x54] sm:$0xc]
      %v1700 = vld [vmem:[#allocation2 + $0x5c] sm:$0x3]
      %v1701 = vld [vmem:[#allocation2 + $0x60] sm:$0xc]
      %v1702 = vld [vmem:[#allocation2 + $0x68] sm:$0x3]
      %v1703 = vld [vmem:[#allocation2 + $0x6c] sm:$0xc]
      %v1704 = vld [vmem:[#allocation2 + $0x74] sm:$0x3]
      %v1705 = vld [vmem:[#allocation2 + $0x78] sm:$0xc]
      %v1706 = vld [vmem:[#allocation2 + $0x80] sm:$0x3]
      %v1707 = vld [vmem:[#allocation2 + $0x84] sm:$0xc]
      %v1708 = vld [vmem:[#allocation2 + $0x8c] sm:$0x3]
      %v1709 = vld [vmem:[#allocation2 + $0x90] sm:$0xc]
      %v1710 = vld [vmem:[#allocation2 + $0x98] sm:$0x3]
      %v1711 = vld [vmem:[#allocation2 + $0x9c] sm:$0xc]
      %v1712 = vld [vmem:[#allocation2 + $0xa4] sm:$0x3]
      %v1713 = vld [vmem:[#allocation2 + $0xa8] sm:$0xc]
      %v1714 = vld [vmem:[#allocation2 + $0xb0] sm:$0x3]
      %v1715 = vld [vmem:[#allocation2 + $0xb4] sm:$0xc]
      %v1716 = vld [vmem:[#allocation2 + $0xbc] sm:$0x3]
      %vm1749 = vcmask 1041408
      %vm1750 = vcmask 1045508
      %vm1751 = vmor %vm1749, %vm1750
      %v1752 = vrot.slane %v1685, 6
      %v1753 = vrot.slane %v1752, 4
      %v1754 = vrot.slane %v920, 6
      %v1755 = vsel %vm1751, %v1753, %v1754
      %v1756 = vrot.slane %v1754, 4
      %v1757 = vrot.slane %v1686, 6
      %v1758 = vsel %vm1751, %v1756, %v1757
      %v1759 = vrot.slane %v1687, 6
      %v1760 = vrot.slane %v1759, 4
      %v1761 = vrot.slane %v922, 6
      %v1762 = vsel %vm1751, %v1760, %v1761
      %v1763 = vrot.slane %v1761, 4
      %v1764 = vrot.slane %v1688, 6
      %v1765 = vsel %vm1751, %v1763, %v1764
      %v1766 = vrot.slane %v1689, 6
      %v1767 = vrot.slane %v1766, 4
      %v1768 = vrot.slane %v924, 6
      %v1769 = vsel %vm1751, %v1767, %v1768
      %v1770 = vrot.slane %v1768, 4
      %v1771 = vrot.slane %v1690, 6
      %v1772 = vsel %vm1751, %v1770, %v1771
      %v1773 = vrot.slane %v1691, 6
      %v1774 = vrot.slane %v1773, 4
      %v1775 = vrot.slane %v926, 6
      %v1776 = vsel %vm1751, %v1774, %v1775
      %v1777 = vrot.slane %v1775, 4
      %v1778 = vrot.slane %v1692, 6
      %v1779 = vsel %vm1751, %v1777, %v1778
      %v1780 = vrot.slane %v1693, 6
      %v1781 = vrot.slane %v1780, 4
      %v1782 = vrot.slane %v928, 6
      %v1783 = vsel %vm1751, %v1781, %v1782
      %v1784 = vrot.slane %v1782, 4
      %v1785 = vrot.slane %v1694, 6
      %v1786 = vsel %vm1751, %v1784, %v1785
      %v1787 = vrot.slane %v1695, 6
      %v1788 = vrot.slane %v1787, 4
      %v1789 = vrot.slane %v930, 6
      %v1790 = vsel %vm1751, %v1788, %v1789
      %v1791 = vrot.slane %v1789, 4
      %v1792 = vrot.slane %v1696, 6
      %v1793 = vsel %vm1751, %v1791, %v1792
      %v1794 = vrot.slane %v1697, 6
      %v1795 = vrot.slane %v1794, 4
      %v1796 = vrot.slane %v932, 6
      %v1797 = vsel %vm1751, %v1795, %v1796
      %v1798 = vrot.slane %v1796, 4
      %v1799 = vrot.slane %v1698, 6
      %v1800 = vsel %vm1751, %v1798, %v1799
      %v1801 = vrot.slane %v1699, 6
      %v1802 = vrot.slane %v1801, 4
      %v1803 = vrot.slane %v934, 6
      %v1804 = vsel %vm1751, %v1802, %v1803
      %v1805 = vrot.slane %v1803, 4
      %v1806 = vrot.slane %v1700, 6
      %v1807 = vsel %vm1751, %v1805, %v1806
      %v1808 = vrot.slane %v1701, 6
      %v1809 = vrot.slane %v1808, 4
      %v1810 = vrot.slane %v936, 6
      %v1811 = vsel %vm1751, %v1809, %v1810
      %v1812 = vrot.slane %v1810, 4
      %v1813 = vrot.slane %v1702, 6
      %v1814 = vsel %vm1751, %v1812, %v1813
      %v1815 = vrot.slane %v1703, 6
      %v1816 = vrot.slane %v1815, 4
      %v1817 = vrot.slane %v938, 6
      %v1818 = vsel %vm1751, %v1816, %v1817
      %v1819 = vrot.slane %v1817, 4
      %v1820 = vrot.slane %v1704, 6
      %v1821 = vsel %vm1751, %v1819, %v1820
      %v1822 = vrot.slane %v1705, 6
      %v1823 = vrot.slane %v1822, 4
      %v1824 = vrot.slane %v940, 6
      %v1825 = vsel %vm1751, %v1823, %v1824
      %v1826 = vrot.slane %v1824, 4
      %v1827 = vrot.slane %v1706, 6
      %v1828 = vsel %vm1751, %v1826, %v1827
      %v1829 = vrot.slane %v1707, 6
      %v1830 = vrot.slane %v1829, 4
      %v1831 = vrot.slane %v942, 6
      %v1832 = vsel %vm1751, %v1830, %v1831
      %v1833 = vrot.slane %v1831, 4
      %v1834 = vrot.slane %v1708, 6
      %v1835 = vsel %vm1751, %v1833, %v1834
      %v1836 = vrot.slane %v1709, 6
      %v1837 = vrot.slane %v1836, 4
      %v1838 = vrot.slane %v944, 6
      %v1839 = vsel %vm1751, %v1837, %v1838
      %v1840 = vrot.slane %v1838, 4
      %v1841 = vrot.slane %v1710, 6
      %v1842 = vsel %vm1751, %v1840, %v1841
      %v1843 = vrot.slane %v1711, 6
      %v1844 = vrot.slane %v1843, 4
      %v1845 = vrot.slane %v946, 6
      %v1846 = vsel %vm1751, %v1844, %v1845
      %v1847 = vrot.slane %v1845, 4
      %v1848 = vrot.slane %v1712, 6
      %v1849 = vsel %vm1751, %v1847, %v1848
      %v1850 = vrot.slane %v1713, 6
      %v1851 = vrot.slane %v1850, 4
      %v1852 = vrot.slane %v948, 6
      %v1853 = vsel %vm1751, %v1851, %v1852
      %v1854 = vrot.slane %v1852, 4
      %v1855 = vrot.slane %v1714, 6
      %v1856 = vsel %vm1751, %v1854, %v1855
      %v1857 = vrot.slane %v1715, 6
      %v1858 = vrot.slane %v1857, 4
      %v1859 = vrot.slane %v950, 6
      %v1860 = vsel %vm1751, %v1858, %v1859
      %v1861 = vrot.slane %v1859, 4
      %v1862 = vrot.slane %v1716, 6
      %v1863 = vsel %vm1751, %v1861, %v1862
      %s1864 = scalar_lea.vmem %s2, 8
      %v1865 = vld [vmem:[%s1864] sm:$0xf]
      %v1866 = vunpack.c.l.b16 %v1755
      %v1867 = vunpack.c.l.b16 %v1758
      %v1868 = vunpack.c.l.b16 %v1762
      %v1869 = vunpack.c.l.b16 %v1765
      %v1870 = vunpack.c.l.b16 %v1769
      %v1871 = vunpack.c.l.b16 %v1772
      %v1872 = vunpack.c.l.b16 %v1776
      %v1873 = vunpack.c.l.b16 %v1779
      %v1874 = vunpack.c.l.b16 %v1783
      %v1875 = vunpack.c.l.b16 %v1786
      %v1876 = vunpack.c.l.b16 %v1790
      %v1877 = vunpack.c.l.b16 %v1793
      %v1878 = vunpack.c.l.b16 %v1797
      %v1879 = vunpack.c.l.b16 %v1800
      %v1880 = vunpack.c.l.b16 %v1804
      %v1881 = vunpack.c.l.b16 %v1807
      %v1882 = vunpack.c.l.b16 %v1811
      %v1883 = vunpack.c.l.b16 %v1814
      %v1884 = vunpack.c.l.b16 %v1818
      %v1885 = vunpack.c.l.b16 %v1821
      %v1886 = vunpack.c.l.b16 %v1825
      %v1887 = vunpack.c.l.b16 %v1828
      %v1888 = vunpack.c.l.b16 %v1832
      %v1889 = vunpack.c.l.b16 %v1835
      %v1890 = vunpack.c.l.b16 %v1839
      %v1891 = vunpack.c.l.b16 %v1842
      %v1892 = vunpack.c.l.b16 %v1846
      %v1893 = vunpack.c.l.b16 %v1849
      %v1894 = vunpack.c.l.b16 %v1853
      %v1895 = vunpack.c.l.b16 %v1856
      %v1896 = vunpack.c.l.b16 %v1860
      %v1897 = vunpack.c.l.b16 %v1863
      %v1898 = vpack.c.b16 %v1867, %v1866
      %v1899 = vpack.c.b16 %v1869, %v1868
      %v1900 = vpack.c.b16 %v1871, %v1870
      %v1901 = vpack.c.b16 %v1873, %v1872
      %v1902 = vpack.c.b16 %v1875, %v1874
      %v1903 = vpack.c.b16 %v1877, %v1876
      %v1904 = vpack.c.b16 %v1879, %v1878
      %v1905 = vpack.c.b16 %v1881, %v1880
      %v1906 = vpack.c.b16 %v1883, %v1882
      %v1907 = vpack.c.b16 %v1885, %v1884
      %v1908 = vpack.c.b16 %v1887, %v1886
      %v1909 = vpack.c.b16 %v1889, %v1888
      %v1910 = vpack.c.b16 %v1891, %v1890
      %v1911 = vpack.c.b16 %v1893, %v1892
      %v1912 = vpack.c.b16 %v1895, %v1894
      %v1913 = vpack.c.b16 %v1897, %v1896
      %v1915 = vsel %vm339, %v1898, 0
      %v1918 = vsel %vm339, %v1899, 0
      %v1921 = vsel %vm339, %v1900, 0
      %v1924 = vsel %vm339, %v1901, 0
      %v1927 = vsel %vm339, %v1902, 0
      %v1930 = vsel %vm339, %v1903, 0
      %v1933 = vsel %vm339, %v1904, 0
      %v1936 = vsel %vm339, %v1905, 0
      %v1939 = vsel %vm339, %v1906, 0
      %v1942 = vsel %vm339, %v1907, 0
      %v1945 = vsel %vm339, %v1908, 0
      %v1948 = vsel %vm339, %v1909, 0
      %v1951 = vsel %vm339, %v1910, 0
      %v1954 = vsel %vm339, %v1911, 0
      %v1957 = vsel %vm339, %v1912, 0
      %v1960 = vsel %vm339, %v1913, 0
      %v1963 = vsel %vm388, %v1865, 0
      %1965 = vmatprep.subr.bf16.mxu0 0
      %1966 = vmatpush1.bf16.msra.mxu0 0
      %1967 = vmatprep.subr.bf16.mxu0 0
      %1968 = vmatpush1.bf16.msra.mxu0 0
      %1969 = vmatprep.subr.bf16.mxu0 0
      %1970 = vmatpush1.bf16.msra.mxu0 0
      %1971 = vmatprep.subr.bf16.mxu0 0
      %1972 = vmatpush1.bf16.msra.mxu0 0
      %1973 = vmatprep.subr.bf16.mxu0 0
      %1974 = vmatpush1.bf16.msra.mxu0 0
      %1975 = vmatprep.subr.bf16.mxu0 0
      %1976 = vmatpush1.bf16.msra.mxu0 0
      %1977 = vmatprep.subr.bf16.mxu0 0
      %1978 = vmatpush1.bf16.msra.mxu0 0
      %1979 = vmatprep.subr.bf16.mxu0 0
      %1980 = vmatpush1.bf16.msra.mxu0 %v1963
      %1981 = vmatprep.subr.bf16.mxu0 0
      %1982 = vmatpush2.bf16.msra.mxu0 0
      %1983 = vmatprep.subr.bf16.mxu0 0
      %1984 = vmatpush2.bf16.msra.mxu0 0
      %1985 = vmatprep.subr.bf16.mxu0 0
      %1986 = vmatpush2.bf16.msra.mxu0 0
      %1987 = vmatprep.subr.bf16.mxu0 0
      %1988 = vmatpush2.bf16.msra.mxu0 0
      %1989 = vmatprep.subr.bf16.mxu0 0
      %1990 = vmatpush2.bf16.msra.mxu0 0
      %1991 = vmatprep.subr.bf16.mxu0 0
      %1992 = vmatpush2.bf16.msra.mxu0 0
      %1993 = vmatprep.subr.bf16.mxu0 0
      %1994 = vmatpush2.bf16.msra.mxu0 0
      %1995 = vmatprep.subr.bf16.mxu0 0
      %1996 = vmatpush2.bf16.msra.mxu0 0
      %1997 = vmatprep.mubr.bf16.mxu0 0
      %1998 = vmatmul.mubr.bf16.gmra.mxu0 %v1915
      %v1999 = vpop.f32.mrf.mxu0
      %v2000 = vadd.f32 0.0, %v1999
      %v2001 = vpop.f32.mrf.mxu0
      %v2002 = vpop.f32.mrf.mxu0
      %v2003 = vadd.f32 0.0, %v2002
      %v2004 = vpop.f32.mrf.mxu0
      %2005 = vmatprep.mubr.bf16.mxu0 0
      %2006 = vmatmul.mubr.bf16.gmra.mxu0 %v1918
      %v2007 = vpop.f32.mrf.mxu0
      %v2008 = vadd.f32 0.0, %v2007
      %v2009 = vpop.f32.mrf.mxu0
      %v2010 = vpop.f32.mrf.mxu0
      %v2011 = vadd.f32 0.0, %v2010
      %v2012 = vpop.f32.mrf.mxu0
      %2013 = vmatprep.mubr.bf16.mxu0 0
      %2014 = vmatmul.mubr.bf16.gmra.mxu0 %v1921
      %v2015 = vpop.f32.mrf.mxu0
      %v2016 = vadd.f32 0.0, %v2015
      %v2017 = vpop.f32.mrf.mxu0
      %v2018 = vpop.f32.mrf.mxu0
      %v2019 = vadd.f32 0.0, %v2018
      %v2020 = vpop.f32.mrf.mxu0
      %2021 = vmatprep.mubr.bf16.mxu0 0
      %2022 = vmatmul.mubr.bf16.gmra.mxu0 %v1924
      %v2023 = vpop.f32.mrf.mxu0
      %v2024 = vadd.f32 0.0, %v2023
      %v2025 = vpop.f32.mrf.mxu0
      %v2026 = vpop.f32.mrf.mxu0
      %v2027 = vadd.f32 0.0, %v2026
      %v2028 = vpop.f32.mrf.mxu0
      %2029 = vmatprep.mubr.bf16.mxu0 0
      %2030 = vmatmul.mubr.bf16.gmra.mxu0 %v1927
      %v2031 = vpop.f32.mrf.mxu0
      %v2032 = vadd.f32 0.0, %v2031
      %v2033 = vpop.f32.mrf.mxu0
      %v2034 = vpop.f32.mrf.mxu0
      %v2035 = vadd.f32 0.0, %v2034
      %v2036 = vpop.f32.mrf.mxu0
      %2037 = vmatprep.mubr.bf16.mxu0 0
      %2038 = vmatmul.mubr.bf16.gmra.mxu0 %v1930
      %v2039 = vpop.f32.mrf.mxu0
      %v2040 = vadd.f32 0.0, %v2039
      %v2041 = vpop.f32.mrf.mxu0
      %v2042 = vpop.f32.mrf.mxu0
      %v2043 = vadd.f32 0.0, %v2042
      %v2044 = vpop.f32.mrf.mxu0
      %2045 = vmatprep.mubr.bf16.mxu0 0
      %2046 = vmatmul.mubr.bf16.gmra.mxu0 %v1933
      %v2047 = vpop.f32.mrf.mxu0
      %v2048 = vadd.f32 0.0, %v2047
      %v2049 = vpop.f32.mrf.mxu0
      %v2050 = vpop.f32.mrf.mxu0
      %v2051 = vadd.f32 0.0, %v2050
      %v2052 = vpop.f32.mrf.mxu0
      %2053 = vmatprep.mubr.bf16.mxu0 0
      %2054 = vmatmul.mubr.bf16.gmra.mxu0 %v1936
      %v2055 = vpop.f32.mrf.mxu0
      %v2056 = vadd.f32 0.0, %v2055
      %v2057 = vpop.f32.mrf.mxu0
      %v2058 = vpop.f32.mrf.mxu0
      %v2059 = vadd.f32 0.0, %v2058
      %v2060 = vpop.f32.mrf.mxu0
      %2061 = vmatprep.mubr.bf16.mxu0 0
      %2062 = vmatmul.mubr.bf16.gmra.mxu0 %v1939
      %v2063 = vpop.f32.mrf.mxu0
      %v2064 = vadd.f32 0.0, %v2063
      %v2065 = vpop.f32.mrf.mxu0
      %v2066 = vpop.f32.mrf.mxu0
      %v2067 = vadd.f32 0.0, %v2066
      %v2068 = vpop.f32.mrf.mxu0
      %2069 = vmatprep.mubr.bf16.mxu0 0
      %2070 = vmatmul.mubr.bf16.gmra.mxu0 %v1942
      %v2071 = vpop.f32.mrf.mxu0
      %v2072 = vadd.f32 0.0, %v2071
      %v2073 = vpop.f32.mrf.mxu0
      %v2074 = vpop.f32.mrf.mxu0
      %v2075 = vadd.f32 0.0, %v2074
      %v2076 = vpop.f32.mrf.mxu0
      %2077 = vmatprep.mubr.bf16.mxu0 0
      %2078 = vmatmul.mubr.bf16.gmra.mxu0 %v1945
      %v2079 = vpop.f32.mrf.mxu0
      %v2080 = vadd.f32 0.0, %v2079
      %v2081 = vpop.f32.mrf.mxu0
      %v2082 = vpop.f32.mrf.mxu0
      %v2083 = vadd.f32 0.0, %v2082
      %v2084 = vpop.f32.mrf.mxu0
      %2085 = vmatprep.mubr.bf16.mxu0 0
      %2086 = vmatmul.mubr.bf16.gmra.mxu0 %v1948
      %v2087 = vpop.f32.mrf.mxu0
      %v2088 = vadd.f32 0.0, %v2087
      %v2089 = vpop.f32.mrf.mxu0
      %v2090 = vpop.f32.mrf.mxu0
      %v2091 = vadd.f32 0.0, %v2090
      %v2092 = vpop.f32.mrf.mxu0
      %2093 = vmatprep.mubr.bf16.mxu0 0
      %2094 = vmatmul.mubr.bf16.gmra.mxu0 %v1951
      %v2095 = vpop.f32.mrf.mxu0
      %v2096 = vadd.f32 0.0, %v2095
      %v2097 = vpop.f32.mrf.mxu0
      %v2098 = vpop.f32.mrf.mxu0
      %v2099 = vadd.f32 0.0, %v2098
      %v2100 = vpop.f32.mrf.mxu0
      %2101 = vmatprep.mubr.bf16.mxu0 0
      %2102 = vmatmul.mubr.bf16.gmra.mxu0 %v1954
      %v2103 = vpop.f32.mrf.mxu0
      %v2104 = vadd.f32 0.0, %v2103
      %v2105 = vpop.f32.mrf.mxu0
      %v2106 = vpop.f32.mrf.mxu0
      %v2107 = vadd.f32 0.0, %v2106
      %v2108 = vpop.f32.mrf.mxu0
      %2109 = vmatprep.mubr.bf16.mxu0 0
      %2110 = vmatmul.mubr.bf16.gmra.mxu0 %v1957
      %v2111 = vpop.f32.mrf.mxu0
      %v2112 = vadd.f32 0.0, %v2111
      %v2113 = vpop.f32.mrf.mxu0
      %v2114 = vpop.f32.mrf.mxu0
      %v2115 = vadd.f32 0.0, %v2114
      %v2116 = vpop.f32.mrf.mxu0
      %2117 = vmatprep.mubr.bf16.mxu0 0
      %2118 = vmatmul.mubr.bf16.gmra.mxu0 %v1960
      %v2119 = vpop.f32.mrf.mxu0
      %v2120 = vadd.f32 0.0, %v2119
      %v2121 = vpop.f32.mrf.mxu0
      %v2122 = vpop.f32.mrf.mxu0
      %v2123 = vadd.f32 0.0, %v2122
      %v2124 = vpop.f32.mrf.mxu0
      %2125 = vdwg.mxu0
      %v2126 = vadd.f32 %v1559, %v2000
      %v2127 = vadd.f32 %v1562, %v2003
      %v2128 = vadd.f32 %v1567, %v2008
      %v2129 = vadd.f32 %v1570, %v2011
      %v2130 = vadd.f32 %v1575, %v2016
      %v2131 = vadd.f32 %v1578, %v2019
      %v2132 = vadd.f32 %v1583, %v2024
      %v2133 = vadd.f32 %v1586, %v2027
      %v2134 = vadd.f32 %v1591, %v2032
      %v2135 = vadd.f32 %v1594, %v2035
      %v2136 = vadd.f32 %v1599, %v2040
      %v2137 = vadd.f32 %v1602, %v2043
      %v2138 = vadd.f32 %v1607, %v2048
      %v2139 = vadd.f32 %v1610, %v2051
      %v2140 = vadd.f32 %v1615, %v2056
      %v2141 = vadd.f32 %v1618, %v2059
      %v2142 = vadd.f32 %v1623, %v2064
      %v2143 = vadd.f32 %v1626, %v2067
      %v2144 = vadd.f32 %v1631, %v2072
      %v2145 = vadd.f32 %v1634, %v2075
      %v2146 = vadd.f32 %v1639, %v2080
      %v2147 = vadd.f32 %v1642, %v2083
      %v2148 = vadd.f32 %v1647, %v2088
      %v2149 = vadd.f32 %v1650, %v2091
      %v2150 = vadd.f32 %v1655, %v2096
      %v2151 = vadd.f32 %v1658, %v2099
      %v2152 = vadd.f32 %v1663, %v2104
      %v2153 = vadd.f32 %v1666, %v2107
      %v2154 = vadd.f32 %v1671, %v2112
      %v2155 = vadd.f32 %v1674, %v2115
      %v2156 = vadd.f32 %v1679, %v2120
      %v2157 = vadd.f32 %v1682, %v2123
      %v2158 = vld [vmem:[%s869] sm:$0xf]
      %v2159 = vld [vmem:[%s869 + $0x4] sm:$0xf]
      %v2160 = vld [vmem:[%s869 + $0xc] sm:$0xf]
      %v2161 = vld [vmem:[%s869 + $0x10] sm:$0xf]
      %v2162 = vld [vmem:[%s869 + $0x18] sm:$0xf]
      %v2163 = vld [vmem:[%s869 + $0x1c] sm:$0xf]
      %v2164 = vld [vmem:[%s869 + $0x24] sm:$0xf]
      %v2165 = vld [vmem:[%s869 + $0x28] sm:$0xf]
      %v2166 = vld [vmem:[%s869 + $0x30] sm:$0xf]
      %v2167 = vld [vmem:[%s869 + $0x34] sm:$0xf]
      %v2168 = vld [vmem:[%s869 + $0x3c] sm:$0xf]
      %v2169 = vld [vmem:[%s869 + $0x40] sm:$0xf]
      %v2170 = vld [vmem:[%s869 + $0x48] sm:$0xf]
      %v2171 = vld [vmem:[%s869 + $0x4c] sm:$0xf]
      %v2172 = vld [vmem:[%s869 + $0x54] sm:$0xf]
      %v2173 = vld [vmem:[%s869 + $0x58] sm:$0xf]
      %v2174 = vld [vmem:[%s869 + $0x60] sm:$0xf]
      %v2175 = vld [vmem:[%s869 + $0x64] sm:$0xf]
      %v2176 = vld [vmem:[%s869 + $0x6c] sm:$0xf]
      %v2177 = vld [vmem:[%s869 + $0x70] sm:$0xf]
      %v2178 = vld [vmem:[%s869 + $0x78] sm:$0xf]
      %v2179 = vld [vmem:[%s869 + $0x7c] sm:$0xf]
      %v2180 = vld [vmem:[%s869 + $0x84] sm:$0xf]
      %v2181 = vld [vmem:[%s869 + $0x88] sm:$0xf]
      %v2182 = vld [vmem:[%s869 + $0x90] sm:$0xf]
      %v2183 = vld [vmem:[%s869 + $0x94] sm:$0xf]
      %v2184 = vld [vmem:[%s869 + $0x9c] sm:$0xf]
      %v2185 = vld [vmem:[%s869 + $0xa0] sm:$0xf]
      %v2186 = vld [vmem:[%s869 + $0xa8] sm:$0xf]
      %v2187 = vld [vmem:[%s869 + $0xac] sm:$0xf]
      %v2188 = vld [vmem:[%s869 + $0xb4] sm:$0xf]
      %v2189 = vld [vmem:[%s869 + $0xb8] sm:$0xf]
      %s2190 = scalar_lea.vmem %s2, 12
      %v2191 = vld [vmem:[%s2190] sm:$0xf]
      %v2224 = vunpack.c.l.b16 %v2158
      %v2225 = vunpack.c.l.b16 %v2159
      %v2226 = vunpack.c.l.b16 %v2160
      %v2227 = vunpack.c.l.b16 %v2161
      %v2228 = vunpack.c.l.b16 %v2162
      %v2229 = vunpack.c.l.b16 %v2163
      %v2230 = vunpack.c.l.b16 %v2164
      %v2231 = vunpack.c.l.b16 %v2165
      %v2232 = vunpack.c.l.b16 %v2166
      %v2233 = vunpack.c.l.b16 %v2167
      %v2234 = vunpack.c.l.b16 %v2168
      %v2235 = vunpack.c.l.b16 %v2169
      %v2236 = vunpack.c.l.b16 %v2170
      %v2237 = vunpack.c.l.b16 %v2171
      %v2238 = vunpack.c.l.b16 %v2172
      %v2239 = vunpack.c.l.b16 %v2173
      %v2240 = vunpack.c.l.b16 %v2174
      %v2241 = vunpack.c.l.b16 %v2175
      %v2242 = vunpack.c.l.b16 %v2176
      %v2243 = vunpack.c.l.b16 %v2177
      %v2244 = vunpack.c.l.b16 %v2178
      %v2245 = vunpack.c.l.b16 %v2179
      %v2246 = vunpack.c.l.b16 %v2180
      %v2247 = vunpack.c.l.b16 %v2181
      %v2248 = vunpack.c.l.b16 %v2182
      %v2249 = vunpack.c.l.b16 %v2183
      %v2250 = vunpack.c.l.b16 %v2184
      %v2251 = vunpack.c.l.b16 %v2185
      %v2252 = vunpack.c.l.b16 %v2186
      %v2253 = vunpack.c.l.b16 %v2187
      %v2254 = vunpack.c.l.b16 %v2188
      %v2255 = vunpack.c.l.b16 %v2189
      %v2256 = vpack.c.b16 %v2225, %v2224
      %v2257 = vpack.c.b16 %v2227, %v2226
      %v2258 = vpack.c.b16 %v2229, %v2228
      %v2259 = vpack.c.b16 %v2231, %v2230
      %v2260 = vpack.c.b16 %v2233, %v2232
      %v2261 = vpack.c.b16 %v2235, %v2234
      %v2262 = vpack.c.b16 %v2237, %v2236
      %v2263 = vpack.c.b16 %v2239, %v2238
      %v2264 = vpack.c.b16 %v2241, %v2240
      %v2265 = vpack.c.b16 %v2243, %v2242
      %v2266 = vpack.c.b16 %v2245, %v2244
      %v2267 = vpack.c.b16 %v2247, %v2246
      %v2268 = vpack.c.b16 %v2249, %v2248
      %v2269 = vpack.c.b16 %v2251, %v2250
      %v2270 = vpack.c.b16 %v2253, %v2252
      %v2271 = vpack.c.b16 %v2255, %v2254
      %v2273 = vsel %vm339, %v2256, 0
      %v2276 = vsel %vm339, %v2257, 0
      %v2279 = vsel %vm339, %v2258, 0
      %v2282 = vsel %vm339, %v2259, 0
      %v2285 = vsel %vm339, %v2260, 0
      %v2288 = vsel %vm339, %v2261, 0
      %v2291 = vsel %vm339, %v2262, 0
      %v2294 = vsel %vm339, %v2263, 0
      %v2297 = vsel %vm339, %v2264, 0
      %v2300 = vsel %vm339, %v2265, 0
      %v2303 = vsel %vm339, %v2266, 0
      %v2306 = vsel %vm339, %v2267, 0
      %v2309 = vsel %vm339, %v2268, 0
      %v2312 = vsel %vm339, %v2269, 0
      %v2315 = vsel %vm339, %v2270, 0
      %v2318 = vsel %vm339, %v2271, 0
      %v2321 = vsel %vm388, %v2191, 0
      %2323 = vmatprep.subr.bf16.mxu0 0
      %2324 = vmatpush1.bf16.msra.mxu0 0
      %2325 = vmatprep.subr.bf16.mxu0 0
      %2326 = vmatpush1.bf16.msra.mxu0 0
      %2327 = vmatprep.subr.bf16.mxu0 0
      %2328 = vmatpush1.bf16.msra.mxu0 0
      %2329 = vmatprep.subr.bf16.mxu0 0
      %2330 = vmatpush1.bf16.msra.mxu0 0
      %2331 = vmatprep.subr.bf16.mxu0 0
      %2332 = vmatpush1.bf16.msra.mxu0 0
      %2333 = vmatprep.subr.bf16.mxu0 0
      %2334 = vmatpush1.bf16.msra.mxu0 0
      %2335 = vmatprep.subr.bf16.mxu0 0
      %2336 = vmatpush1.bf16.msra.mxu0 0
      %2337 = vmatprep.subr.bf16.mxu0 0
      %2338 = vmatpush1.bf16.msra.mxu0 %v2321
      %2339 = vmatprep.subr.bf16.mxu0 0
      %2340 = vmatpush2.bf16.msra.mxu0 0
      %2341 = vmatprep.subr.bf16.mxu0 0
      %2342 = vmatpush2.bf16.msra.mxu0 0
      %2343 = vmatprep.subr.bf16.mxu0 0
      %2344 = vmatpush2.bf16.msra.mxu0 0
      %2345 = vmatprep.subr.bf16.mxu0 0
      %2346 = vmatpush2.bf16.msra.mxu0 0
      %2347 = vmatprep.subr.bf16.mxu0 0
      %2348 = vmatpush2.bf16.msra.mxu0 0
      %2349 = vmatprep.subr.bf16.mxu0 0
      %2350 = vmatpush2.bf16.msra.mxu0 0
      %2351 = vmatprep.subr.bf16.mxu0 0
      %2352 = vmatpush2.bf16.msra.mxu0 0
      %2353 = vmatprep.subr.bf16.mxu0 0
      %2354 = vmatpush2.bf16.msra.mxu0 0
      %2355 = vmatprep.mubr.bf16.mxu0 0
      %2356 = vmatmul.mubr.bf16.gmra.mxu0 %v2273
      %v2357 = vpop.f32.mrf.mxu0
      %v2358 = vadd.f32 0.0, %v2357
      %v2359 = vpop.f32.mrf.mxu0
      %v2360 = vpop.f32.mrf.mxu0
      %v2361 = vadd.f32 0.0, %v2360
      %v2362 = vpop.f32.mrf.mxu0
      %2363 = vmatprep.mubr.bf16.mxu0 0
      %2364 = vmatmul.mubr.bf16.gmra.mxu0 %v2276
      %v2365 = vpop.f32.mrf.mxu0
      %v2366 = vadd.f32 0.0, %v2365
      %v2367 = vpop.f32.mrf.mxu0
      %v2368 = vpop.f32.mrf.mxu0
      %v2369 = vadd.f32 0.0, %v2368
      %v2370 = vpop.f32.mrf.mxu0
      %2371 = vmatprep.mubr.bf16.mxu0 0
      %2372 = vmatmul.mubr.bf16.gmra.mxu0 %v2279
      %v2373 = vpop.f32.mrf.mxu0
      %v2374 = vadd.f32 0.0, %v2373
      %v2375 = vpop.f32.mrf.mxu0
      %v2376 = vpop.f32.mrf.mxu0
      %v2377 = vadd.f32 0.0, %v2376
      %v2378 = vpop.f32.mrf.mxu0
      %2379 = vmatprep.mubr.bf16.mxu0 0
      %2380 = vmatmul.mubr.bf16.gmra.mxu0 %v2282
      %v2381 = vpop.f32.mrf.mxu0
      %v2382 = vadd.f32 0.0, %v2381
      %v2383 = vpop.f32.mrf.mxu0
      %v2384 = vpop.f32.mrf.mxu0
      %v2385 = vadd.f32 0.0, %v2384
      %v2386 = vpop.f32.mrf.mxu0
      %2387 = vmatprep.mubr.bf16.mxu0 0
      %2388 = vmatmul.mubr.bf16.gmra.mxu0 %v2285
      %v2389 = vpop.f32.mrf.mxu0
      %v2390 = vadd.f32 0.0, %v2389
      %v2391 = vpop.f32.mrf.mxu0
      %v2392 = vpop.f32.mrf.mxu0
      %v2393 = vadd.f32 0.0, %v2392
      %v2394 = vpop.f32.mrf.mxu0
      %2395 = vmatprep.mubr.bf16.mxu0 0
      %2396 = vmatmul.mubr.bf16.gmra.mxu0 %v2288
      %v2397 = vpop.f32.mrf.mxu0
      %v2398 = vadd.f32 0.0, %v2397
      %v2399 = vpop.f32.mrf.mxu0
      %v2400 = vpop.f32.mrf.mxu0
      %v2401 = vadd.f32 0.0, %v2400
      %v2402 = vpop.f32.mrf.mxu0
      %2403 = vmatprep.mubr.bf16.mxu0 0
      %2404 = vmatmul.mubr.bf16.gmra.mxu0 %v2291
      %v2405 = vpop.f32.mrf.mxu0
      %v2406 = vadd.f32 0.0, %v2405
      %v2407 = vpop.f32.mrf.mxu0
      %v2408 = vpop.f32.mrf.mxu0
      %v2409 = vadd.f32 0.0, %v2408
      %v2410 = vpop.f32.mrf.mxu0
      %2411 = vmatprep.mubr.bf16.mxu0 0
      %2412 = vmatmul.mubr.bf16.gmra.mxu0 %v2294
      %v2413 = vpop.f32.mrf.mxu0
      %v2414 = vadd.f32 0.0, %v2413
      %v2415 = vpop.f32.mrf.mxu0
      %v2416 = vpop.f32.mrf.mxu0
      %v2417 = vadd.f32 0.0, %v2416
      %v2418 = vpop.f32.mrf.mxu0
      %2419 = vmatprep.mubr.bf16.mxu0 0
      %2420 = vmatmul.mubr.bf16.gmra.mxu0 %v2297
      %v2421 = vpop.f32.mrf.mxu0
      %v2422 = vadd.f32 0.0, %v2421
      %v2423 = vpop.f32.mrf.mxu0
      %v2424 = vpop.f32.mrf.mxu0
      %v2425 = vadd.f32 0.0, %v2424
      %v2426 = vpop.f32.mrf.mxu0
      %2427 = vmatprep.mubr.bf16.mxu0 0
      %2428 = vmatmul.mubr.bf16.gmra.mxu0 %v2300
      %v2429 = vpop.f32.mrf.mxu0
      %v2430 = vadd.f32 0.0, %v2429
      %v2431 = vpop.f32.mrf.mxu0
      %v2432 = vpop.f32.mrf.mxu0
      %v2433 = vadd.f32 0.0, %v2432
      %v2434 = vpop.f32.mrf.mxu0
      %2435 = vmatprep.mubr.bf16.mxu0 0
      %2436 = vmatmul.mubr.bf16.gmra.mxu0 %v2303
      %v2437 = vpop.f32.mrf.mxu0
      %v2438 = vadd.f32 0.0, %v2437
      %v2439 = vpop.f32.mrf.mxu0
      %v2440 = vpop.f32.mrf.mxu0
      %v2441 = vadd.f32 0.0, %v2440
      %v2442 = vpop.f32.mrf.mxu0
      %2443 = vmatprep.mubr.bf16.mxu0 0
      %2444 = vmatmul.mubr.bf16.gmra.mxu0 %v2306
      %v2445 = vpop.f32.mrf.mxu0
      %v2446 = vadd.f32 0.0, %v2445
      %v2447 = vpop.f32.mrf.mxu0
      %v2448 = vpop.f32.mrf.mxu0
      %v2449 = vadd.f32 0.0, %v2448
      %v2450 = vpop.f32.mrf.mxu0
      %2451 = vmatprep.mubr.bf16.mxu0 0
      %2452 = vmatmul.mubr.bf16.gmra.mxu0 %v2309
      %v2453 = vpop.f32.mrf.mxu0
      %v2454 = vadd.f32 0.0, %v2453
      %v2455 = vpop.f32.mrf.mxu0
      %v2456 = vpop.f32.mrf.mxu0
      %v2457 = vadd.f32 0.0, %v2456
      %v2458 = vpop.f32.mrf.mxu0
      %2459 = vmatprep.mubr.bf16.mxu0 0
      %2460 = vmatmul.mubr.bf16.gmra.mxu0 %v2312
      %v2461 = vpop.f32.mrf.mxu0
      %v2462 = vadd.f32 0.0, %v2461
      %v2463 = vpop.f32.mrf.mxu0
      %v2464 = vpop.f32.mrf.mxu0
      %v2465 = vadd.f32 0.0, %v2464
      %v2466 = vpop.f32.mrf.mxu0
      %2467 = vmatprep.mubr.bf16.mxu0 0
      %2468 = vmatmul.mubr.bf16.gmra.mxu0 %v2315
      %v2469 = vpop.f32.mrf.mxu0
      %v2470 = vadd.f32 0.0, %v2469
      %v2471 = vpop.f32.mrf.mxu0
      %v2472 = vpop.f32.mrf.mxu0
      %v2473 = vadd.f32 0.0, %v2472
      %v2474 = vpop.f32.mrf.mxu0
      %2475 = vmatprep.mubr.bf16.mxu0 0
      %2476 = vmatmul.mubr.bf16.gmra.mxu0 %v2318
      %v2477 = vpop.f32.mrf.mxu0
      %v2478 = vadd.f32 0.0, %v2477
      %v2479 = vpop.f32.mrf.mxu0
      %v2480 = vpop.f32.mrf.mxu0
      %v2481 = vadd.f32 0.0, %v2480
      %v2482 = vpop.f32.mrf.mxu0
      %2483 = vdwg.mxu0
      %v2484 = vadd.f32 %v2126, %v2358
      %v2485 = vadd.f32 %v2127, %v2361
      %v2486 = vadd.f32 %v2128, %v2366
      %v2487 = vadd.f32 %v2129, %v2369
      %v2488 = vadd.f32 %v2130, %v2374
      %v2489 = vadd.f32 %v2131, %v2377
      %v2490 = vadd.f32 %v2132, %v2382
      %v2491 = vadd.f32 %v2133, %v2385
      %v2492 = vadd.f32 %v2134, %v2390
      %v2493 = vadd.f32 %v2135, %v2393
      %v2494 = vadd.f32 %v2136, %v2398
      %v2495 = vadd.f32 %v2137, %v2401
      %v2496 = vadd.f32 %v2138, %v2406
      %v2497 = vadd.f32 %v2139, %v2409
      %v2498 = vadd.f32 %v2140, %v2414
      %v2499 = vadd.f32 %v2141, %v2417
      %v2500 = vadd.f32 %v2142, %v2422
      %v2501 = vadd.f32 %v2143, %v2425
      %v2502 = vadd.f32 %v2144, %v2430
      %v2503 = vadd.f32 %v2145, %v2433
      %v2504 = vadd.f32 %v2146, %v2438
      %v2505 = vadd.f32 %v2147, %v2441
      %v2506 = vadd.f32 %v2148, %v2446
      %v2507 = vadd.f32 %v2149, %v2449
      %v2508 = vadd.f32 %v2150, %v2454
      %v2509 = vadd.f32 %v2151, %v2457
      %v2510 = vadd.f32 %v2152, %v2462
      %v2511 = vadd.f32 %v2153, %v2465
      %v2512 = vadd.f32 %v2154, %v2470
      %v2513 = vadd.f32 %v2155, %v2473
      %v2514 = vadd.f32 %v2156, %v2478
      %v2515 = vadd.f32 %v2157, %v2481
      %v2516 = vld [vmem:[%s869] sm:$0xe]
      %v2517 = vld [vmem:[%s869 + $0x4] sm:$0xf]
      %v2518 = vld [vmem:[%s869 + $0x8] sm:$0x1]
      %v2519 = vld [vmem:[%s869 + $0xc] sm:$0xe]
      %v2520 = vld [vmem:[%s869 + $0x10] sm:$0xf]
      %v2521 = vld [vmem:[%s869 + $0x14] sm:$0x1]
      %v2522 = vld [vmem:[%s869 + $0x18] sm:$0xe]
      %v2523 = vld [vmem:[%s869 + $0x1c] sm:$0xf]
      %v2524 = vld [vmem:[%s869 + $0x20] sm:$0x1]
      %v2525 = vld [vmem:[%s869 + $0x24] sm:$0xe]
      %v2526 = vld [vmem:[%s869 + $0x28] sm:$0xf]
      %v2527 = vld [vmem:[%s869 + $0x2c] sm:$0x1]
      %v2528 = vld [vmem:[%s869 + $0x30] sm:$0xe]
      %v2529 = vld [vmem:[%s869 + $0x34] sm:$0xf]
      %v2530 = vld [vmem:[%s869 + $0x38] sm:$0x1]
      %v2531 = vld [vmem:[%s869 + $0x3c] sm:$0xe]
      %v2532 = vld [vmem:[%s869 + $0x40] sm:$0xf]
      %v2533 = vld [vmem:[%s869 + $0x44] sm:$0x1]
      %v2534 = vld [vmem:[%s869 + $0x48] sm:$0xe]
      %v2535 = vld [vmem:[%s869 + $0x4c] sm:$0xf]
      %v2536 = vld [vmem:[%s869 + $0x50] sm:$0x1]
      %v2537 = vld [vmem:[%s869 + $0x54] sm:$0xe]
      %v2538 = vld [vmem:[%s869 + $0x58] sm:$0xf]
      %v2539 = vld [vmem:[%s869 + $0x5c] sm:$0x1]
      %v2540 = vld [vmem:[%s869 + $0x60] sm:$0xe]
      %v2541 = vld [vmem:[%s869 + $0x64] sm:$0xf]
      %v2542 = vld [vmem:[%s869 + $0x68] sm:$0x1]
      %v2543 = vld [vmem:[%s869 + $0x6c] sm:$0xe]
      %v2544 = vld [vmem:[%s869 + $0x70] sm:$0xf]
      %v2545 = vld [vmem:[%s869 + $0x74] sm:$0x1]
      %v2546 = vld [vmem:[%s869 + $0x78] sm:$0xe]
      %v2547 = vld [vmem:[%s869 + $0x7c] sm:$0xf]
      %v2548 = vld [vmem:[%s869 + $0x80] sm:$0x1]
      %v2549 = vld [vmem:[%s869 + $0x84] sm:$0xe]
      %v2550 = vld [vmem:[%s869 + $0x88] sm:$0xf]
      %v2551 = vld [vmem:[%s869 + $0x8c] sm:$0x1]
      %v2552 = vld [vmem:[%s869 + $0x90] sm:$0xe]
      %v2553 = vld [vmem:[%s869 + $0x94] sm:$0xf]
      %v2554 = vld [vmem:[%s869 + $0x98] sm:$0x1]
      %v2555 = vld [vmem:[%s869 + $0x9c] sm:$0xe]
      %v2556 = vld [vmem:[%s869 + $0xa0] sm:$0xf]
      %v2557 = vld [vmem:[%s869 + $0xa4] sm:$0x1]
      %v2558 = vld [vmem:[%s869 + $0xa8] sm:$0xe]
      %v2559 = vld [vmem:[%s869 + $0xac] sm:$0xf]
      %v2560 = vld [vmem:[%s869 + $0xb0] sm:$0x1]
      %v2561 = vld [vmem:[%s869 + $0xb4] sm:$0xe]
      %v2562 = vld [vmem:[%s869 + $0xb8] sm:$0xf]
      %v2563 = vld [vmem:[%s869 + $0xbc] sm:$0x1]
      %v2612 = vrot.slane %v2516, 5
      %v2613 = vrot.slane %v2612, 4
      %v2614 = vrot.slane %v2517, 5
      %v2615 = vsel %vm1034, %v2613, %v2614
      %v2616 = vrot.slane %v2614, 4
      %v2617 = vrot.slane %v2518, 5
      %v2618 = vsel %vm1034, %v2616, %v2617
      %v2619 = vrot.slane %v2519, 5
      %v2620 = vrot.slane %v2619, 4
      %v2621 = vrot.slane %v2520, 5
      %v2622 = vsel %vm1034, %v2620, %v2621
      %v2623 = vrot.slane %v2621, 4
      %v2624 = vrot.slane %v2521, 5
      %v2625 = vsel %vm1034, %v2623, %v2624
      %v2626 = vrot.slane %v2522, 5
      %v2627 = vrot.slane %v2626, 4
      %v2628 = vrot.slane %v2523, 5
      %v2629 = vsel %vm1034, %v2627, %v2628
      %v2630 = vrot.slane %v2628, 4
      %v2631 = vrot.slane %v2524, 5
      %v2632 = vsel %vm1034, %v2630, %v2631
      %v2633 = vrot.slane %v2525, 5
      %v2634 = vrot.slane %v2633, 4
      %v2635 = vrot.slane %v2526, 5
      %v2636 = vsel %vm1034, %v2634, %v2635
      %v2637 = vrot.slane %v2635, 4
      %v2638 = vrot.slane %v2527, 5
      %v2639 = vsel %vm1034, %v2637, %v2638
      %v2640 = vrot.slane %v2528, 5
      %v2641 = vrot.slane %v2640, 4
      %v2642 = vrot.slane %v2529, 5
      %v2643 = vsel %vm1034, %v2641, %v2642
      %v2644 = vrot.slane %v2642, 4
      %v2645 = vrot.slane %v2530, 5
      %v2646 = vsel %vm1034, %v2644, %v2645
      %v2647 = vrot.slane %v2531, 5
      %v2648 = vrot.slane %v2647, 4
      %v2649 = vrot.slane %v2532, 5
      %v2650 = vsel %vm1034, %v2648, %v2649
      %v2651 = vrot.slane %v2649, 4
      %v2652 = vrot.slane %v2533, 5
      %v2653 = vsel %vm1034, %v2651, %v2652
      %v2654 = vrot.slane %v2534, 5
      %v2655 = vrot.slane %v2654, 4
      %v2656 = vrot.slane %v2535, 5
      %v2657 = vsel %vm1034, %v2655, %v2656
      %v2658 = vrot.slane %v2656, 4
      %v2659 = vrot.slane %v2536, 5
      %v2660 = vsel %vm1034, %v2658, %v2659
      %v2661 = vrot.slane %v2537, 5
      %v2662 = vrot.slane %v2661, 4
      %v2663 = vrot.slane %v2538, 5
      %v2664 = vsel %vm1034, %v2662, %v2663
      %v2665 = vrot.slane %v2663, 4
      %v2666 = vrot.slane %v2539, 5
      %v2667 = vsel %vm1034, %v2665, %v2666
      %v2668 = vrot.slane %v2540, 5
      %v2669 = vrot.slane %v2668, 4
      %v2670 = vrot.slane %v2541, 5
      %v2671 = vsel %vm1034, %v2669, %v2670
      %v2672 = vrot.slane %v2670, 4
      %v2673 = vrot.slane %v2542, 5
      %v2674 = vsel %vm1034, %v2672, %v2673
      %v2675 = vrot.slane %v2543, 5
      %v2676 = vrot.slane %v2675, 4
      %v2677 = vrot.slane %v2544, 5
      %v2678 = vsel %vm1034, %v2676, %v2677
      %v2679 = vrot.slane %v2677, 4
      %v2680 = vrot.slane %v2545, 5
      %v2681 = vsel %vm1034, %v2679, %v2680
      %v2682 = vrot.slane %v2546, 5
      %v2683 = vrot.slane %v2682, 4
      %v2684 = vrot.slane %v2547, 5
      %v2685 = vsel %vm1034, %v2683, %v2684
      %v2686 = vrot.slane %v2684, 4
      %v2687 = vrot.slane %v2548, 5
      %v2688 = vsel %vm1034, %v2686, %v2687
      %v2689 = vrot.slane %v2549, 5
      %v2690 = vrot.slane %v2689, 4
      %v2691 = vrot.slane %v2550, 5
      %v2692 = vsel %vm1034, %v2690, %v2691
      %v2693 = vrot.slane %v2691, 4
      %v2694 = vrot.slane %v2551, 5
      %v2695 = vsel %vm1034, %v2693, %v2694
      %v2696 = vrot.slane %v2552, 5
      %v2697 = vrot.slane %v2696, 4
      %v2698 = vrot.slane %v2553, 5
      %v2699 = vsel %vm1034, %v2697, %v2698
      %v2700 = vrot.slane %v2698, 4
      %v2701 = vrot.slane %v2554, 5
      %v2702 = vsel %vm1034, %v2700, %v2701
      %v2703 = vrot.slane %v2555, 5
      %v2704 = vrot.slane %v2703, 4
      %v2705 = vrot.slane %v2556, 5
      %v2706 = vsel %vm1034, %v2704, %v2705
      %v2707 = vrot.slane %v2705, 4
      %v2708 = vrot.slane %v2557, 5
      %v2709 = vsel %vm1034, %v2707, %v2708
      %v2710 = vrot.slane %v2558, 5
      %v2711 = vrot.slane %v2710, 4
      %v2712 = vrot.slane %v2559, 5
      %v2713 = vsel %vm1034, %v2711, %v2712
      %v2714 = vrot.slane %v2712, 4
      %v2715 = vrot.slane %v2560, 5
      %v2716 = vsel %vm1034, %v2714, %v2715
      %v2717 = vrot.slane %v2561, 5
      %v2718 = vrot.slane %v2717, 4
      %v2719 = vrot.slane %v2562, 5
      %v2720 = vsel %vm1034, %v2718, %v2719
      %v2721 = vrot.slane %v2719, 4
      %v2722 = vrot.slane %v2563, 5
      %v2723 = vsel %vm1034, %v2721, %v2722
      %s2724 = scalar_lea.vmem %s2, 16
      %v2725 = vld [vmem:[%s2724] sm:$0xf]
      %v2726 = vunpack.c.l.b16 %v2615
      %v2727 = vunpack.c.l.b16 %v2618
      %v2728 = vunpack.c.l.b16 %v2622
      %v2729 = vunpack.c.l.b16 %v2625
      %v2730 = vunpack.c.l.b16 %v2629
      %v2731 = vunpack.c.l.b16 %v2632
      %v2732 = vunpack.c.l.b16 %v2636
      %v2733 = vunpack.c.l.b16 %v2639
      %v2734 = vunpack.c.l.b16 %v2643
      %v2735 = vunpack.c.l.b16 %v2646
      %v2736 = vunpack.c.l.b16 %v2650
      %v2737 = vunpack.c.l.b16 %v2653
      %v2738 = vunpack.c.l.b16 %v2657
      %v2739 = vunpack.c.l.b16 %v2660
      %v2740 = vunpack.c.l.b16 %v2664
      %v2741 = vunpack.c.l.b16 %v2667
      %v2742 = vunpack.c.l.b16 %v2671
      %v2743 = vunpack.c.l.b16 %v2674
      %v2744 = vunpack.c.l.b16 %v2678
      %v2745 = vunpack.c.l.b16 %v2681
      %v2746 = vunpack.c.l.b16 %v2685
      %v2747 = vunpack.c.l.b16 %v2688
      %v2748 = vunpack.c.l.b16 %v2692
      %v2749 = vunpack.c.l.b16 %v2695
      %v2750 = vunpack.c.l.b16 %v2699
      %v2751 = vunpack.c.l.b16 %v2702
      %v2752 = vunpack.c.l.b16 %v2706
      %v2753 = vunpack.c.l.b16 %v2709
      %v2754 = vunpack.c.l.b16 %v2713
      %v2755 = vunpack.c.l.b16 %v2716
      %v2756 = vunpack.c.l.b16 %v2720
      %v2757 = vunpack.c.l.b16 %v2723
      %v2758 = vpack.c.b16 %v2727, %v2726
      %v2759 = vpack.c.b16 %v2729, %v2728
      %v2760 = vpack.c.b16 %v2731, %v2730
      %v2761 = vpack.c.b16 %v2733, %v2732
      %v2762 = vpack.c.b16 %v2735, %v2734
      %v2763 = vpack.c.b16 %v2737, %v2736
      %v2764 = vpack.c.b16 %v2739, %v2738
      %v2765 = vpack.c.b16 %v2741, %v2740
      %v2766 = vpack.c.b16 %v2743, %v2742
      %v2767 = vpack.c.b16 %v2745, %v2744
      %v2768 = vpack.c.b16 %v2747, %v2746
      %v2769 = vpack.c.b16 %v2749, %v2748
      %v2770 = vpack.c.b16 %v2751, %v2750
      %v2771 = vpack.c.b16 %v2753, %v2752
      %v2772 = vpack.c.b16 %v2755, %v2754
      %v2773 = vpack.c.b16 %v2757, %v2756
      %v2775 = vsel %vm339, %v2758, 0
      %v2778 = vsel %vm339, %v2759, 0
      %v2781 = vsel %vm339, %v2760, 0
      %v2784 = vsel %vm339, %v2761, 0
      %v2787 = vsel %vm339, %v2762, 0
      %v2790 = vsel %vm339, %v2763, 0
      %v2793 = vsel %vm339, %v2764, 0
      %v2796 = vsel %vm339, %v2765, 0
      %v2799 = vsel %vm339, %v2766, 0
      %v2802 = vsel %vm339, %v2767, 0
      %v2805 = vsel %vm339, %v2768, 0
      %v2808 = vsel %vm339, %v2769, 0
      %v2811 = vsel %vm339, %v2770, 0
      %v2814 = vsel %vm339, %v2771, 0
      %v2817 = vsel %vm339, %v2772, 0
      %v2820 = vsel %vm339, %v2773, 0
      %v2823 = vsel %vm388, %v2725, 0
      %2825 = vmatprep.subr.bf16.mxu0 0
      %2826 = vmatpush1.bf16.msra.mxu0 0
      %2827 = vmatprep.subr.bf16.mxu0 0
      %2828 = vmatpush1.bf16.msra.mxu0 0
      %2829 = vmatprep.subr.bf16.mxu0 0
      %2830 = vmatpush1.bf16.msra.mxu0 0
      %2831 = vmatprep.subr.bf16.mxu0 0
      %2832 = vmatpush1.bf16.msra.mxu0 0
      %2833 = vmatprep.subr.bf16.mxu0 0
      %2834 = vmatpush1.bf16.msra.mxu0 0
      %2835 = vmatprep.subr.bf16.mxu0 0
      %2836 = vmatpush1.bf16.msra.mxu0 0
      %2837 = vmatprep.subr.bf16.mxu0 0
      %2838 = vmatpush1.bf16.msra.mxu0 0
      %2839 = vmatprep.subr.bf16.mxu0 0
      %2840 = vmatpush1.bf16.msra.mxu0 %v2823
      %2841 = vmatprep.subr.bf16.mxu0 0
      %2842 = vmatpush2.bf16.msra.mxu0 0
      %2843 = vmatprep.subr.bf16.mxu0 0
      %2844 = vmatpush2.bf16.msra.mxu0 0
      %2845 = vmatprep.subr.bf16.mxu0 0
      %2846 = vmatpush2.bf16.msra.mxu0 0
      %2847 = vmatprep.subr.bf16.mxu0 0
      %2848 = vmatpush2.bf16.msra.mxu0 0
      %2849 = vmatprep.subr.bf16.mxu0 0
      %2850 = vmatpush2.bf16.msra.mxu0 0
      %2851 = vmatprep.subr.bf16.mxu0 0
      %2852 = vmatpush2.bf16.msra.mxu0 0
      %2853 = vmatprep.subr.bf16.mxu0 0
      %2854 = vmatpush2.bf16.msra.mxu0 0
      %2855 = vmatprep.subr.bf16.mxu0 0
      %2856 = vmatpush2.bf16.msra.mxu0 0
      %2857 = vmatprep.mubr.bf16.mxu0 0
      %2858 = vmatmul.mubr.bf16.gmra.mxu0 %v2775
      %v2859 = vpop.f32.mrf.mxu0
      %v2860 = vadd.f32 0.0, %v2859
      %v2861 = vpop.f32.mrf.mxu0
      %v2862 = vpop.f32.mrf.mxu0
      %v2863 = vadd.f32 0.0, %v2862
      %v2864 = vpop.f32.mrf.mxu0
      %2865 = vmatprep.mubr.bf16.mxu0 0
      %2866 = vmatmul.mubr.bf16.gmra.mxu0 %v2778
      %v2867 = vpop.f32.mrf.mxu0
      %v2868 = vadd.f32 0.0, %v2867
      %v2869 = vpop.f32.mrf.mxu0
      %v2870 = vpop.f32.mrf.mxu0
      %v2871 = vadd.f32 0.0, %v2870
      %v2872 = vpop.f32.mrf.mxu0
      %2873 = vmatprep.mubr.bf16.mxu0 0
      %2874 = vmatmul.mubr.bf16.gmra.mxu0 %v2781
      %v2875 = vpop.f32.mrf.mxu0
      %v2876 = vadd.f32 0.0, %v2875
      %v2877 = vpop.f32.mrf.mxu0
      %v2878 = vpop.f32.mrf.mxu0
      %v2879 = vadd.f32 0.0, %v2878
      %v2880 = vpop.f32.mrf.mxu0
      %2881 = vmatprep.mubr.bf16.mxu0 0
      %2882 = vmatmul.mubr.bf16.gmra.mxu0 %v2784
      %v2883 = vpop.f32.mrf.mxu0
      %v2884 = vadd.f32 0.0, %v2883
      %v2885 = vpop.f32.mrf.mxu0
      %v2886 = vpop.f32.mrf.mxu0
      %v2887 = vadd.f32 0.0, %v2886
      %v2888 = vpop.f32.mrf.mxu0
      %2889 = vmatprep.mubr.bf16.mxu0 0
      %2890 = vmatmul.mubr.bf16.gmra.mxu0 %v2787
      %v2891 = vpop.f32.mrf.mxu0
      %v2892 = vadd.f32 0.0, %v2891
      %v2893 = vpop.f32.mrf.mxu0
      %v2894 = vpop.f32.mrf.mxu0
      %v2895 = vadd.f32 0.0, %v2894
      %v2896 = vpop.f32.mrf.mxu0
      %2897 = vmatprep.mubr.bf16.mxu0 0
      %2898 = vmatmul.mubr.bf16.gmra.mxu0 %v2790
      %v2899 = vpop.f32.mrf.mxu0
      %v2900 = vadd.f32 0.0, %v2899
      %v2901 = vpop.f32.mrf.mxu0
      %v2902 = vpop.f32.mrf.mxu0
      %v2903 = vadd.f32 0.0, %v2902
      %v2904 = vpop.f32.mrf.mxu0
      %2905 = vmatprep.mubr.bf16.mxu0 0
      %2906 = vmatmul.mubr.bf16.gmra.mxu0 %v2793
      %v2907 = vpop.f32.mrf.mxu0
      %v2908 = vadd.f32 0.0, %v2907
      %v2909 = vpop.f32.mrf.mxu0
      %v2910 = vpop.f32.mrf.mxu0
      %v2911 = vadd.f32 0.0, %v2910
      %v2912 = vpop.f32.mrf.mxu0
      %2913 = vmatprep.mubr.bf16.mxu0 0
      %2914 = vmatmul.mubr.bf16.gmra.mxu0 %v2796
      %v2915 = vpop.f32.mrf.mxu0
      %v2916 = vadd.f32 0.0, %v2915
      %v2917 = vpop.f32.mrf.mxu0
      %v2918 = vpop.f32.mrf.mxu0
      %v2919 = vadd.f32 0.0, %v2918
      %v2920 = vpop.f32.mrf.mxu0
      %2921 = vmatprep.mubr.bf16.mxu0 0
      %2922 = vmatmul.mubr.bf16.gmra.mxu0 %v2799
      %v2923 = vpop.f32.mrf.mxu0
      %v2924 = vadd.f32 0.0, %v2923
      %v2925 = vpop.f32.mrf.mxu0
      %v2926 = vpop.f32.mrf.mxu0
      %v2927 = vadd.f32 0.0, %v2926
      %v2928 = vpop.f32.mrf.mxu0
      %2929 = vmatprep.mubr.bf16.mxu0 0
      %2930 = vmatmul.mubr.bf16.gmra.mxu0 %v2802
      %v2931 = vpop.f32.mrf.mxu0
      %v2932 = vadd.f32 0.0, %v2931
      %v2933 = vpop.f32.mrf.mxu0
      %v2934 = vpop.f32.mrf.mxu0
      %v2935 = vadd.f32 0.0, %v2934
      %v2936 = vpop.f32.mrf.mxu0
      %2937 = vmatprep.mubr.bf16.mxu0 0
      %2938 = vmatmul.mubr.bf16.gmra.mxu0 %v2805
      %v2939 = vpop.f32.mrf.mxu0
      %v2940 = vadd.f32 0.0, %v2939
      %v2941 = vpop.f32.mrf.mxu0
      %v2942 = vpop.f32.mrf.mxu0
      %v2943 = vadd.f32 0.0, %v2942
      %v2944 = vpop.f32.mrf.mxu0
      %2945 = vmatprep.mubr.bf16.mxu0 0
      %2946 = vmatmul.mubr.bf16.gmra.mxu0 %v2808
      %v2947 = vpop.f32.mrf.mxu0
      %v2948 = vadd.f32 0.0, %v2947
      %v2949 = vpop.f32.mrf.mxu0
      %v2950 = vpop.f32.mrf.mxu0
      %v2951 = vadd.f32 0.0, %v2950
      %v2952 = vpop.f32.mrf.mxu0
      %2953 = vmatprep.mubr.bf16.mxu0 0
      %2954 = vmatmul.mubr.bf16.gmra.mxu0 %v2811
      %v2955 = vpop.f32.mrf.mxu0
      %v2956 = vadd.f32 0.0, %v2955
      %v2957 = vpop.f32.mrf.mxu0
      %v2958 = vpop.f32.mrf.mxu0
      %v2959 = vadd.f32 0.0, %v2958
      %v2960 = vpop.f32.mrf.mxu0
      %2961 = vmatprep.mubr.bf16.mxu0 0
      %2962 = vmatmul.mubr.bf16.gmra.mxu0 %v2814
      %v2963 = vpop.f32.mrf.mxu0
      %v2964 = vadd.f32 0.0, %v2963
      %v2965 = vpop.f32.mrf.mxu0
      %v2966 = vpop.f32.mrf.mxu0
      %v2967 = vadd.f32 0.0, %v2966
      %v2968 = vpop.f32.mrf.mxu0
      %2969 = vmatprep.mubr.bf16.mxu0 0
      %2970 = vmatmul.mubr.bf16.gmra.mxu0 %v2817
      %v2971 = vpop.f32.mrf.mxu0
      %v2972 = vadd.f32 0.0, %v2971
      %v2973 = vpop.f32.mrf.mxu0
      %v2974 = vpop.f32.mrf.mxu0
      %v2975 = vadd.f32 0.0, %v2974
      %v2976 = vpop.f32.mrf.mxu0
      %2977 = vmatprep.mubr.bf16.mxu0 0
      %2978 = vmatmul.mubr.bf16.gmra.mxu0 %v2820
      %v2979 = vpop.f32.mrf.mxu0
      %v2980 = vadd.f32 0.0, %v2979
      %v2981 = vpop.f32.mrf.mxu0
      %v2982 = vpop.f32.mrf.mxu0
      %v2983 = vadd.f32 0.0, %v2982
      %v2984 = vpop.f32.mrf.mxu0
      %2985 = vdwg.mxu0
      %v2986 = vadd.f32 %v2484, %v2860
      %v2987 = vadd.f32 %v2485, %v2863
      %v2988 = vadd.f32 %v2486, %v2868
      %v2989 = vadd.f32 %v2487, %v2871
      %v2990 = vadd.f32 %v2488, %v2876
      %v2991 = vadd.f32 %v2489, %v2879
      %v2992 = vadd.f32 %v2490, %v2884
      %v2993 = vadd.f32 %v2491, %v2887
      %v2994 = vadd.f32 %v2492, %v2892
      %v2995 = vadd.f32 %v2493, %v2895
      %v2996 = vadd.f32 %v2494, %v2900
      %v2997 = vadd.f32 %v2495, %v2903
      %v2998 = vadd.f32 %v2496, %v2908
      %v2999 = vadd.f32 %v2497, %v2911
      %v3000 = vadd.f32 %v2498, %v2916
      %v3001 = vadd.f32 %v2499, %v2919
      %v3002 = vadd.f32 %v2500, %v2924
      %v3003 = vadd.f32 %v2501, %v2927
      %v3004 = vadd.f32 %v2502, %v2932
      %v3005 = vadd.f32 %v2503, %v2935
      %v3006 = vadd.f32 %v2504, %v2940
      %v3007 = vadd.f32 %v2505, %v2943
      %v3008 = vadd.f32 %v2506, %v2948
      %v3009 = vadd.f32 %v2507, %v2951
      %v3010 = vadd.f32 %v2508, %v2956
      %v3011 = vadd.f32 %v2509, %v2959
      %v3012 = vadd.f32 %v2510, %v2964
      %v3013 = vadd.f32 %v2511, %v2967
      %v3014 = vadd.f32 %v2512, %v2972
      %v3015 = vadd.f32 %v2513, %v2975
      %v3016 = vadd.f32 %v2514, %v2980
      %v3017 = vadd.f32 %v2515, %v2983
      %v3018 = vld [vmem:[%s869] sm:$0xc]
      %v3019 = vld [vmem:[%s869 + $0x8] sm:$0x3]
      %v3020 = vld [vmem:[%s869 + $0xc] sm:$0xc]
      %v3021 = vld [vmem:[%s869 + $0x14] sm:$0x3]
      %v3022 = vld [vmem:[%s869 + $0x18] sm:$0xc]
      %v3023 = vld [vmem:[%s869 + $0x20] sm:$0x3]
      %v3024 = vld [vmem:[%s869 + $0x24] sm:$0xc]
      %v3025 = vld [vmem:[%s869 + $0x2c] sm:$0x3]
      %v3026 = vld [vmem:[%s869 + $0x30] sm:$0xc]
      %v3027 = vld [vmem:[%s869 + $0x38] sm:$0x3]
      %v3028 = vld [vmem:[%s869 + $0x3c] sm:$0xc]
      %v3029 = vld [vmem:[%s869 + $0x44] sm:$0x3]
      %v3030 = vld [vmem:[%s869 + $0x48] sm:$0xc]
      %v3031 = vld [vmem:[%s869 + $0x50] sm:$0x3]
      %v3032 = vld [vmem:[%s869 + $0x54] sm:$0xc]
      %v3033 = vld [vmem:[%s869 + $0x5c] sm:$0x3]
      %v3034 = vld [vmem:[%s869 + $0x60] sm:$0xc]
      %v3035 = vld [vmem:[%s869 + $0x68] sm:$0x3]
      %v3036 = vld [vmem:[%s869 + $0x6c] sm:$0xc]
      %v3037 = vld [vmem:[%s869 + $0x74] sm:$0x3]
      %v3038 = vld [vmem:[%s869 + $0x78] sm:$0xc]
      %v3039 = vld [vmem:[%s869 + $0x80] sm:$0x3]
      %v3040 = vld [vmem:[%s869 + $0x84] sm:$0xc]
      %v3041 = vld [vmem:[%s869 + $0x8c] sm:$0x3]
      %v3042 = vld [vmem:[%s869 + $0x90] sm:$0xc]
      %v3043 = vld [vmem:[%s869 + $0x98] sm:$0x3]
      %v3044 = vld [vmem:[%s869 + $0x9c] sm:$0xc]
      %v3045 = vld [vmem:[%s869 + $0xa4] sm:$0x3]
      %v3046 = vld [vmem:[%s869 + $0xa8] sm:$0xc]
      %v3047 = vld [vmem:[%s869 + $0xb0] sm:$0x3]
      %v3048 = vld [vmem:[%s869 + $0xb4] sm:$0xc]
      %v3049 = vld [vmem:[%s869 + $0xbc] sm:$0x3]
      %v3082 = vrot.slane %v3018, 6
      %v3083 = vrot.slane %v3082, 4
      %v3084 = vrot.slane %v2517, 6
      %v3085 = vsel %vm1751, %v3083, %v3084
      %v3086 = vrot.slane %v3084, 4
      %v3087 = vrot.slane %v3019, 6
      %v3088 = vsel %vm1751, %v3086, %v3087
      %v3089 = vrot.slane %v3020, 6
      %v3090 = vrot.slane %v3089, 4
      %v3091 = vrot.slane %v2520, 6
      %v3092 = vsel %vm1751, %v3090, %v3091
      %v3093 = vrot.slane %v3091, 4
      %v3094 = vrot.slane %v3021, 6
      %v3095 = vsel %vm1751, %v3093, %v3094
      %v3096 = vrot.slane %v3022, 6
      %v3097 = vrot.slane %v3096, 4
      %v3098 = vrot.slane %v2523, 6
      %v3099 = vsel %vm1751, %v3097, %v3098
      %v3100 = vrot.slane %v3098, 4
      %v3101 = vrot.slane %v3023, 6
      %v3102 = vsel %vm1751, %v3100, %v3101
      %v3103 = vrot.slane %v3024, 6
      %v3104 = vrot.slane %v3103, 4
      %v3105 = vrot.slane %v2526, 6
      %v3106 = vsel %vm1751, %v3104, %v3105
      %v3107 = vrot.slane %v3105, 4
      %v3108 = vrot.slane %v3025, 6
      %v3109 = vsel %vm1751, %v3107, %v3108
      %v3110 = vrot.slane %v3026, 6
      %v3111 = vrot.slane %v3110, 4
      %v3112 = vrot.slane %v2529, 6
      %v3113 = vsel %vm1751, %v3111, %v3112
      %v3114 = vrot.slane %v3112, 4
      %v3115 = vrot.slane %v3027, 6
      %v3116 = vsel %vm1751, %v3114, %v3115
      %v3117 = vrot.slane %v3028, 6
      %v3118 = vrot.slane %v3117, 4
      %v3119 = vrot.slane %v2532, 6
      %v3120 = vsel %vm1751, %v3118, %v3119
      %v3121 = vrot.slane %v3119, 4
      %v3122 = vrot.slane %v3029, 6
      %v3123 = vsel %vm1751, %v3121, %v3122
      %v3124 = vrot.slane %v3030, 6
      %v3125 = vrot.slane %v3124, 4
      %v3126 = vrot.slane %v2535, 6
      %v3127 = vsel %vm1751, %v3125, %v3126
      %v3128 = vrot.slane %v3126, 4
      %v3129 = vrot.slane %v3031, 6
      %v3130 = vsel %vm1751, %v3128, %v3129
      %v3131 = vrot.slane %v3032, 6
      %v3132 = vrot.slane %v3131, 4
      %v3133 = vrot.slane %v2538, 6
      %v3134 = vsel %vm1751, %v3132, %v3133
      %v3135 = vrot.slane %v3133, 4
      %v3136 = vrot.slane %v3033, 6
      %v3137 = vsel %vm1751, %v3135, %v3136
      %v3138 = vrot.slane %v3034, 6
      %v3139 = vrot.slane %v3138, 4
      %v3140 = vrot.slane %v2541, 6
      %v3141 = vsel %vm1751, %v3139, %v3140
      %v3142 = vrot.slane %v3140, 4
      %v3143 = vrot.slane %v3035, 6
      %v3144 = vsel %vm1751, %v3142, %v3143
      %v3145 = vrot.slane %v3036, 6
      %v3146 = vrot.slane %v3145, 4
      %v3147 = vrot.slane %v2544, 6
      %v3148 = vsel %vm1751, %v3146, %v3147
      %v3149 = vrot.slane %v3147, 4
      %v3150 = vrot.slane %v3037, 6
      %v3151 = vsel %vm1751, %v3149, %v3150
      %v3152 = vrot.slane %v3038, 6
      %v3153 = vrot.slane %v3152, 4
      %v3154 = vrot.slane %v2547, 6
      %v3155 = vsel %vm1751, %v3153, %v3154
      %v3156 = vrot.slane %v3154, 4
      %v3157 = vrot.slane %v3039, 6
      %v3158 = vsel %vm1751, %v3156, %v3157
      %v3159 = vrot.slane %v3040, 6
      %v3160 = vrot.slane %v3159, 4
      %v3161 = vrot.slane %v2550, 6
      %v3162 = vsel %vm1751, %v3160, %v3161
      %v3163 = vrot.slane %v3161, 4
      %v3164 = vrot.slane %v3041, 6
      %v3165 = vsel %vm1751, %v3163, %v3164
      %v3166 = vrot.slane %v3042, 6
      %v3167 = vrot.slane %v3166, 4
      %v3168 = vrot.slane %v2553, 6
      %v3169 = vsel %vm1751, %v3167, %v3168
      %v3170 = vrot.slane %v3168, 4
      %v3171 = vrot.slane %v3043, 6
      %v3172 = vsel %vm1751, %v3170, %v3171
      %v3173 = vrot.slane %v3044, 6
      %v3174 = vrot.slane %v3173, 4
      %v3175 = vrot.slane %v2556, 6
      %v3176 = vsel %vm1751, %v3174, %v3175
      %v3177 = vrot.slane %v3175, 4
      %v3178 = vrot.slane %v3045, 6
      %v3179 = vsel %vm1751, %v3177, %v3178
      %v3180 = vrot.slane %v3046, 6
      %v3181 = vrot.slane %v3180, 4
      %v3182 = vrot.slane %v2559, 6
      %v3183 = vsel %vm1751, %v3181, %v3182
      %v3184 = vrot.slane %v3182, 4
      %v3185 = vrot.slane %v3047, 6
      %v3186 = vsel %vm1751, %v3184, %v3185
      %v3187 = vrot.slane %v3048, 6
      %v3188 = vrot.slane %v3187, 4
      %v3189 = vrot.slane %v2562, 6
      %v3190 = vsel %vm1751, %v3188, %v3189
      %v3191 = vrot.slane %v3189, 4
      %v3192 = vrot.slane %v3049, 6
      %v3193 = vsel %vm1751, %v3191, %v3192
      %s3194 = scalar_lea.vmem %s2, 20
      %v3195 = vld [vmem:[%s3194] sm:$0xf]
      %v3196 = vunpack.c.l.b16 %v3085
      %v3197 = vunpack.c.l.b16 %v3088
      %v3198 = vunpack.c.l.b16 %v3092
      %v3199 = vunpack.c.l.b16 %v3095
      %v3200 = vunpack.c.l.b16 %v3099
      %v3201 = vunpack.c.l.b16 %v3102
      %v3202 = vunpack.c.l.b16 %v3106
      %v3203 = vunpack.c.l.b16 %v3109
      %v3204 = vunpack.c.l.b16 %v3113
      %v3205 = vunpack.c.l.b16 %v3116
      %v3206 = vunpack.c.l.b16 %v3120
      %v3207 = vunpack.c.l.b16 %v3123
      %v3208 = vunpack.c.l.b16 %v3127
      %v3209 = vunpack.c.l.b16 %v3130
      %v3210 = vunpack.c.l.b16 %v3134
      %v3211 = vunpack.c.l.b16 %v3137
      %v3212 = vunpack.c.l.b16 %v3141
      %v3213 = vunpack.c.l.b16 %v3144
      %v3214 = vunpack.c.l.b16 %v3148
      %v3215 = vunpack.c.l.b16 %v3151
      %v3216 = vunpack.c.l.b16 %v3155
      %v3217 = vunpack.c.l.b16 %v3158
      %v3218 = vunpack.c.l.b16 %v3162
      %v3219 = vunpack.c.l.b16 %v3165
      %v3220 = vunpack.c.l.b16 %v3169
      %v3221 = vunpack.c.l.b16 %v3172
      %v3222 = vunpack.c.l.b16 %v3176
      %v3223 = vunpack.c.l.b16 %v3179
      %v3224 = vunpack.c.l.b16 %v3183
      %v3225 = vunpack.c.l.b16 %v3186
      %v3226 = vunpack.c.l.b16 %v3190
      %v3227 = vunpack.c.l.b16 %v3193
      %v3228 = vpack.c.b16 %v3197, %v3196
      %v3229 = vpack.c.b16 %v3199, %v3198
      %v3230 = vpack.c.b16 %v3201, %v3200
      %v3231 = vpack.c.b16 %v3203, %v3202
      %v3232 = vpack.c.b16 %v3205, %v3204
      %v3233 = vpack.c.b16 %v3207, %v3206
      %v3234 = vpack.c.b16 %v3209, %v3208
      %v3235 = vpack.c.b16 %v3211, %v3210
      %v3236 = vpack.c.b16 %v3213, %v3212
      %v3237 = vpack.c.b16 %v3215, %v3214
      %v3238 = vpack.c.b16 %v3217, %v3216
      %v3239 = vpack.c.b16 %v3219, %v3218
      %v3240 = vpack.c.b16 %v3221, %v3220
      %v3241 = vpack.c.b16 %v3223, %v3222
      %v3242 = vpack.c.b16 %v3225, %v3224
      %v3243 = vpack.c.b16 %v3227, %v3226
      %v3245 = vsel %vm339, %v3228, 0
      %v3248 = vsel %vm339, %v3229, 0
      %v3251 = vsel %vm339, %v3230, 0
      %v3254 = vsel %vm339, %v3231, 0
      %v3257 = vsel %vm339, %v3232, 0
      %v3260 = vsel %vm339, %v3233, 0
      %v3263 = vsel %vm339, %v3234, 0
      %v3266 = vsel %vm339, %v3235, 0
      %v3269 = vsel %vm339, %v3236, 0
      %v3272 = vsel %vm339, %v3237, 0
      %v3275 = vsel %vm339, %v3238, 0
      %v3278 = vsel %vm339, %v3239, 0
      %v3281 = vsel %vm339, %v3240, 0
      %v3284 = vsel %vm339, %v3241, 0
      %v3287 = vsel %vm339, %v3242, 0
      %v3290 = vsel %vm339, %v3243, 0
      %v3293 = vsel %vm388, %v3195, 0
      %3295 = vmatprep.subr.bf16.mxu0 0
      %3296 = vmatpush1.bf16.msra.mxu0 0
      %3297 = vmatprep.subr.bf16.mxu0 0
      %3298 = vmatpush1.bf16.msra.mxu0 0
      %3299 = vmatprep.subr.bf16.mxu0 0
      %3300 = vmatpush1.bf16.msra.mxu0 0
      %3301 = vmatprep.subr.bf16.mxu0 0
      %3302 = vmatpush1.bf16.msra.mxu0 0
      %3303 = vmatprep.subr.bf16.mxu0 0
      %3304 = vmatpush1.bf16.msra.mxu0 0
      %3305 = vmatprep.subr.bf16.mxu0 0
      %3306 = vmatpush1.bf16.msra.mxu0 0
      %3307 = vmatprep.subr.bf16.mxu0 0
      %3308 = vmatpush1.bf16.msra.mxu0 0
      %3309 = vmatprep.subr.bf16.mxu0 0
      %3310 = vmatpush1.bf16.msra.mxu0 %v3293
      %3311 = vmatprep.subr.bf16.mxu0 0
      %3312 = vmatpush2.bf16.msra.mxu0 0
      %3313 = vmatprep.subr.bf16.mxu0 0
      %3314 = vmatpush2.bf16.msra.mxu0 0
      %3315 = vmatprep.subr.bf16.mxu0 0
      %3316 = vmatpush2.bf16.msra.mxu0 0
      %3317 = vmatprep.subr.bf16.mxu0 0
      %3318 = vmatpush2.bf16.msra.mxu0 0
      %3319 = vmatprep.subr.bf16.mxu0 0
      %3320 = vmatpush2.bf16.msra.mxu0 0
      %3321 = vmatprep.subr.bf16.mxu0 0
      %3322 = vmatpush2.bf16.msra.mxu0 0
      %3323 = vmatprep.subr.bf16.mxu0 0
      %3324 = vmatpush2.bf16.msra.mxu0 0
      %3325 = vmatprep.subr.bf16.mxu0 0
      %3326 = vmatpush2.bf16.msra.mxu0 0
      %3327 = vmatprep.mubr.bf16.mxu0 0
      %3328 = vmatmul.mubr.bf16.gmra.mxu0 %v3245
      %v3329 = vpop.f32.mrf.mxu0
      %v3330 = vadd.f32 0.0, %v3329
      %v3331 = vpop.f32.mrf.mxu0
      %v3332 = vpop.f32.mrf.mxu0
      %v3333 = vadd.f32 0.0, %v3332
      %v3334 = vpop.f32.mrf.mxu0
      %3335 = vmatprep.mubr.bf16.mxu0 0
      %3336 = vmatmul.mubr.bf16.gmra.mxu0 %v3248
      %v3337 = vpop.f32.mrf.mxu0
      %v3338 = vadd.f32 0.0, %v3337
      %v3339 = vpop.f32.mrf.mxu0
      %v3340 = vpop.f32.mrf.mxu0
      %v3341 = vadd.f32 0.0, %v3340
      %v3342 = vpop.f32.mrf.mxu0
      %3343 = vmatprep.mubr.bf16.mxu0 0
      %3344 = vmatmul.mubr.bf16.gmra.mxu0 %v3251
      %v3345 = vpop.f32.mrf.mxu0
      %v3346 = vadd.f32 0.0, %v3345
      %v3347 = vpop.f32.mrf.mxu0
      %v3348 = vpop.f32.mrf.mxu0
      %v3349 = vadd.f32 0.0, %v3348
      %v3350 = vpop.f32.mrf.mxu0
      %3351 = vmatprep.mubr.bf16.mxu0 0
      %3352 = vmatmul.mubr.bf16.gmra.mxu0 %v3254
      %v3353 = vpop.f32.mrf.mxu0
      %v3354 = vadd.f32 0.0, %v3353
      %v3355 = vpop.f32.mrf.mxu0
      %v3356 = vpop.f32.mrf.mxu0
      %v3357 = vadd.f32 0.0, %v3356
      %v3358 = vpop.f32.mrf.mxu0
      %3359 = vmatprep.mubr.bf16.mxu0 0
      %3360 = vmatmul.mubr.bf16.gmra.mxu0 %v3257
      %v3361 = vpop.f32.mrf.mxu0
      %v3362 = vadd.f32 0.0, %v3361
      %v3363 = vpop.f32.mrf.mxu0
      %v3364 = vpop.f32.mrf.mxu0
      %v3365 = vadd.f32 0.0, %v3364
      %v3366 = vpop.f32.mrf.mxu0
      %3367 = vmatprep.mubr.bf16.mxu0 0
      %3368 = vmatmul.mubr.bf16.gmra.mxu0 %v3260
      %v3369 = vpop.f32.mrf.mxu0
      %v3370 = vadd.f32 0.0, %v3369
      %v3371 = vpop.f32.mrf.mxu0
      %v3372 = vpop.f32.mrf.mxu0
      %v3373 = vadd.f32 0.0, %v3372
      %v3374 = vpop.f32.mrf.mxu0
      %3375 = vmatprep.mubr.bf16.mxu0 0
      %3376 = vmatmul.mubr.bf16.gmra.mxu0 %v3263
      %v3377 = vpop.f32.mrf.mxu0
      %v3378 = vadd.f32 0.0, %v3377
      %v3379 = vpop.f32.mrf.mxu0
      %v3380 = vpop.f32.mrf.mxu0
      %v3381 = vadd.f32 0.0, %v3380
      %v3382 = vpop.f32.mrf.mxu0
      %3383 = vmatprep.mubr.bf16.mxu0 0
      %3384 = vmatmul.mubr.bf16.gmra.mxu0 %v3266
      %v3385 = vpop.f32.mrf.mxu0
      %v3386 = vadd.f32 0.0, %v3385
      %v3387 = vpop.f32.mrf.mxu0
      %v3388 = vpop.f32.mrf.mxu0
      %v3389 = vadd.f32 0.0, %v3388
      %v3390 = vpop.f32.mrf.mxu0
      %3391 = vmatprep.mubr.bf16.mxu0 0
      %3392 = vmatmul.mubr.bf16.gmra.mxu0 %v3269
      %v3393 = vpop.f32.mrf.mxu0
      %v3394 = vadd.f32 0.0, %v3393
      %v3395 = vpop.f32.mrf.mxu0
      %v3396 = vpop.f32.mrf.mxu0
      %v3397 = vadd.f32 0.0, %v3396
      %v3398 = vpop.f32.mrf.mxu0
      %3399 = vmatprep.mubr.bf16.mxu0 0
      %3400 = vmatmul.mubr.bf16.gmra.mxu0 %v3272
      %v3401 = vpop.f32.mrf.mxu0
      %v3402 = vadd.f32 0.0, %v3401
      %v3403 = vpop.f32.mrf.mxu0
      %v3404 = vpop.f32.mrf.mxu0
      %v3405 = vadd.f32 0.0, %v3404
      %v3406 = vpop.f32.mrf.mxu0
      %3407 = vmatprep.mubr.bf16.mxu0 0
      %3408 = vmatmul.mubr.bf16.gmra.mxu0 %v3275
      %v3409 = vpop.f32.mrf.mxu0
      %v3410 = vadd.f32 0.0, %v3409
      %v3411 = vpop.f32.mrf.mxu0
      %v3412 = vpop.f32.mrf.mxu0
      %v3413 = vadd.f32 0.0, %v3412
      %v3414 = vpop.f32.mrf.mxu0
      %3415 = vmatprep.mubr.bf16.mxu0 0
      %3416 = vmatmul.mubr.bf16.gmra.mxu0 %v3278
      %v3417 = vpop.f32.mrf.mxu0
      %v3418 = vadd.f32 0.0, %v3417
      %v3419 = vpop.f32.mrf.mxu0
      %v3420 = vpop.f32.mrf.mxu0
      %v3421 = vadd.f32 0.0, %v3420
      %v3422 = vpop.f32.mrf.mxu0
      %3423 = vmatprep.mubr.bf16.mxu0 0
      %3424 = vmatmul.mubr.bf16.gmra.mxu0 %v3281
      %v3425 = vpop.f32.mrf.mxu0
      %v3426 = vadd.f32 0.0, %v3425
      %v3427 = vpop.f32.mrf.mxu0
      %v3428 = vpop.f32.mrf.mxu0
      %v3429 = vadd.f32 0.0, %v3428
      %v3430 = vpop.f32.mrf.mxu0
      %3431 = vmatprep.mubr.bf16.mxu0 0
      %3432 = vmatmul.mubr.bf16.gmra.mxu0 %v3284
      %v3433 = vpop.f32.mrf.mxu0
      %v3434 = vadd.f32 0.0, %v3433
      %v3435 = vpop.f32.mrf.mxu0
      %v3436 = vpop.f32.mrf.mxu0
      %v3437 = vadd.f32 0.0, %v3436
      %v3438 = vpop.f32.mrf.mxu0
      %3439 = vmatprep.mubr.bf16.mxu0 0
      %3440 = vmatmul.mubr.bf16.gmra.mxu0 %v3287
      %v3441 = vpop.f32.mrf.mxu0
      %v3442 = vadd.f32 0.0, %v3441
      %v3443 = vpop.f32.mrf.mxu0
      %v3444 = vpop.f32.mrf.mxu0
      %v3445 = vadd.f32 0.0, %v3444
      %v3446 = vpop.f32.mrf.mxu0
      %3447 = vmatprep.mubr.bf16.mxu0 0
      %3448 = vmatmul.mubr.bf16.gmra.mxu0 %v3290
      %v3449 = vpop.f32.mrf.mxu0
      %v3450 = vadd.f32 0.0, %v3449
      %v3451 = vpop.f32.mrf.mxu0
      %v3452 = vpop.f32.mrf.mxu0
      %v3453 = vadd.f32 0.0, %v3452
      %v3454 = vpop.f32.mrf.mxu0
      %3455 = vdwg.mxu0
      %v3456 = vadd.f32 %v2986, %v3330
      %v3457 = vadd.f32 %v2987, %v3333
      %v3458 = vadd.f32 %v2988, %v3338
      %v3459 = vadd.f32 %v2989, %v3341
      %v3460 = vadd.f32 %v2990, %v3346
      %v3461 = vadd.f32 %v2991, %v3349
      %v3462 = vadd.f32 %v2992, %v3354
      %v3463 = vadd.f32 %v2993, %v3357
      %v3464 = vadd.f32 %v2994, %v3362
      %v3465 = vadd.f32 %v2995, %v3365
      %v3466 = vadd.f32 %v2996, %v3370
      %v3467 = vadd.f32 %v2997, %v3373
      %v3468 = vadd.f32 %v2998, %v3378
      %v3469 = vadd.f32 %v2999, %v3381
      %v3470 = vadd.f32 %v3000, %v3386
      %v3471 = vadd.f32 %v3001, %v3389
      %v3472 = vadd.f32 %v3002, %v3394
      %v3473 = vadd.f32 %v3003, %v3397
      %v3474 = vadd.f32 %v3004, %v3402
      %v3475 = vadd.f32 %v3005, %v3405
      %v3476 = vadd.f32 %v3006, %v3410
      %v3477 = vadd.f32 %v3007, %v3413
      %v3478 = vadd.f32 %v3008, %v3418
      %v3479 = vadd.f32 %v3009, %v3421
      %v3480 = vadd.f32 %v3010, %v3426
      %v3481 = vadd.f32 %v3011, %v3429
      %v3482 = vadd.f32 %v3012, %v3434
      %v3483 = vadd.f32 %v3013, %v3437
      %v3484 = vadd.f32 %v3014, %v3442
      %v3485 = vadd.f32 %v3015, %v3445
      %v3486 = vadd.f32 %v3016, %v3450
      %v3487 = vadd.f32 %v3017, %v3453
      %s3488 = scalar_lea.vmem [#allocation2], 48
      %v3489 = vld [vmem:[%s3488] sm:$0xf]
      %v3490 = vld [vmem:[%s3488 + $0x4] sm:$0xf]
      %v3491 = vld [vmem:[%s3488 + $0xc] sm:$0xf]
      %v3492 = vld [vmem:[%s3488 + $0x10] sm:$0xf]
      %v3493 = vld [vmem:[%s3488 + $0x18] sm:$0xf]
      %v3494 = vld [vmem:[%s3488 + $0x1c] sm:$0xf]
      %v3495 = vld [vmem:[%s3488 + $0x24] sm:$0xf]
      %v3496 = vld [vmem:[%s3488 + $0x28] sm:$0xf]
      %v3497 = vld [vmem:[%s3488 + $0x30] sm:$0xf]
      %v3498 = vld [vmem:[%s3488 + $0x34] sm:$0xf]
      %v3499 = vld [vmem:[%s3488 + $0x3c] sm:$0xf]
      %v3500 = vld [vmem:[%s3488 + $0x40] sm:$0xf]
      %v3501 = vld [vmem:[%s3488 + $0x48] sm:$0xf]
      %v3502 = vld [vmem:[%s3488 + $0x4c] sm:$0xf]
      %v3503 = vld [vmem:[%s3488 + $0x54] sm:$0xf]
      %v3504 = vld [vmem:[%s3488 + $0x58] sm:$0xf]
      %v3505 = vld [vmem:[%s3488 + $0x60] sm:$0xf]
      %v3506 = vld [vmem:[%s3488 + $0x64] sm:$0xf]
      %v3507 = vld [vmem:[%s3488 + $0x6c] sm:$0xf]
      %v3508 = vld [vmem:[%s3488 + $0x70] sm:$0xf]
      %v3509 = vld [vmem:[%s3488 + $0x78] sm:$0xf]
      %v3510 = vld [vmem:[%s3488 + $0x7c] sm:$0xf]
      %v3511 = vld [vmem:[%s3488 + $0x84] sm:$0xf]
      %v3512 = vld [vmem:[%s3488 + $0x88] sm:$0xf]
      %v3513 = vld [vmem:[%s3488 + $0x90] sm:$0xf]
      %v3514 = vld [vmem:[%s3488 + $0x94] sm:$0xf]
      %v3515 = vld [vmem:[%s3488 + $0x9c] sm:$0xf]
      %v3516 = vld [vmem:[%s3488 + $0xa0] sm:$0xf]
      %v3517 = vld [vmem:[%s3488 + $0xa8] sm:$0xf]
      %v3518 = vld [vmem:[%s3488 + $0xac] sm:$0xf]
      %v3519 = vld [vmem:[%s3488 + $0xb4] sm:$0xf]
      %v3520 = vld [vmem:[%s3488 + $0xb8] sm:$0xf]
      %s3521 = scalar_lea.vmem %s2, 24
      %v3522 = vld [vmem:[%s3521] sm:$0xf]
      %v3555 = vunpack.c.l.b16 %v3489
      %v3556 = vunpack.c.l.b16 %v3490
      %v3557 = vunpack.c.l.b16 %v3491
      %v3558 = vunpack.c.l.b16 %v3492
      %v3559 = vunpack.c.l.b16 %v3493
      %v3560 = vunpack.c.l.b16 %v3494
      %v3561 = vunpack.c.l.b16 %v3495
      %v3562 = vunpack.c.l.b16 %v3496
      %v3563 = vunpack.c.l.b16 %v3497
      %v3564 = vunpack.c.l.b16 %v3498
      %v3565 = vunpack.c.l.b16 %v3499
      %v3566 = vunpack.c.l.b16 %v3500
      %v3567 = vunpack.c.l.b16 %v3501
      %v3568 = vunpack.c.l.b16 %v3502
      %v3569 = vunpack.c.l.b16 %v3503
      %v3570 = vunpack.c.l.b16 %v3504
      %v3571 = vunpack.c.l.b16 %v3505
      %v3572 = vunpack.c.l.b16 %v3506
      %v3573 = vunpack.c.l.b16 %v3507
      %v3574 = vunpack.c.l.b16 %v3508
      %v3575 = vunpack.c.l.b16 %v3509
      %v3576 = vunpack.c.l.b16 %v3510
      %v3577 = vunpack.c.l.b16 %v3511
      %v3578 = vunpack.c.l.b16 %v3512
      %v3579 = vunpack.c.l.b16 %v3513
      %v3580 = vunpack.c.l.b16 %v3514
      %v3581 = vunpack.c.l.b16 %v3515
      %v3582 = vunpack.c.l.b16 %v3516
      %v3583 = vunpack.c.l.b16 %v3517
      %v3584 = vunpack.c.l.b16 %v3518
      %v3585 = vunpack.c.l.b16 %v3519
      %v3586 = vunpack.c.l.b16 %v3520
      %v3587 = vpack.c.b16 %v3556, %v3555
      %v3588 = vpack.c.b16 %v3558, %v3557
      %v3589 = vpack.c.b16 %v3560, %v3559
      %v3590 = vpack.c.b16 %v3562, %v3561
      %v3591 = vpack.c.b16 %v3564, %v3563
      %v3592 = vpack.c.b16 %v3566, %v3565
      %v3593 = vpack.c.b16 %v3568, %v3567
      %v3594 = vpack.c.b16 %v3570, %v3569
      %v3595 = vpack.c.b16 %v3572, %v3571
      %v3596 = vpack.c.b16 %v3574, %v3573
      %v3597 = vpack.c.b16 %v3576, %v3575
      %v3598 = vpack.c.b16 %v3578, %v3577
      %v3599 = vpack.c.b16 %v3580, %v3579
      %v3600 = vpack.c.b16 %v3582, %v3581
      %v3601 = vpack.c.b16 %v3584, %v3583
      %v3602 = vpack.c.b16 %v3586, %v3585
      %v3604 = vsel %vm339, %v3587, 0
      %v3607 = vsel %vm339, %v3588, 0
      %v3610 = vsel %vm339, %v3589, 0
      %v3613 = vsel %vm339, %v3590, 0
      %v3616 = vsel %vm339, %v3591, 0
      %v3619 = vsel %vm339, %v3592, 0
      %v3622 = vsel %vm339, %v3593, 0
      %v3625 = vsel %vm339, %v3594, 0
      %v3628 = vsel %vm339, %v3595, 0
      %v3631 = vsel %vm339, %v3596, 0
      %v3634 = vsel %vm339, %v3597, 0
      %v3637 = vsel %vm339, %v3598, 0
      %v3640 = vsel %vm339, %v3599, 0
      %v3643 = vsel %vm339, %v3600, 0
      %v3646 = vsel %vm339, %v3601, 0
      %v3649 = vsel %vm339, %v3602, 0
      %v3652 = vsel %vm388, %v3522, 0
      %3654 = vmatprep.subr.bf16.mxu0 0
      %3655 = vmatpush1.bf16.msra.mxu0 0
      %3656 = vmatprep.subr.bf16.mxu0 0
      %3657 = vmatpush1.bf16.msra.mxu0 0
      %3658 = vmatprep.subr.bf16.mxu0 0
      %3659 = vmatpush1.bf16.msra.mxu0 0
      %3660 = vmatprep.subr.bf16.mxu0 0
      %3661 = vmatpush1.bf16.msra.mxu0 0
      %3662 = vmatprep.subr.bf16.mxu0 0
      %3663 = vmatpush1.bf16.msra.mxu0 0
      %3664 = vmatprep.subr.bf16.mxu0 0
      %3665 = vmatpush1.bf16.msra.mxu0 0
      %3666 = vmatprep.subr.bf16.mxu0 0
      %3667 = vmatpush1.bf16.msra.mxu0 0
      %3668 = vmatprep.subr.bf16.mxu0 0
      %3669 = vmatpush1.bf16.msra.mxu0 %v3652
      %3670 = vmatprep.subr.bf16.mxu0 0
      %3671 = vmatpush2.bf16.msra.mxu0 0
      %3672 = vmatprep.subr.bf16.mxu0 0
      %3673 = vmatpush2.bf16.msra.mxu0 0
      %3674 = vmatprep.subr.bf16.mxu0 0
      %3675 = vmatpush2.bf16.msra.mxu0 0
      %3676 = vmatprep.subr.bf16.mxu0 0
      %3677 = vmatpush2.bf16.msra.mxu0 0
      %3678 = vmatprep.subr.bf16.mxu0 0
      %3679 = vmatpush2.bf16.msra.mxu0 0
      %3680 = vmatprep.subr.bf16.mxu0 0
      %3681 = vmatpush2.bf16.msra.mxu0 0
      %3682 = vmatprep.subr.bf16.mxu0 0
      %3683 = vmatpush2.bf16.msra.mxu0 0
      %3684 = vmatprep.subr.bf16.mxu0 0
      %3685 = vmatpush2.bf16.msra.mxu0 0
      %3686 = vmatprep.mubr.bf16.mxu0 0
      %3687 = vmatmul.mubr.bf16.gmra.mxu0 %v3604
      %v3688 = vpop.f32.mrf.mxu0
      %v3689 = vadd.f32 0.0, %v3688
      %v3690 = vpop.f32.mrf.mxu0
      %v3691 = vpop.f32.mrf.mxu0
      %v3692 = vadd.f32 0.0, %v3691
      %v3693 = vpop.f32.mrf.mxu0
      %3694 = vmatprep.mubr.bf16.mxu0 0
      %3695 = vmatmul.mubr.bf16.gmra.mxu0 %v3607
      %v3696 = vpop.f32.mrf.mxu0
      %v3697 = vadd.f32 0.0, %v3696
      %v3698 = vpop.f32.mrf.mxu0
      %v3699 = vpop.f32.mrf.mxu0
      %v3700 = vadd.f32 0.0, %v3699
      %v3701 = vpop.f32.mrf.mxu0
      %3702 = vmatprep.mubr.bf16.mxu0 0
      %3703 = vmatmul.mubr.bf16.gmra.mxu0 %v3610
      %v3704 = vpop.f32.mrf.mxu0
      %v3705 = vadd.f32 0.0, %v3704
      %v3706 = vpop.f32.mrf.mxu0
      %v3707 = vpop.f32.mrf.mxu0
      %v3708 = vadd.f32 0.0, %v3707
      %v3709 = vpop.f32.mrf.mxu0
      %3710 = vmatprep.mubr.bf16.mxu0 0
      %3711 = vmatmul.mubr.bf16.gmra.mxu0 %v3613
      %v3712 = vpop.f32.mrf.mxu0
      %v3713 = vadd.f32 0.0, %v3712
      %v3714 = vpop.f32.mrf.mxu0
      %v3715 = vpop.f32.mrf.mxu0
      %v3716 = vadd.f32 0.0, %v3715
      %v3717 = vpop.f32.mrf.mxu0
      %3718 = vmatprep.mubr.bf16.mxu0 0
      %3719 = vmatmul.mubr.bf16.gmra.mxu0 %v3616
      %v3720 = vpop.f32.mrf.mxu0
      %v3721 = vadd.f32 0.0, %v3720
      %v3722 = vpop.f32.mrf.mxu0
      %v3723 = vpop.f32.mrf.mxu0
      %v3724 = vadd.f32 0.0, %v3723
      %v3725 = vpop.f32.mrf.mxu0
      %3726 = vmatprep.mubr.bf16.mxu0 0
      %3727 = vmatmul.mubr.bf16.gmra.mxu0 %v3619
      %v3728 = vpop.f32.mrf.mxu0
      %v3729 = vadd.f32 0.0, %v3728
      %v3730 = vpop.f32.mrf.mxu0
      %v3731 = vpop.f32.mrf.mxu0
      %v3732 = vadd.f32 0.0, %v3731
      %v3733 = vpop.f32.mrf.mxu0
      %3734 = vmatprep.mubr.bf16.mxu0 0
      %3735 = vmatmul.mubr.bf16.gmra.mxu0 %v3622
      %v3736 = vpop.f32.mrf.mxu0
      %v3737 = vadd.f32 0.0, %v3736
      %v3738 = vpop.f32.mrf.mxu0
      %v3739 = vpop.f32.mrf.mxu0
      %v3740 = vadd.f32 0.0, %v3739
      %v3741 = vpop.f32.mrf.mxu0
      %3742 = vmatprep.mubr.bf16.mxu0 0
      %3743 = vmatmul.mubr.bf16.gmra.mxu0 %v3625
      %v3744 = vpop.f32.mrf.mxu0
      %v3745 = vadd.f32 0.0, %v3744
      %v3746 = vpop.f32.mrf.mxu0
      %v3747 = vpop.f32.mrf.mxu0
      %v3748 = vadd.f32 0.0, %v3747
      %v3749 = vpop.f32.mrf.mxu0
      %3750 = vmatprep.mubr.bf16.mxu0 0
      %3751 = vmatmul.mubr.bf16.gmra.mxu0 %v3628
      %v3752 = vpop.f32.mrf.mxu0
      %v3753 = vadd.f32 0.0, %v3752
      %v3754 = vpop.f32.mrf.mxu0
      %v3755 = vpop.f32.mrf.mxu0
      %v3756 = vadd.f32 0.0, %v3755
      %v3757 = vpop.f32.mrf.mxu0
      %3758 = vmatprep.mubr.bf16.mxu0 0
      %3759 = vmatmul.mubr.bf16.gmra.mxu0 %v3631
      %v3760 = vpop.f32.mrf.mxu0
      %v3761 = vadd.f32 0.0, %v3760
      %v3762 = vpop.f32.mrf.mxu0
      %v3763 = vpop.f32.mrf.mxu0
      %v3764 = vadd.f32 0.0, %v3763
      %v3765 = vpop.f32.mrf.mxu0
      %3766 = vmatprep.mubr.bf16.mxu0 0
      %3767 = vmatmul.mubr.bf16.gmra.mxu0 %v3634
      %v3768 = vpop.f32.mrf.mxu0
      %v3769 = vadd.f32 0.0, %v3768
      %v3770 = vpop.f32.mrf.mxu0
      %v3771 = vpop.f32.mrf.mxu0
      %v3772 = vadd.f32 0.0, %v3771
      %v3773 = vpop.f32.mrf.mxu0
      %3774 = vmatprep.mubr.bf16.mxu0 0
      %3775 = vmatmul.mubr.bf16.gmra.mxu0 %v3637
      %v3776 = vpop.f32.mrf.mxu0
      %v3777 = vadd.f32 0.0, %v3776
      %v3778 = vpop.f32.mrf.mxu0
      %v3779 = vpop.f32.mrf.mxu0
      %v3780 = vadd.f32 0.0, %v3779
      %v3781 = vpop.f32.mrf.mxu0
      %3782 = vmatprep.mubr.bf16.mxu0 0
      %3783 = vmatmul.mubr.bf16.gmra.mxu0 %v3640
      %v3784 = vpop.f32.mrf.mxu0
      %v3785 = vadd.f32 0.0, %v3784
      %v3786 = vpop.f32.mrf.mxu0
      %v3787 = vpop.f32.mrf.mxu0
      %v3788 = vadd.f32 0.0, %v3787
      %v3789 = vpop.f32.mrf.mxu0
      %3790 = vmatprep.mubr.bf16.mxu0 0
      %3791 = vmatmul.mubr.bf16.gmra.mxu0 %v3643
      %v3792 = vpop.f32.mrf.mxu0
      %v3793 = vadd.f32 0.0, %v3792
      %v3794 = vpop.f32.mrf.mxu0
      %v3795 = vpop.f32.mrf.mxu0
      %v3796 = vadd.f32 0.0, %v3795
      %v3797 = vpop.f32.mrf.mxu0
      %3798 = vmatprep.mubr.bf16.mxu0 0
      %3799 = vmatmul.mubr.bf16.gmra.mxu0 %v3646
      %v3800 = vpop.f32.mrf.mxu0
      %v3801 = vadd.f32 0.0, %v3800
      %v3802 = vpop.f32.mrf.mxu0
      %v3803 = vpop.f32.mrf.mxu0
      %v3804 = vadd.f32 0.0, %v3803
      %v3805 = vpop.f32.mrf.mxu0
      %3806 = vmatprep.mubr.bf16.mxu0 0
      %3807 = vmatmul.mubr.bf16.gmra.mxu0 %v3649
      %v3808 = vpop.f32.mrf.mxu0
      %v3809 = vadd.f32 0.0, %v3808
      %v3810 = vpop.f32.mrf.mxu0
      %v3811 = vpop.f32.mrf.mxu0
      %v3812 = vadd.f32 0.0, %v3811
      %v3813 = vpop.f32.mrf.mxu0
      %3814 = vdwg.mxu0
      %v3815 = vadd.f32 %v3456, %v3689
      %v3816 = vadd.f32 %v3457, %v3692
      %v3817 = vadd.f32 %v3458, %v3697
      %v3818 = vadd.f32 %v3459, %v3700
      %v3819 = vadd.f32 %v3460, %v3705
      %v3820 = vadd.f32 %v3461, %v3708
      %v3821 = vadd.f32 %v3462, %v3713
      %v3822 = vadd.f32 %v3463, %v3716
      %v3823 = vadd.f32 %v3464, %v3721
      %v3824 = vadd.f32 %v3465, %v3724
      %v3825 = vadd.f32 %v3466, %v3729
      %v3826 = vadd.f32 %v3467, %v3732
      %v3827 = vadd.f32 %v3468, %v3737
      %v3828 = vadd.f32 %v3469, %v3740
      %v3829 = vadd.f32 %v3470, %v3745
      %v3830 = vadd.f32 %v3471, %v3748
      %v3831 = vadd.f32 %v3472, %v3753
      %v3832 = vadd.f32 %v3473, %v3756
      %v3833 = vadd.f32 %v3474, %v3761
      %v3834 = vadd.f32 %v3475, %v3764
      %v3835 = vadd.f32 %v3476, %v3769
      %v3836 = vadd.f32 %v3477, %v3772
      %v3837 = vadd.f32 %v3478, %v3777
      %v3838 = vadd.f32 %v3479, %v3780
      %v3839 = vadd.f32 %v3480, %v3785
      %v3840 = vadd.f32 %v3481, %v3788
      %v3841 = vadd.f32 %v3482, %v3793
      %v3842 = vadd.f32 %v3483, %v3796
      %v3843 = vadd.f32 %v3484, %v3801
      %v3844 = vadd.f32 %v3485, %v3804
      %v3845 = vadd.f32 %v3486, %v3809
      %v3846 = vadd.f32 %v3487, %v3812
      %v3847 = vld [vmem:[%s3488] sm:$0xe]
      %v3848 = vld [vmem:[%s3488 + $0x4] sm:$0xf]
      %v3849 = vld [vmem:[%s3488 + $0x8] sm:$0x1]
      %v3850 = vld [vmem:[%s3488 + $0xc] sm:$0xe]
      %v3851 = vld [vmem:[%s3488 + $0x10] sm:$0xf]
      %v3852 = vld [vmem:[%s3488 + $0x14] sm:$0x1]
      %v3853 = vld [vmem:[%s3488 + $0x18] sm:$0xe]
      %v3854 = vld [vmem:[%s3488 + $0x1c] sm:$0xf]
      %v3855 = vld [vmem:[%s3488 + $0x20] sm:$0x1]
      %v3856 = vld [vmem:[%s3488 + $0x24] sm:$0xe]
      %v3857 = vld [vmem:[%s3488 + $0x28] sm:$0xf]
      %v3858 = vld [vmem:[%s3488 + $0x2c] sm:$0x1]
      %v3859 = vld [vmem:[%s3488 + $0x30] sm:$0xe]
      %v3860 = vld [vmem:[%s3488 + $0x34] sm:$0xf]
      %v3861 = vld [vmem:[%s3488 + $0x38] sm:$0x1]
      %v3862 = vld [vmem:[%s3488 + $0x3c] sm:$0xe]
      %v3863 = vld [vmem:[%s3488 + $0x40] sm:$0xf]
      %v3864 = vld [vmem:[%s3488 + $0x44] sm:$0x1]
      %v3865 = vld [vmem:[%s3488 + $0x48] sm:$0xe]
      %v3866 = vld [vmem:[%s3488 + $0x4c] sm:$0xf]
      %v3867 = vld [vmem:[%s3488 + $0x50] sm:$0x1]
      %v3868 = vld [vmem:[%s3488 + $0x54] sm:$0xe]
      %v3869 = vld [vmem:[%s3488 + $0x58] sm:$0xf]
      %v3870 = vld [vmem:[%s3488 + $0x5c] sm:$0x1]
      %v3871 = vld [vmem:[%s3488 + $0x60] sm:$0xe]
      %v3872 = vld [vmem:[%s3488 + $0x64] sm:$0xf]
      %v3873 = vld [vmem:[%s3488 + $0x68] sm:$0x1]
      %v3874 = vld [vmem:[%s3488 + $0x6c] sm:$0xe]
      %v3875 = vld [vmem:[%s3488 + $0x70] sm:$0xf]
      %v3876 = vld [vmem:[%s3488 + $0x74] sm:$0x1]
      %v3877 = vld [vmem:[%s3488 + $0x78] sm:$0xe]
      %v3878 = vld [vmem:[%s3488 + $0x7c] sm:$0xf]
      %v3879 = vld [vmem:[%s3488 + $0x80] sm:$0x1]
      %v3880 = vld [vmem:[%s3488 + $0x84] sm:$0xe]
      %v3881 = vld [vmem:[%s3488 + $0x88] sm:$0xf]
      %v3882 = vld [vmem:[%s3488 + $0x8c] sm:$0x1]
      %v3883 = vld [vmem:[%s3488 + $0x90] sm:$0xe]
      %v3884 = vld [vmem:[%s3488 + $0x94] sm:$0xf]
      %v3885 = vld [vmem:[%s3488 + $0x98] sm:$0x1]
      %v3886 = vld [vmem:[%s3488 + $0x9c] sm:$0xe]
      %v3887 = vld [vmem:[%s3488 + $0xa0] sm:$0xf]
      %v3888 = vld [vmem:[%s3488 + $0xa4] sm:$0x1]
      %v3889 = vld [vmem:[%s3488 + $0xa8] sm:$0xe]
      %v3890 = vld [vmem:[%s3488 + $0xac] sm:$0xf]
      %v3891 = vld [vmem:[%s3488 + $0xb0] sm:$0x1]
      %v3892 = vld [vmem:[%s3488 + $0xb4] sm:$0xe]
      %v3893 = vld [vmem:[%s3488 + $0xb8] sm:$0xf]
      %v3894 = vld [vmem:[%s3488 + $0xbc] sm:$0x1]
      %v3943 = vrot.slane %v3847, 5
      %v3944 = vrot.slane %v3943, 4
      %v3945 = vrot.slane %v3848, 5
      %v3946 = vsel %vm1034, %v3944, %v3945
      %v3947 = vrot.slane %v3945, 4
      %v3948 = vrot.slane %v3849, 5
      %v3949 = vsel %vm1034, %v3947, %v3948
      %v3950 = vrot.slane %v3850, 5
      %v3951 = vrot.slane %v3950, 4
      %v3952 = vrot.slane %v3851, 5
      %v3953 = vsel %vm1034, %v3951, %v3952
      %v3954 = vrot.slane %v3952, 4
      %v3955 = vrot.slane %v3852, 5
      %v3956 = vsel %vm1034, %v3954, %v3955
      %v3957 = vrot.slane %v3853, 5
      %v3958 = vrot.slane %v3957, 4
      %v3959 = vrot.slane %v3854, 5
      %v3960 = vsel %vm1034, %v3958, %v3959
      %v3961 = vrot.slane %v3959, 4
      %v3962 = vrot.slane %v3855, 5
      %v3963 = vsel %vm1034, %v3961, %v3962
      %v3964 = vrot.slane %v3856, 5
      %v3965 = vrot.slane %v3964, 4
      %v3966 = vrot.slane %v3857, 5
      %v3967 = vsel %vm1034, %v3965, %v3966
      %v3968 = vrot.slane %v3966, 4
      %v3969 = vrot.slane %v3858, 5
      %v3970 = vsel %vm1034, %v3968, %v3969
      %v3971 = vrot.slane %v3859, 5
      %v3972 = vrot.slane %v3971, 4
      %v3973 = vrot.slane %v3860, 5
      %v3974 = vsel %vm1034, %v3972, %v3973
      %v3975 = vrot.slane %v3973, 4
      %v3976 = vrot.slane %v3861, 5
      %v3977 = vsel %vm1034, %v3975, %v3976
      %v3978 = vrot.slane %v3862, 5
      %v3979 = vrot.slane %v3978, 4
      %v3980 = vrot.slane %v3863, 5
      %v3981 = vsel %vm1034, %v3979, %v3980
      %v3982 = vrot.slane %v3980, 4
      %v3983 = vrot.slane %v3864, 5
      %v3984 = vsel %vm1034, %v3982, %v3983
      %v3985 = vrot.slane %v3865, 5
      %v3986 = vrot.slane %v3985, 4
      %v3987 = vrot.slane %v3866, 5
      %v3988 = vsel %vm1034, %v3986, %v3987
      %v3989 = vrot.slane %v3987, 4
      %v3990 = vrot.slane %v3867, 5
      %v3991 = vsel %vm1034, %v3989, %v3990
      %v3992 = vrot.slane %v3868, 5
      %v3993 = vrot.slane %v3992, 4
      %v3994 = vrot.slane %v3869, 5
      %v3995 = vsel %vm1034, %v3993, %v3994
      %v3996 = vrot.slane %v3994, 4
      %v3997 = vrot.slane %v3870, 5
      %v3998 = vsel %vm1034, %v3996, %v3997
      %v3999 = vrot.slane %v3871, 5
      %v4000 = vrot.slane %v3999, 4
      %v4001 = vrot.slane %v3872, 5
      %v4002 = vsel %vm1034, %v4000, %v4001
      %v4003 = vrot.slane %v4001, 4
      %v4004 = vrot.slane %v3873, 5
      %v4005 = vsel %vm1034, %v4003, %v4004
      %v4006 = vrot.slane %v3874, 5
      %v4007 = vrot.slane %v4006, 4
      %v4008 = vrot.slane %v3875, 5
      %v4009 = vsel %vm1034, %v4007, %v4008
      %v4010 = vrot.slane %v4008, 4
      %v4011 = vrot.slane %v3876, 5
      %v4012 = vsel %vm1034, %v4010, %v4011
      %v4013 = vrot.slane %v3877, 5
      %v4014 = vrot.slane %v4013, 4
      %v4015 = vrot.slane %v3878, 5
      %v4016 = vsel %vm1034, %v4014, %v4015
      %v4017 = vrot.slane %v4015, 4
      %v4018 = vrot.slane %v3879, 5
      %v4019 = vsel %vm1034, %v4017, %v4018
      %v4020 = vrot.slane %v3880, 5
      %v4021 = vrot.slane %v4020, 4
      %v4022 = vrot.slane %v3881, 5
      %v4023 = vsel %vm1034, %v4021, %v4022
      %v4024 = vrot.slane %v4022, 4
      %v4025 = vrot.slane %v3882, 5
      %v4026 = vsel %vm1034, %v4024, %v4025
      %v4027 = vrot.slane %v3883, 5
      %v4028 = vrot.slane %v4027, 4
      %v4029 = vrot.slane %v3884, 5
      %v4030 = vsel %vm1034, %v4028, %v4029
      %v4031 = vrot.slane %v4029, 4
      %v4032 = vrot.slane %v3885, 5
      %v4033 = vsel %vm1034, %v4031, %v4032
      %v4034 = vrot.slane %v3886, 5
      %v4035 = vrot.slane %v4034, 4
      %v4036 = vrot.slane %v3887, 5
      %v4037 = vsel %vm1034, %v4035, %v4036
      %v4038 = vrot.slane %v4036, 4
      %v4039 = vrot.slane %v3888, 5
      %v4040 = vsel %vm1034, %v4038, %v4039
      %v4041 = vrot.slane %v3889, 5
      %v4042 = vrot.slane %v4041, 4
      %v4043 = vrot.slane %v3890, 5
      %v4044 = vsel %vm1034, %v4042, %v4043
      %v4045 = vrot.slane %v4043, 4
      %v4046 = vrot.slane %v3891, 5
      %v4047 = vsel %vm1034, %v4045, %v4046
      %v4048 = vrot.slane %v3892, 5
      %v4049 = vrot.slane %v4048, 4
      %v4050 = vrot.slane %v3893, 5
      %v4051 = vsel %vm1034, %v4049, %v4050
      %v4052 = vrot.slane %v4050, 4
      %v4053 = vrot.slane %v3894, 5
      %v4054 = vsel %vm1034, %v4052, %v4053
      %s4055 = scalar_lea.vmem %s2, 28
      %v4056 = vld [vmem:[%s4055] sm:$0xf]
      %v4057 = vunpack.c.l.b16 %v3946
      %v4058 = vunpack.c.l.b16 %v3949
      %v4059 = vunpack.c.l.b16 %v3953
      %v4060 = vunpack.c.l.b16 %v3956
      %v4061 = vunpack.c.l.b16 %v3960
      %v4062 = vunpack.c.l.b16 %v3963
      %v4063 = vunpack.c.l.b16 %v3967
      %v4064 = vunpack.c.l.b16 %v3970
      %v4065 = vunpack.c.l.b16 %v3974
      %v4066 = vunpack.c.l.b16 %v3977
      %v4067 = vunpack.c.l.b16 %v3981
      %v4068 = vunpack.c.l.b16 %v3984
      %v4069 = vunpack.c.l.b16 %v3988
      %v4070 = vunpack.c.l.b16 %v3991
      %v4071 = vunpack.c.l.b16 %v3995
      %v4072 = vunpack.c.l.b16 %v3998
      %v4073 = vunpack.c.l.b16 %v4002
      %v4074 = vunpack.c.l.b16 %v4005
      %v4075 = vunpack.c.l.b16 %v4009
      %v4076 = vunpack.c.l.b16 %v4012
      %v4077 = vunpack.c.l.b16 %v4016
      %v4078 = vunpack.c.l.b16 %v4019
      %v4079 = vunpack.c.l.b16 %v4023
      %v4080 = vunpack.c.l.b16 %v4026
      %v4081 = vunpack.c.l.b16 %v4030
      %v4082 = vunpack.c.l.b16 %v4033
      %v4083 = vunpack.c.l.b16 %v4037
      %v4084 = vunpack.c.l.b16 %v4040
      %v4085 = vunpack.c.l.b16 %v4044
      %v4086 = vunpack.c.l.b16 %v4047
      %v4087 = vunpack.c.l.b16 %v4051
      %v4088 = vunpack.c.l.b16 %v4054
      %v4089 = vpack.c.b16 %v4058, %v4057
      %v4090 = vpack.c.b16 %v4060, %v4059
      %v4091 = vpack.c.b16 %v4062, %v4061
      %v4092 = vpack.c.b16 %v4064, %v4063
      %v4093 = vpack.c.b16 %v4066, %v4065
      %v4094 = vpack.c.b16 %v4068, %v4067
      %v4095 = vpack.c.b16 %v4070, %v4069
      %v4096 = vpack.c.b16 %v4072, %v4071
      %v4097 = vpack.c.b16 %v4074, %v4073
      %v4098 = vpack.c.b16 %v4076, %v4075
      %v4099 = vpack.c.b16 %v4078, %v4077
      %v4100 = vpack.c.b16 %v4080, %v4079
      %v4101 = vpack.c.b16 %v4082, %v4081
      %v4102 = vpack.c.b16 %v4084, %v4083
      %v4103 = vpack.c.b16 %v4086, %v4085
      %v4104 = vpack.c.b16 %v4088, %v4087
      %v4106 = vsel %vm339, %v4089, 0
      %v4109 = vsel %vm339, %v4090, 0
      %v4112 = vsel %vm339, %v4091, 0
      %v4115 = vsel %vm339, %v4092, 0
      %v4118 = vsel %vm339, %v4093, 0
      %v4121 = vsel %vm339, %v4094, 0
      %v4124 = vsel %vm339, %v4095, 0
      %v4127 = vsel %vm339, %v4096, 0
      %v4130 = vsel %vm339, %v4097, 0
      %v4133 = vsel %vm339, %v4098, 0
      %v4136 = vsel %vm339, %v4099, 0
      %v4139 = vsel %vm339, %v4100, 0
      %v4142 = vsel %vm339, %v4101, 0
      %v4145 = vsel %vm339, %v4102, 0
      %v4148 = vsel %vm339, %v4103, 0
      %v4151 = vsel %vm339, %v4104, 0
      %v4154 = vsel %vm388, %v4056, 0
      %4156 = vmatprep.subr.bf16.mxu0 0
      %4157 = vmatpush1.bf16.msra.mxu0 0
      %4158 = vmatprep.subr.bf16.mxu0 0
      %4159 = vmatpush1.bf16.msra.mxu0 0
      %4160 = vmatprep.subr.bf16.mxu0 0
      %4161 = vmatpush1.bf16.msra.mxu0 0
      %4162 = vmatprep.subr.bf16.mxu0 0
      %4163 = vmatpush1.bf16.msra.mxu0 0
      %4164 = vmatprep.subr.bf16.mxu0 0
      %4165 = vmatpush1.bf16.msra.mxu0 0
      %4166 = vmatprep.subr.bf16.mxu0 0
      %4167 = vmatpush1.bf16.msra.mxu0 0
      %4168 = vmatprep.subr.bf16.mxu0 0
      %4169 = vmatpush1.bf16.msra.mxu0 0
      %4170 = vmatprep.subr.bf16.mxu0 0
      %4171 = vmatpush1.bf16.msra.mxu0 %v4154
      %4172 = vmatprep.subr.bf16.mxu0 0
      %4173 = vmatpush2.bf16.msra.mxu0 0
      %4174 = vmatprep.subr.bf16.mxu0 0
      %4175 = vmatpush2.bf16.msra.mxu0 0
      %4176 = vmatprep.subr.bf16.mxu0 0
      %4177 = vmatpush2.bf16.msra.mxu0 0
      %4178 = vmatprep.subr.bf16.mxu0 0
      %4179 = vmatpush2.bf16.msra.mxu0 0
      %4180 = vmatprep.subr.bf16.mxu0 0
      %4181 = vmatpush2.bf16.msra.mxu0 0
      %4182 = vmatprep.subr.bf16.mxu0 0
      %4183 = vmatpush2.bf16.msra.mxu0 0
      %4184 = vmatprep.subr.bf16.mxu0 0
      %4185 = vmatpush2.bf16.msra.mxu0 0
      %4186 = vmatprep.subr.bf16.mxu0 0
      %4187 = vmatpush2.bf16.msra.mxu0 0
      %4188 = vmatprep.mubr.bf16.mxu0 0
      %4189 = vmatmul.mubr.bf16.gmra.mxu0 %v4106
      %v4190 = vpop.f32.mrf.mxu0
      %v4191 = vadd.f32 0.0, %v4190
      %v4192 = vpop.f32.mrf.mxu0
      %v4193 = vpop.f32.mrf.mxu0
      %v4194 = vadd.f32 0.0, %v4193
      %v4195 = vpop.f32.mrf.mxu0
      %4196 = vmatprep.mubr.bf16.mxu0 0
      %4197 = vmatmul.mubr.bf16.gmra.mxu0 %v4109
      %v4198 = vpop.f32.mrf.mxu0
      %v4199 = vadd.f32 0.0, %v4198
      %v4200 = vpop.f32.mrf.mxu0
      %v4201 = vpop.f32.mrf.mxu0
      %v4202 = vadd.f32 0.0, %v4201
      %v4203 = vpop.f32.mrf.mxu0
      %4204 = vmatprep.mubr.bf16.mxu0 0
      %4205 = vmatmul.mubr.bf16.gmra.mxu0 %v4112
      %v4206 = vpop.f32.mrf.mxu0
      %v4207 = vadd.f32 0.0, %v4206
      %v4208 = vpop.f32.mrf.mxu0
      %v4209 = vpop.f32.mrf.mxu0
      %v4210 = vadd.f32 0.0, %v4209
      %v4211 = vpop.f32.mrf.mxu0
      %4212 = vmatprep.mubr.bf16.mxu0 0
      %4213 = vmatmul.mubr.bf16.gmra.mxu0 %v4115
      %v4214 = vpop.f32.mrf.mxu0
      %v4215 = vadd.f32 0.0, %v4214
      %v4216 = vpop.f32.mrf.mxu0
      %v4217 = vpop.f32.mrf.mxu0
      %v4218 = vadd.f32 0.0, %v4217
      %v4219 = vpop.f32.mrf.mxu0
      %4220 = vmatprep.mubr.bf16.mxu0 0
      %4221 = vmatmul.mubr.bf16.gmra.mxu0 %v4118
      %v4222 = vpop.f32.mrf.mxu0
      %v4223 = vadd.f32 0.0, %v4222
      %v4224 = vpop.f32.mrf.mxu0
      %v4225 = vpop.f32.mrf.mxu0
      %v4226 = vadd.f32 0.0, %v4225
      %v4227 = vpop.f32.mrf.mxu0
      %4228 = vmatprep.mubr.bf16.mxu0 0
      %4229 = vmatmul.mubr.bf16.gmra.mxu0 %v4121
      %v4230 = vpop.f32.mrf.mxu0
      %v4231 = vadd.f32 0.0, %v4230
      %v4232 = vpop.f32.mrf.mxu0
      %v4233 = vpop.f32.mrf.mxu0
      %v4234 = vadd.f32 0.0, %v4233
      %v4235 = vpop.f32.mrf.mxu0
      %4236 = vmatprep.mubr.bf16.mxu0 0
      %4237 = vmatmul.mubr.bf16.gmra.mxu0 %v4124
      %v4238 = vpop.f32.mrf.mxu0
      %v4239 = vadd.f32 0.0, %v4238
      %v4240 = vpop.f32.mrf.mxu0
      %v4241 = vpop.f32.mrf.mxu0
      %v4242 = vadd.f32 0.0, %v4241
      %v4243 = vpop.f32.mrf.mxu0
      %4244 = vmatprep.mubr.bf16.mxu0 0
      %4245 = vmatmul.mubr.bf16.gmra.mxu0 %v4127
      %v4246 = vpop.f32.mrf.mxu0
      %v4247 = vadd.f32 0.0, %v4246
      %v4248 = vpop.f32.mrf.mxu0
      %v4249 = vpop.f32.mrf.mxu0
      %v4250 = vadd.f32 0.0, %v4249
      %v4251 = vpop.f32.mrf.mxu0
      %4252 = vmatprep.mubr.bf16.mxu0 0
      %4253 = vmatmul.mubr.bf16.gmra.mxu0 %v4130
      %v4254 = vpop.f32.mrf.mxu0
      %v4255 = vadd.f32 0.0, %v4254
      %v4256 = vpop.f32.mrf.mxu0
      %v4257 = vpop.f32.mrf.mxu0
      %v4258 = vadd.f32 0.0, %v4257
      %v4259 = vpop.f32.mrf.mxu0
      %4260 = vmatprep.mubr.bf16.mxu0 0
      %4261 = vmatmul.mubr.bf16.gmra.mxu0 %v4133
      %v4262 = vpop.f32.mrf.mxu0
      %v4263 = vadd.f32 0.0, %v4262
      %v4264 = vpop.f32.mrf.mxu0
      %v4265 = vpop.f32.mrf.mxu0
      %v4266 = vadd.f32 0.0, %v4265
      %v4267 = vpop.f32.mrf.mxu0
      %4268 = vmatprep.mubr.bf16.mxu0 0
      %4269 = vmatmul.mubr.bf16.gmra.mxu0 %v4136
      %v4270 = vpop.f32.mrf.mxu0
      %v4271 = vadd.f32 0.0, %v4270
      %v4272 = vpop.f32.mrf.mxu0
      %v4273 = vpop.f32.mrf.mxu0
      %v4274 = vadd.f32 0.0, %v4273
      %v4275 = vpop.f32.mrf.mxu0
      %4276 = vmatprep.mubr.bf16.mxu0 0
      %4277 = vmatmul.mubr.bf16.gmra.mxu0 %v4139
      %v4278 = vpop.f32.mrf.mxu0
      %v4279 = vadd.f32 0.0, %v4278
      %v4280 = vpop.f32.mrf.mxu0
      %v4281 = vpop.f32.mrf.mxu0
      %v4282 = vadd.f32 0.0, %v4281
      %v4283 = vpop.f32.mrf.mxu0
      %4284 = vmatprep.mubr.bf16.mxu0 0
      %4285 = vmatmul.mubr.bf16.gmra.mxu0 %v4142
      %v4286 = vpop.f32.mrf.mxu0
      %v4287 = vadd.f32 0.0, %v4286
      %v4288 = vpop.f32.mrf.mxu0
      %v4289 = vpop.f32.mrf.mxu0
      %v4290 = vadd.f32 0.0, %v4289
      %v4291 = vpop.f32.mrf.mxu0
      %4292 = vmatprep.mubr.bf16.mxu0 0
      %4293 = vmatmul.mubr.bf16.gmra.mxu0 %v4145
      %v4294 = vpop.f32.mrf.mxu0
      %v4295 = vadd.f32 0.0, %v4294
      %v4296 = vpop.f32.mrf.mxu0
      %v4297 = vpop.f32.mrf.mxu0
      %v4298 = vadd.f32 0.0, %v4297
      %v4299 = vpop.f32.mrf.mxu0
      %4300 = vmatprep.mubr.bf16.mxu0 0
      %4301 = vmatmul.mubr.bf16.gmra.mxu0 %v4148
      %v4302 = vpop.f32.mrf.mxu0
      %v4303 = vadd.f32 0.0, %v4302
      %v4304 = vpop.f32.mrf.mxu0
      %v4305 = vpop.f32.mrf.mxu0
      %v4306 = vadd.f32 0.0, %v4305
      %v4307 = vpop.f32.mrf.mxu0
      %4308 = vmatprep.mubr.bf16.mxu0 0
      %4309 = vmatmul.mubr.bf16.gmra.mxu0 %v4151
      %v4310 = vpop.f32.mrf.mxu0
      %v4311 = vadd.f32 0.0, %v4310
      %v4312 = vpop.f32.mrf.mxu0
      %v4313 = vpop.f32.mrf.mxu0
      %v4314 = vadd.f32 0.0, %v4313
      %v4315 = vpop.f32.mrf.mxu0
      %4316 = vdwg.mxu0
      %v4317 = vadd.f32 %v3815, %v4191
      %v4318 = vadd.f32 %v3816, %v4194
      %v4319 = vadd.f32 %v3817, %v4199
      %v4320 = vadd.f32 %v3818, %v4202
      %v4321 = vadd.f32 %v3819, %v4207
      %v4322 = vadd.f32 %v3820, %v4210
      %v4323 = vadd.f32 %v3821, %v4215
      %v4324 = vadd.f32 %v3822, %v4218
      %v4325 = vadd.f32 %v3823, %v4223
      %v4326 = vadd.f32 %v3824, %v4226
      %v4327 = vadd.f32 %v3825, %v4231
      %v4328 = vadd.f32 %v3826, %v4234
      %v4329 = vadd.f32 %v3827, %v4239
      %v4330 = vadd.f32 %v3828, %v4242
      %v4331 = vadd.f32 %v3829, %v4247
      %v4332 = vadd.f32 %v3830, %v4250
      %v4333 = vadd.f32 %v3831, %v4255
      %v4334 = vadd.f32 %v3832, %v4258
      %v4335 = vadd.f32 %v3833, %v4263
      %v4336 = vadd.f32 %v3834, %v4266
      %v4337 = vadd.f32 %v3835, %v4271
      %v4338 = vadd.f32 %v3836, %v4274
      %v4339 = vadd.f32 %v3837, %v4279
      %v4340 = vadd.f32 %v3838, %v4282
      %v4341 = vadd.f32 %v3839, %v4287
      %v4342 = vadd.f32 %v3840, %v4290
      %v4343 = vadd.f32 %v3841, %v4295
      %v4344 = vadd.f32 %v3842, %v4298
      %v4345 = vadd.f32 %v3843, %v4303
      %v4346 = vadd.f32 %v3844, %v4306
      %v4347 = vadd.f32 %v3845, %v4311
      %v4348 = vadd.f32 %v3846, %v4314
      %v4349 = vld [vmem:[%s3488] sm:$0xc]
      %v4350 = vld [vmem:[%s3488 + $0x8] sm:$0x3]
      %v4351 = vld [vmem:[%s3488 + $0xc] sm:$0xc]
      %v4352 = vld [vmem:[%s3488 + $0x14] sm:$0x3]
      %v4353 = vld [vmem:[%s3488 + $0x18] sm:$0xc]
      %v4354 = vld [vmem:[%s3488 + $0x20] sm:$0x3]
      %v4355 = vld [vmem:[%s3488 + $0x24] sm:$0xc]
      %v4356 = vld [vmem:[%s3488 + $0x2c] sm:$0x3]
      %v4357 = vld [vmem:[%s3488 + $0x30] sm:$0xc]
      %v4358 = vld [vmem:[%s3488 + $0x38] sm:$0x3]
      %v4359 = vld [vmem:[%s3488 + $0x3c] sm:$0xc]
      %v4360 = vld [vmem:[%s3488 + $0x44] sm:$0x3]
      %v4361 = vld [vmem:[%s3488 + $0x48] sm:$0xc]
      %v4362 = vld [vmem:[%s3488 + $0x50] sm:$0x3]
      %v4363 = vld [vmem:[%s3488 + $0x54] sm:$0xc]
      %v4364 = vld [vmem:[%s3488 + $0x5c] sm:$0x3]
      %v4365 = vld [vmem:[%s3488 + $0x60] sm:$0xc]
      %v4366 = vld [vmem:[%s3488 + $0x68] sm:$0x3]
      %v4367 = vld [vmem:[%s3488 + $0x6c] sm:$0xc]
      %v4368 = vld [vmem:[%s3488 + $0x74] sm:$0x3]
      %v4369 = vld [vmem:[%s3488 + $0x78] sm:$0xc]
      %v4370 = vld [vmem:[%s3488 + $0x80] sm:$0x3]
      %v4371 = vld [vmem:[%s3488 + $0x84] sm:$0xc]
      %v4372 = vld [vmem:[%s3488 + $0x8c] sm:$0x3]
      %v4373 = vld [vmem:[%s3488 + $0x90] sm:$0xc]
      %v4374 = vld [vmem:[%s3488 + $0x98] sm:$0x3]
      %v4375 = vld [vmem:[%s3488 + $0x9c] sm:$0xc]
      %v4376 = vld [vmem:[%s3488 + $0xa4] sm:$0x3]
      %v4377 = vld [vmem:[%s3488 + $0xa8] sm:$0xc]
      %v4378 = vld [vmem:[%s3488 + $0xb0] sm:$0x3]
      %v4379 = vld [vmem:[%s3488 + $0xb4] sm:$0xc]
      %v4380 = vld [vmem:[%s3488 + $0xbc] sm:$0x3]
      %v4413 = vrot.slane %v4349, 6
      %v4414 = vrot.slane %v4413, 4
      %v4415 = vrot.slane %v3848, 6
      %v4416 = vsel %vm1751, %v4414, %v4415
      %v4417 = vrot.slane %v4415, 4
      %v4418 = vrot.slane %v4350, 6
      %v4419 = vsel %vm1751, %v4417, %v4418
      %v4420 = vrot.slane %v4351, 6
      %v4421 = vrot.slane %v4420, 4
      %v4422 = vrot.slane %v3851, 6
      %v4423 = vsel %vm1751, %v4421, %v4422
      %v4424 = vrot.slane %v4422, 4
      %v4425 = vrot.slane %v4352, 6
      %v4426 = vsel %vm1751, %v4424, %v4425
      %v4427 = vrot.slane %v4353, 6
      %v4428 = vrot.slane %v4427, 4
      %v4429 = vrot.slane %v3854, 6
      %v4430 = vsel %vm1751, %v4428, %v4429
      %v4431 = vrot.slane %v4429, 4
      %v4432 = vrot.slane %v4354, 6
      %v4433 = vsel %vm1751, %v4431, %v4432
      %v4434 = vrot.slane %v4355, 6
      %v4435 = vrot.slane %v4434, 4
      %v4436 = vrot.slane %v3857, 6
      %v4437 = vsel %vm1751, %v4435, %v4436
      %v4438 = vrot.slane %v4436, 4
      %v4439 = vrot.slane %v4356, 6
      %v4440 = vsel %vm1751, %v4438, %v4439
      %v4441 = vrot.slane %v4357, 6
      %v4442 = vrot.slane %v4441, 4
      %v4443 = vrot.slane %v3860, 6
      %v4444 = vsel %vm1751, %v4442, %v4443
      %v4445 = vrot.slane %v4443, 4
      %v4446 = vrot.slane %v4358, 6
      %v4447 = vsel %vm1751, %v4445, %v4446
      %v4448 = vrot.slane %v4359, 6
      %v4449 = vrot.slane %v4448, 4
      %v4450 = vrot.slane %v3863, 6
      %v4451 = vsel %vm1751, %v4449, %v4450
      %v4452 = vrot.slane %v4450, 4
      %v4453 = vrot.slane %v4360, 6
      %v4454 = vsel %vm1751, %v4452, %v4453
      %v4455 = vrot.slane %v4361, 6
      %v4456 = vrot.slane %v4455, 4
      %v4457 = vrot.slane %v3866, 6
      %v4458 = vsel %vm1751, %v4456, %v4457
      %v4459 = vrot.slane %v4457, 4
      %v4460 = vrot.slane %v4362, 6
      %v4461 = vsel %vm1751, %v4459, %v4460
      %v4462 = vrot.slane %v4363, 6
      %v4463 = vrot.slane %v4462, 4
      %v4464 = vrot.slane %v3869, 6
      %v4465 = vsel %vm1751, %v4463, %v4464
      %v4466 = vrot.slane %v4464, 4
      %v4467 = vrot.slane %v4364, 6
      %v4468 = vsel %vm1751, %v4466, %v4467
      %v4469 = vrot.slane %v4365, 6
      %v4470 = vrot.slane %v4469, 4
      %v4471 = vrot.slane %v3872, 6
      %v4472 = vsel %vm1751, %v4470, %v4471
      %v4473 = vrot.slane %v4471, 4
      %v4474 = vrot.slane %v4366, 6
      %v4475 = vsel %vm1751, %v4473, %v4474
      %v4476 = vrot.slane %v4367, 6
      %v4477 = vrot.slane %v4476, 4
      %v4478 = vrot.slane %v3875, 6
      %v4479 = vsel %vm1751, %v4477, %v4478
      %v4480 = vrot.slane %v4478, 4
      %v4481 = vrot.slane %v4368, 6
      %v4482 = vsel %vm1751, %v4480, %v4481
      %v4483 = vrot.slane %v4369, 6
      %v4484 = vrot.slane %v4483, 4
      %v4485 = vrot.slane %v3878, 6
      %v4486 = vsel %vm1751, %v4484, %v4485
      %v4487 = vrot.slane %v4485, 4
      %v4488 = vrot.slane %v4370, 6
      %v4489 = vsel %vm1751, %v4487, %v4488
      %v4490 = vrot.slane %v4371, 6
      %v4491 = vrot.slane %v4490, 4
      %v4492 = vrot.slane %v3881, 6
      %v4493 = vsel %vm1751, %v4491, %v4492
      %v4494 = vrot.slane %v4492, 4
      %v4495 = vrot.slane %v4372, 6
      %v4496 = vsel %vm1751, %v4494, %v4495
      %v4497 = vrot.slane %v4373, 6
      %v4498 = vrot.slane %v4497, 4
      %v4499 = vrot.slane %v3884, 6
      %v4500 = vsel %vm1751, %v4498, %v4499
      %v4501 = vrot.slane %v4499, 4
      %v4502 = vrot.slane %v4374, 6
      %v4503 = vsel %vm1751, %v4501, %v4502
      %v4504 = vrot.slane %v4375, 6
      %v4505 = vrot.slane %v4504, 4
      %v4506 = vrot.slane %v3887, 6
      %v4507 = vsel %vm1751, %v4505, %v4506
      %v4508 = vrot.slane %v4506, 4
      %v4509 = vrot.slane %v4376, 6
      %v4510 = vsel %vm1751, %v4508, %v4509
      %v4511 = vrot.slane %v4377, 6
      %v4512 = vrot.slane %v4511, 4
      %v4513 = vrot.slane %v3890, 6
      %v4514 = vsel %vm1751, %v4512, %v4513
      %v4515 = vrot.slane %v4513, 4
      %v4516 = vrot.slane %v4378, 6
      %v4517 = vsel %vm1751, %v4515, %v4516
      %v4518 = vrot.slane %v4379, 6
      %v4519 = vrot.slane %v4518, 4
      %v4520 = vrot.slane %v3893, 6
      %v4521 = vsel %vm1751, %v4519, %v4520
      %v4522 = vrot.slane %v4520, 4
      %v4523 = vrot.slane %v4380, 6
      %v4524 = vsel %vm1751, %v4522, %v4523
      %s4525 = scalar_lea.vmem %s2, 32
      %v4526 = vld [vmem:[%s4525] sm:$0xf]
      %v4527 = vunpack.c.l.b16 %v4416
      %v4528 = vunpack.c.l.b16 %v4419
      %v4529 = vunpack.c.l.b16 %v4423
      %v4530 = vunpack.c.l.b16 %v4426
      %v4531 = vunpack.c.l.b16 %v4430
      %v4532 = vunpack.c.l.b16 %v4433
      %v4533 = vunpack.c.l.b16 %v4437
      %v4534 = vunpack.c.l.b16 %v4440
      %v4535 = vunpack.c.l.b16 %v4444
      %v4536 = vunpack.c.l.b16 %v4447
      %v4537 = vunpack.c.l.b16 %v4451
      %v4538 = vunpack.c.l.b16 %v4454
      %v4539 = vunpack.c.l.b16 %v4458
      %v4540 = vunpack.c.l.b16 %v4461
      %v4541 = vunpack.c.l.b16 %v4465
      %v4542 = vunpack.c.l.b16 %v4468
      %v4543 = vunpack.c.l.b16 %v4472
      %v4544 = vunpack.c.l.b16 %v4475
      %v4545 = vunpack.c.l.b16 %v4479
      %v4546 = vunpack.c.l.b16 %v4482
      %v4547 = vunpack.c.l.b16 %v4486
      %v4548 = vunpack.c.l.b16 %v4489
      %v4549 = vunpack.c.l.b16 %v4493
      %v4550 = vunpack.c.l.b16 %v4496
      %v4551 = vunpack.c.l.b16 %v4500
      %v4552 = vunpack.c.l.b16 %v4503
      %v4553 = vunpack.c.l.b16 %v4507
      %v4554 = vunpack.c.l.b16 %v4510
      %v4555 = vunpack.c.l.b16 %v4514
      %v4556 = vunpack.c.l.b16 %v4517
      %v4557 = vunpack.c.l.b16 %v4521
      %v4558 = vunpack.c.l.b16 %v4524
      %v4559 = vpack.c.b16 %v4528, %v4527
      %v4560 = vpack.c.b16 %v4530, %v4529
      %v4561 = vpack.c.b16 %v4532, %v4531
      %v4562 = vpack.c.b16 %v4534, %v4533
      %v4563 = vpack.c.b16 %v4536, %v4535
      %v4564 = vpack.c.b16 %v4538, %v4537
      %v4565 = vpack.c.b16 %v4540, %v4539
      %v4566 = vpack.c.b16 %v4542, %v4541
      %v4567 = vpack.c.b16 %v4544, %v4543
      %v4568 = vpack.c.b16 %v4546, %v4545
      %v4569 = vpack.c.b16 %v4548, %v4547
      %v4570 = vpack.c.b16 %v4550, %v4549
      %v4571 = vpack.c.b16 %v4552, %v4551
      %v4572 = vpack.c.b16 %v4554, %v4553
      %v4573 = vpack.c.b16 %v4556, %v4555
      %v4574 = vpack.c.b16 %v4558, %v4557
      %v4576 = vsel %vm339, %v4559, 0
      %v4579 = vsel %vm339, %v4560, 0
      %v4582 = vsel %vm339, %v4561, 0
      %v4585 = vsel %vm339, %v4562, 0
      %v4588 = vsel %vm339, %v4563, 0
      %v4591 = vsel %vm339, %v4564, 0
      %v4594 = vsel %vm339, %v4565, 0
      %v4597 = vsel %vm339, %v4566, 0
      %v4600 = vsel %vm339, %v4567, 0
      %v4603 = vsel %vm339, %v4568, 0
      %v4606 = vsel %vm339, %v4569, 0
      %v4609 = vsel %vm339, %v4570, 0
      %v4612 = vsel %vm339, %v4571, 0
      %v4615 = vsel %vm339, %v4572, 0
      %v4618 = vsel %vm339, %v4573, 0
      %v4621 = vsel %vm339, %v4574, 0
      %v4624 = vsel %vm388, %v4526, 0
      %4626 = vmatprep.subr.bf16.mxu0 0
      %4627 = vmatpush1.bf16.msra.mxu0 0
      %4628 = vmatprep.subr.bf16.mxu0 0
      %4629 = vmatpush1.bf16.msra.mxu0 0
      %4630 = vmatprep.subr.bf16.mxu0 0
      %4631 = vmatpush1.bf16.msra.mxu0 0
      %4632 = vmatprep.subr.bf16.mxu0 0
      %4633 = vmatpush1.bf16.msra.mxu0 0
      %4634 = vmatprep.subr.bf16.mxu0 0
      %4635 = vmatpush1.bf16.msra.mxu0 0
      %4636 = vmatprep.subr.bf16.mxu0 0
      %4637 = vmatpush1.bf16.msra.mxu0 0
      %4638 = vmatprep.subr.bf16.mxu0 0
      %4639 = vmatpush1.bf16.msra.mxu0 0
      %4640 = vmatprep.subr.bf16.mxu0 0
      %4641 = vmatpush1.bf16.msra.mxu0 %v4624
      %4642 = vmatprep.subr.bf16.mxu0 0
      %4643 = vmatpush2.bf16.msra.mxu0 0
      %4644 = vmatprep.subr.bf16.mxu0 0
      %4645 = vmatpush2.bf16.msra.mxu0 0
      %4646 = vmatprep.subr.bf16.mxu0 0
      %4647 = vmatpush2.bf16.msra.mxu0 0
      %4648 = vmatprep.subr.bf16.mxu0 0
      %4649 = vmatpush2.bf16.msra.mxu0 0
      %4650 = vmatprep.subr.bf16.mxu0 0
      %4651 = vmatpush2.bf16.msra.mxu0 0
      %4652 = vmatprep.subr.bf16.mxu0 0
      %4653 = vmatpush2.bf16.msra.mxu0 0
      %4654 = vmatprep.subr.bf16.mxu0 0
      %4655 = vmatpush2.bf16.msra.mxu0 0
      %4656 = vmatprep.subr.bf16.mxu0 0
      %4657 = vmatpush2.bf16.msra.mxu0 0
      %4658 = vmatprep.mubr.bf16.mxu0 0
      %4659 = vmatmul.mubr.bf16.gmra.mxu0 %v4576
      %v4660 = vpop.f32.mrf.mxu0
      %v4661 = vadd.f32 0.0, %v4660
      %v4662 = vpop.f32.mrf.mxu0
      %v4663 = vpop.f32.mrf.mxu0
      %v4664 = vadd.f32 0.0, %v4663
      %v4665 = vpop.f32.mrf.mxu0
      %4666 = vmatprep.mubr.bf16.mxu0 0
      %4667 = vmatmul.mubr.bf16.gmra.mxu0 %v4579
      %v4668 = vpop.f32.mrf.mxu0
      %v4669 = vadd.f32 0.0, %v4668
      %v4670 = vpop.f32.mrf.mxu0
      %v4671 = vpop.f32.mrf.mxu0
      %v4672 = vadd.f32 0.0, %v4671
      %v4673 = vpop.f32.mrf.mxu0
      %4674 = vmatprep.mubr.bf16.mxu0 0
      %4675 = vmatmul.mubr.bf16.gmra.mxu0 %v4582
      %v4676 = vpop.f32.mrf.mxu0
      %v4677 = vadd.f32 0.0, %v4676
      %v4678 = vpop.f32.mrf.mxu0
      %v4679 = vpop.f32.mrf.mxu0
      %v4680 = vadd.f32 0.0, %v4679
      %v4681 = vpop.f32.mrf.mxu0
      %4682 = vmatprep.mubr.bf16.mxu0 0
      %4683 = vmatmul.mubr.bf16.gmra.mxu0 %v4585
      %v4684 = vpop.f32.mrf.mxu0
      %v4685 = vadd.f32 0.0, %v4684
      %v4686 = vpop.f32.mrf.mxu0
      %v4687 = vpop.f32.mrf.mxu0
      %v4688 = vadd.f32 0.0, %v4687
      %v4689 = vpop.f32.mrf.mxu0
      %4690 = vmatprep.mubr.bf16.mxu0 0
      %4691 = vmatmul.mubr.bf16.gmra.mxu0 %v4588
      %v4692 = vpop.f32.mrf.mxu0
      %v4693 = vadd.f32 0.0, %v4692
      %v4694 = vpop.f32.mrf.mxu0
      %v4695 = vpop.f32.mrf.mxu0
      %v4696 = vadd.f32 0.0, %v4695
      %v4697 = vpop.f32.mrf.mxu0
      %4698 = vmatprep.mubr.bf16.mxu0 0
      %4699 = vmatmul.mubr.bf16.gmra.mxu0 %v4591
      %v4700 = vpop.f32.mrf.mxu0
      %v4701 = vadd.f32 0.0, %v4700
      %v4702 = vpop.f32.mrf.mxu0
      %v4703 = vpop.f32.mrf.mxu0
      %v4704 = vadd.f32 0.0, %v4703
      %v4705 = vpop.f32.mrf.mxu0
      %4706 = vmatprep.mubr.bf16.mxu0 0
      %4707 = vmatmul.mubr.bf16.gmra.mxu0 %v4594
      %v4708 = vpop.f32.mrf.mxu0
      %v4709 = vadd.f32 0.0, %v4708
      %v4710 = vpop.f32.mrf.mxu0
      %v4711 = vpop.f32.mrf.mxu0
      %v4712 = vadd.f32 0.0, %v4711
      %v4713 = vpop.f32.mrf.mxu0
      %4714 = vmatprep.mubr.bf16.mxu0 0
      %4715 = vmatmul.mubr.bf16.gmra.mxu0 %v4597
      %v4716 = vpop.f32.mrf.mxu0
      %v4717 = vadd.f32 0.0, %v4716
      %v4718 = vpop.f32.mrf.mxu0
      %v4719 = vpop.f32.mrf.mxu0
      %v4720 = vadd.f32 0.0, %v4719
      %v4721 = vpop.f32.mrf.mxu0
      %4722 = vmatprep.mubr.bf16.mxu0 0
      %4723 = vmatmul.mubr.bf16.gmra.mxu0 %v4600
      %v4724 = vpop.f32.mrf.mxu0
      %v4725 = vadd.f32 0.0, %v4724
      %v4726 = vpop.f32.mrf.mxu0
      %v4727 = vpop.f32.mrf.mxu0
      %v4728 = vadd.f32 0.0, %v4727
      %v4729 = vpop.f32.mrf.mxu0
      %4730 = vmatprep.mubr.bf16.mxu0 0
      %4731 = vmatmul.mubr.bf16.gmra.mxu0 %v4603
      %v4732 = vpop.f32.mrf.mxu0
      %v4733 = vadd.f32 0.0, %v4732
      %v4734 = vpop.f32.mrf.mxu0
      %v4735 = vpop.f32.mrf.mxu0
      %v4736 = vadd.f32 0.0, %v4735
      %v4737 = vpop.f32.mrf.mxu0
      %4738 = vmatprep.mubr.bf16.mxu0 0
      %4739 = vmatmul.mubr.bf16.gmra.mxu0 %v4606
      %v4740 = vpop.f32.mrf.mxu0
      %v4741 = vadd.f32 0.0, %v4740
      %v4742 = vpop.f32.mrf.mxu0
      %v4743 = vpop.f32.mrf.mxu0
      %v4744 = vadd.f32 0.0, %v4743
      %v4745 = vpop.f32.mrf.mxu0
      %4746 = vmatprep.mubr.bf16.mxu0 0
      %4747 = vmatmul.mubr.bf16.gmra.mxu0 %v4609
      %v4748 = vpop.f32.mrf.mxu0
      %v4749 = vadd.f32 0.0, %v4748
      %v4750 = vpop.f32.mrf.mxu0
      %v4751 = vpop.f32.mrf.mxu0
      %v4752 = vadd.f32 0.0, %v4751
      %v4753 = vpop.f32.mrf.mxu0
      %4754 = vmatprep.mubr.bf16.mxu0 0
      %4755 = vmatmul.mubr.bf16.gmra.mxu0 %v4612
      %v4756 = vpop.f32.mrf.mxu0
      %v4757 = vadd.f32 0.0, %v4756
      %v4758 = vpop.f32.mrf.mxu0
      %v4759 = vpop.f32.mrf.mxu0
      %v4760 = vadd.f32 0.0, %v4759
      %v4761 = vpop.f32.mrf.mxu0
      %4762 = vmatprep.mubr.bf16.mxu0 0
      %4763 = vmatmul.mubr.bf16.gmra.mxu0 %v4615
      %v4764 = vpop.f32.mrf.mxu0
      %v4765 = vadd.f32 0.0, %v4764
      %v4766 = vpop.f32.mrf.mxu0
      %v4767 = vpop.f32.mrf.mxu0
      %v4768 = vadd.f32 0.0, %v4767
      %v4769 = vpop.f32.mrf.mxu0
      %4770 = vmatprep.mubr.bf16.mxu0 0
      %4771 = vmatmul.mubr.bf16.gmra.mxu0 %v4618
      %v4772 = vpop.f32.mrf.mxu0
      %v4773 = vadd.f32 0.0, %v4772
      %v4774 = vpop.f32.mrf.mxu0
      %v4775 = vpop.f32.mrf.mxu0
      %v4776 = vadd.f32 0.0, %v4775
      %v4777 = vpop.f32.mrf.mxu0
      %4778 = vmatprep.mubr.bf16.mxu0 0
      %4779 = vmatmul.mubr.bf16.gmra.mxu0 %v4621
      %v4780 = vpop.f32.mrf.mxu0
      %v4781 = vadd.f32 0.0, %v4780
      %v4782 = vpop.f32.mrf.mxu0
      %v4783 = vpop.f32.mrf.mxu0
      %v4784 = vadd.f32 0.0, %v4783
      %v4785 = vpop.f32.mrf.mxu0
      %4786 = vdwg.mxu0
      %v4787 = vadd.f32 %v4317, %v4661
      %v4788 = vadd.f32 %v4318, %v4664
      %v4789 = vadd.f32 %v4319, %v4669
      %v4790 = vadd.f32 %v4320, %v4672
      %v4791 = vadd.f32 %v4321, %v4677
      %v4792 = vadd.f32 %v4322, %v4680
      %v4793 = vadd.f32 %v4323, %v4685
      %v4794 = vadd.f32 %v4324, %v4688
      %v4795 = vadd.f32 %v4325, %v4693
      %v4796 = vadd.f32 %v4326, %v4696
      %v4797 = vadd.f32 %v4327, %v4701
      %v4798 = vadd.f32 %v4328, %v4704
      %v4799 = vadd.f32 %v4329, %v4709
      %v4800 = vadd.f32 %v4330, %v4712
      %v4801 = vadd.f32 %v4331, %v4717
      %v4802 = vadd.f32 %v4332, %v4720
      %v4803 = vadd.f32 %v4333, %v4725
      %v4804 = vadd.f32 %v4334, %v4728
      %v4805 = vadd.f32 %v4335, %v4733
      %v4806 = vadd.f32 %v4336, %v4736
      %v4807 = vadd.f32 %v4337, %v4741
      %v4808 = vadd.f32 %v4338, %v4744
      %v4809 = vadd.f32 %v4339, %v4749
      %v4810 = vadd.f32 %v4340, %v4752
      %v4811 = vadd.f32 %v4341, %v4757
      %v4812 = vadd.f32 %v4342, %v4760
      %v4813 = vadd.f32 %v4343, %v4765
      %v4814 = vadd.f32 %v4344, %v4768
      %v4815 = vadd.f32 %v4345, %v4773
      %v4816 = vadd.f32 %v4346, %v4776
      %v4817 = vadd.f32 %v4347, %v4781
      %v4818 = vadd.f32 %v4348, %v4784
      %v4819 = vld [vmem:[%s4] sm:$0xff]
      %v4820 = vld [vmem:[%s4 + $0x8] sm:$0xff]
      %v4821 = vld [vmem:[%s4 + $0x10] sm:$0xff]
      %v4822 = vld [vmem:[%s4 + $0x18] sm:$0xff]
      %v4823 = vld [vmem:[%s4 + $0x20] sm:$0xff]
      %v4824 = vld [vmem:[%s4 + $0x28] sm:$0xff]
      %v4825 = vld [vmem:[%s4 + $0x30] sm:$0xff]
      %v4826 = vld [vmem:[%s4 + $0x38] sm:$0xff]
      %v4827 = vld [vmem:[%s4 + $0x40] sm:$0xff]
      %v4828 = vld [vmem:[%s4 + $0x48] sm:$0xff]
      %v4829 = vld [vmem:[%s4 + $0x50] sm:$0xff]
      %v4830 = vld [vmem:[%s4 + $0x58] sm:$0xff]
      %v4831 = vld [vmem:[%s4 + $0x60] sm:$0xff]
      %v4832 = vld [vmem:[%s4 + $0x68] sm:$0xff]
      %v4833 = vld [vmem:[%s4 + $0x70] sm:$0xff]
      %v4834 = vld [vmem:[%s4 + $0x78] sm:$0xff]
      %v4835 = vld [vmem:[%s4 + $0x80] sm:$0xff]
      %v4836 = vld [vmem:[%s4 + $0x88] sm:$0xff]
      %v4837 = vld [vmem:[%s4 + $0x90] sm:$0xff]
      %v4838 = vld [vmem:[%s4 + $0x98] sm:$0xff]
      %v4839 = vld [vmem:[%s4 + $0xa0] sm:$0xff]
      %v4840 = vld [vmem:[%s4 + $0xa8] sm:$0xff]
      %v4841 = vld [vmem:[%s4 + $0xb0] sm:$0xff]
      %v4842 = vld [vmem:[%s4 + $0xb8] sm:$0xff]
      %v4843 = vld [vmem:[%s4 + $0xc0] sm:$0xff]
      %v4844 = vld [vmem:[%s4 + $0xc8] sm:$0xff]
      %v4845 = vld [vmem:[%s4 + $0xd0] sm:$0xff]
      %v4846 = vld [vmem:[%s4 + $0xd8] sm:$0xff]
      %v4847 = vld [vmem:[%s4 + $0xe0] sm:$0xff]
      %v4848 = vld [vmem:[%s4 + $0xe8] sm:$0xff]
      %v4849 = vld [vmem:[%s4 + $0xf0] sm:$0xff]
      %v4850 = vld [vmem:[%s4 + $0xf8] sm:$0xff]
      %4852 = vset.pattern.permute.xlu0 0
      %4853 = vperm.xlu0 %4852, %v4819
      %v4854 = vpop.permute.xlu0 %4853
      %4857 = vset.pattern.permute.xlu0 0
      %4858 = vperm.xlu0 %4857, %v4820
      %v4859 = vpop.permute.xlu0 %4858
      %4862 = vset.pattern.permute.xlu0 0
      %4863 = vperm.xlu0 %4862, %v4821
      %v4864 = vpop.permute.xlu0 %4863
      %4867 = vset.pattern.permute.xlu0 0
      %4868 = vperm.xlu0 %4867, %v4822
      %v4869 = vpop.permute.xlu0 %4868
      %4872 = vset.pattern.permute.xlu0 0
      %4873 = vperm.xlu0 %4872, %v4823
      %v4874 = vpop.permute.xlu0 %4873
      %4877 = vset.pattern.permute.xlu0 0
      %4878 = vperm.xlu0 %4877, %v4824
      %v4879 = vpop.permute.xlu0 %4878
      %4882 = vset.pattern.permute.xlu0 0
      %4883 = vperm.xlu0 %4882, %v4825
      %v4884 = vpop.permute.xlu0 %4883
      %4887 = vset.pattern.permute.xlu0 0
      %4888 = vperm.xlu0 %4887, %v4826
      %v4889 = vpop.permute.xlu0 %4888
      %4892 = vset.pattern.permute.xlu0 0
      %4893 = vperm.xlu0 %4892, %v4827
      %v4894 = vpop.permute.xlu0 %4893
      %4897 = vset.pattern.permute.xlu0 0
      %4898 = vperm.xlu0 %4897, %v4828
      %v4899 = vpop.permute.xlu0 %4898
      %4902 = vset.pattern.permute.xlu0 0
      %4903 = vperm.xlu0 %4902, %v4829
      %v4904 = vpop.permute.xlu0 %4903
      %4907 = vset.pattern.permute.xlu0 0
      %4908 = vperm.xlu0 %4907, %v4830
      %v4909 = vpop.permute.xlu0 %4908
      %4912 = vset.pattern.permute.xlu0 0
      %4913 = vperm.xlu0 %4912, %v4831
      %v4914 = vpop.permute.xlu0 %4913
      %4917 = vset.pattern.permute.xlu0 0
      %4918 = vperm.xlu0 %4917, %v4832
      %v4919 = vpop.permute.xlu0 %4918
      %4922 = vset.pattern.permute.xlu0 0
      %4923 = vperm.xlu0 %4922, %v4833
      %v4924 = vpop.permute.xlu0 %4923
      %4927 = vset.pattern.permute.xlu0 0
      %4928 = vperm.xlu0 %4927, %v4834
      %v4929 = vpop.permute.xlu0 %4928
      %4932 = vset.pattern.permute.xlu0 0
      %4933 = vperm.xlu0 %4932, %v4835
      %v4934 = vpop.permute.xlu0 %4933
      %4937 = vset.pattern.permute.xlu0 0
      %4938 = vperm.xlu0 %4937, %v4836
      %v4939 = vpop.permute.xlu0 %4938
      %4942 = vset.pattern.permute.xlu0 0
      %4943 = vperm.xlu0 %4942, %v4837
      %v4944 = vpop.permute.xlu0 %4943
      %4947 = vset.pattern.permute.xlu0 0
      %4948 = vperm.xlu0 %4947, %v4838
      %v4949 = vpop.permute.xlu0 %4948
      %4952 = vset.pattern.permute.xlu0 0
      %4953 = vperm.xlu0 %4952, %v4839
      %v4954 = vpop.permute.xlu0 %4953
      %4957 = vset.pattern.permute.xlu0 0
      %4958 = vperm.xlu0 %4957, %v4840
      %v4959 = vpop.permute.xlu0 %4958
      %4962 = vset.pattern.permute.xlu0 0
      %4963 = vperm.xlu0 %4962, %v4841
      %v4964 = vpop.permute.xlu0 %4963
      %4967 = vset.pattern.permute.xlu0 0
      %4968 = vperm.xlu0 %4967, %v4842
      %v4969 = vpop.permute.xlu0 %4968
      %4972 = vset.pattern.permute.xlu0 0
      %4973 = vperm.xlu0 %4972, %v4843
      %v4974 = vpop.permute.xlu0 %4973
      %4977 = vset.pattern.permute.xlu0 0
      %4978 = vperm.xlu0 %4977, %v4844
      %v4979 = vpop.permute.xlu0 %4978
      %4982 = vset.pattern.permute.xlu0 0
      %4983 = vperm.xlu0 %4982, %v4845
      %v4984 = vpop.permute.xlu0 %4983
      %4987 = vset.pattern.permute.xlu0 0
      %4988 = vperm.xlu0 %4987, %v4846
      %v4989 = vpop.permute.xlu0 %4988
      %4992 = vset.pattern.permute.xlu0 0
      %4993 = vperm.xlu0 %4992, %v4847
      %v4994 = vpop.permute.xlu0 %4993
      %4997 = vset.pattern.permute.xlu0 0
      %4998 = vperm.xlu0 %4997, %v4848
      %v4999 = vpop.permute.xlu0 %4998
      %5002 = vset.pattern.permute.xlu0 0
      %5003 = vperm.xlu0 %5002, %v4849
      %v5004 = vpop.permute.xlu0 %5003
      %5007 = vset.pattern.permute.xlu0 0
      %5008 = vperm.xlu0 %5007, %v4850
      %v5009 = vpop.permute.xlu0 %5008
      %v5011 = vmul.f32 %v4787, %v4854
      %v5012 = vmul.f32 %v4788, %v4859
      %v5013 = vmul.f32 %v4789, %v4864
      %v5014 = vmul.f32 %v4790, %v4869
      %v5015 = vmul.f32 %v4791, %v4874
      %v5016 = vmul.f32 %v4792, %v4879
      %v5017 = vmul.f32 %v4793, %v4884
      %v5018 = vmul.f32 %v4794, %v4889
      %v5019 = vmul.f32 %v4795, %v4894
      %v5020 = vmul.f32 %v4796, %v4899
      %v5021 = vmul.f32 %v4797, %v4904
      %v5022 = vmul.f32 %v4798, %v4909
      %v5023 = vmul.f32 %v4799, %v4914
      %v5024 = vmul.f32 %v4800, %v4919
      %v5025 = vmul.f32 %v4801, %v4924
      %v5026 = vmul.f32 %v4802, %v4929
      %v5027 = vmul.f32 %v4803, %v4934
      %v5028 = vmul.f32 %v4804, %v4939
      %v5029 = vmul.f32 %v4805, %v4944
      %v5030 = vmul.f32 %v4806, %v4949
      %v5031 = vmul.f32 %v4807, %v4954
      %v5032 = vmul.f32 %v4808, %v4959
      %v5033 = vmul.f32 %v4809, %v4964
      %v5034 = vmul.f32 %v4810, %v4969
      %v5035 = vmul.f32 %v4811, %v4974
      %v5036 = vmul.f32 %v4812, %v4979
      %v5037 = vmul.f32 %v4813, %v4984
      %v5038 = vmul.f32 %v4814, %v4989
      %v5039 = vmul.f32 %v4815, %v4994
      %v5040 = vmul.f32 %v4816, %v4999
      %v5041 = vmul.f32 %v4817, %v5004
      %v5042 = vmul.f32 %v4818, %v5009
      %v5043 = vmax.f32 %v5011, 0.0
      %v5044 = vmax.f32 %v5012, 0.0
      %v5045 = vmax.f32 %v5013, 0.0
      %v5046 = vmax.f32 %v5014, 0.0
      %v5047 = vmax.f32 %v5015, 0.0
      %v5048 = vmax.f32 %v5016, 0.0
      %v5049 = vmax.f32 %v5017, 0.0
      %v5050 = vmax.f32 %v5018, 0.0
      %v5051 = vmax.f32 %v5019, 0.0
      %v5052 = vmax.f32 %v5020, 0.0
      %v5053 = vmax.f32 %v5021, 0.0
      %v5054 = vmax.f32 %v5022, 0.0
      %v5055 = vmax.f32 %v5023, 0.0
      %v5056 = vmax.f32 %v5024, 0.0
      %v5057 = vmax.f32 %v5025, 0.0
      %v5058 = vmax.f32 %v5026, 0.0
      %v5059 = vmax.f32 %v5027, 0.0
      %v5060 = vmax.f32 %v5028, 0.0
      %v5061 = vmax.f32 %v5029, 0.0
      %v5062 = vmax.f32 %v5030, 0.0
      %v5063 = vmax.f32 %v5031, 0.0
      %v5064 = vmax.f32 %v5032, 0.0
      %v5065 = vmax.f32 %v5033, 0.0
      %v5066 = vmax.f32 %v5034, 0.0
      %v5067 = vmax.f32 %v5035, 0.0
      %v5068 = vmax.f32 %v5036, 0.0
      %v5069 = vmax.f32 %v5037, 0.0
      %v5070 = vmax.f32 %v5038, 0.0
      %v5071 = vmax.f32 %v5039, 0.0
      %v5072 = vmax.f32 %v5040, 0.0
      %v5073 = vmax.f32 %v5041, 0.0
      %v5074 = vmax.f32 %v5042, 0.0
      %v5075 = vpack.c.bf16 %v5044, %v5043
      %v5076 = vpack.c.bf16 %v5046, %v5045
      %v5077 = vpack.c.bf16 %v5048, %v5047
      %v5078 = vpack.c.bf16 %v5050, %v5049
      %v5079 = vpack.c.bf16 %v5052, %v5051
      %v5080 = vpack.c.bf16 %v5054, %v5053
      %v5081 = vpack.c.bf16 %v5056, %v5055
      %v5082 = vpack.c.bf16 %v5058, %v5057
      %v5083 = vpack.c.bf16 %v5060, %v5059
      %v5084 = vpack.c.bf16 %v5062, %v5061
      %v5085 = vpack.c.bf16 %v5064, %v5063
      %v5086 = vpack.c.bf16 %v5066, %v5065
      %v5087 = vpack.c.bf16 %v5068, %v5067
      %v5088 = vpack.c.bf16 %v5070, %v5069
      %v5089 = vpack.c.bf16 %v5072, %v5071
      %v5090 = vpack.c.bf16 %v5074, %v5073
      %v5091 = vld [vmem:[%s3] sm:$0xf]
      %v5092 = vunpack.c.l.bf16 %v226
      %v5093 = vunpack.c.l.bf16 %v227
      %v5094 = vunpack.c.l.bf16 %v228
      %v5095 = vunpack.c.l.bf16 %v229
      %v5096 = vunpack.c.l.bf16 %v230
      %v5097 = vunpack.c.l.bf16 %v231
      %v5098 = vunpack.c.l.bf16 %v232
      %v5099 = vunpack.c.l.bf16 %v233
      %v5100 = vunpack.c.l.bf16 %v234
      %v5101 = vunpack.c.l.bf16 %v235
      %v5102 = vunpack.c.l.bf16 %v236
      %v5103 = vunpack.c.l.bf16 %v237
      %v5104 = vunpack.c.l.bf16 %v238
      %v5105 = vunpack.c.l.bf16 %v239
      %v5106 = vunpack.c.l.bf16 %v240
      %v5107 = vunpack.c.l.bf16 %v241
      %v5108 = vunpack.c.l.bf16 %v242
      %v5109 = vunpack.c.l.bf16 %v243
      %v5110 = vunpack.c.l.bf16 %v244
      %v5111 = vunpack.c.l.bf16 %v245
      %v5112 = vunpack.c.l.bf16 %v246
      %v5113 = vunpack.c.l.bf16 %v247
      %v5114 = vunpack.c.l.bf16 %v248
      %v5115 = vunpack.c.l.bf16 %v249
      %v5116 = vunpack.c.l.bf16 %v250
      %v5117 = vunpack.c.l.bf16 %v251
      %v5118 = vunpack.c.l.bf16 %v252
      %v5119 = vunpack.c.l.bf16 %v253
      %v5120 = vunpack.c.l.bf16 %v254
      %v5121 = vunpack.c.l.bf16 %v255
      %v5122 = vunpack.c.l.bf16 %v256
      %v5123 = vunpack.c.l.bf16 %v257
      %v5125 = vsel %vm339, %v5075, 0
      %v5128 = vsel %vm339, %v5076, 0
      %v5131 = vsel %vm339, %v5077, 0
      %v5134 = vsel %vm339, %v5078, 0
      %v5137 = vsel %vm339, %v5079, 0
      %v5140 = vsel %vm339, %v5080, 0
      %v5143 = vsel %vm339, %v5081, 0
      %v5146 = vsel %vm339, %v5082, 0
      %v5149 = vsel %vm339, %v5083, 0
      %v5152 = vsel %vm339, %v5084, 0
      %v5155 = vsel %vm339, %v5085, 0
      %v5158 = vsel %vm339, %v5086, 0
      %v5161 = vsel %vm339, %v5087, 0
      %v5164 = vsel %vm339, %v5088, 0
      %v5167 = vsel %vm339, %v5089, 0
      %v5170 = vsel %vm339, %v5090, 0
      %v5173 = vsel %vm388, %v5091, 0
      %5175 = vmatprep.subr.bf16.mxu0 0
      %5176 = vmatpush1.bf16.msra.mxu0 0
      %5177 = vmatprep.subr.bf16.mxu0 0
      %5178 = vmatpush1.bf16.msra.mxu0 0
      %5179 = vmatprep.subr.bf16.mxu0 0
      %5180 = vmatpush1.bf16.msra.mxu0 0
      %5181 = vmatprep.subr.bf16.mxu0 0
      %5182 = vmatpush1.bf16.msra.mxu0 0
      %5183 = vmatprep.subr.bf16.mxu0 0
      %5184 = vmatpush1.bf16.msra.mxu0 0
      %5185 = vmatprep.subr.bf16.mxu0 0
      %5186 = vmatpush1.bf16.msra.mxu0 0
      %5187 = vmatprep.subr.bf16.mxu0 0
      %5188 = vmatpush1.bf16.msra.mxu0 0
      %5189 = vmatprep.subr.bf16.mxu0 0
      %5190 = vmatpush1.bf16.msra.mxu0 %v5173
      %5191 = vmatprep.subr.bf16.mxu0 0
      %5192 = vmatpush2.bf16.msra.mxu0 0
      %5193 = vmatprep.subr.bf16.mxu0 0
      %5194 = vmatpush2.bf16.msra.mxu0 0
      %5195 = vmatprep.subr.bf16.mxu0 0
      %5196 = vmatpush2.bf16.msra.mxu0 0
      %5197 = vmatprep.subr.bf16.mxu0 0
      %5198 = vmatpush2.bf16.msra.mxu0 0
      %5199 = vmatprep.subr.bf16.mxu0 0
      %5200 = vmatpush2.bf16.msra.mxu0 0
      %5201 = vmatprep.subr.bf16.mxu0 0
      %5202 = vmatpush2.bf16.msra.mxu0 0
      %5203 = vmatprep.subr.bf16.mxu0 0
      %5204 = vmatpush2.bf16.msra.mxu0 0
      %5205 = vmatprep.subr.bf16.mxu0 0
      %5206 = vmatpush2.bf16.msra.mxu0 0
      %5207 = vmatprep.mubr.bf16.mxu0 0
      %5208 = vmatmul.mubr.bf16.gmra.mxu0 %v5125
      %v5209 = vpop.f32.mrf.mxu0
      %v5210 = vadd.f32 %v5092, %v5209
      %v5211 = vpop.f32.mrf.mxu0
      %v5212 = vpop.f32.mrf.mxu0
      %v5213 = vadd.f32 %v5093, %v5212
      %v5214 = vpop.f32.mrf.mxu0
      %5215 = vmatprep.mubr.bf16.mxu0 0
      %5216 = vmatmul.mubr.bf16.gmra.mxu0 %v5128
      %v5217 = vpop.f32.mrf.mxu0
      %v5218 = vadd.f32 %v5094, %v5217
      %v5219 = vpop.f32.mrf.mxu0
      %v5220 = vpop.f32.mrf.mxu0
      %v5221 = vadd.f32 %v5095, %v5220
      %v5222 = vpop.f32.mrf.mxu0
      %5223 = vmatprep.mubr.bf16.mxu0 0
      %5224 = vmatmul.mubr.bf16.gmra.mxu0 %v5131
      %v5225 = vpop.f32.mrf.mxu0
      %v5226 = vadd.f32 %v5096, %v5225
      %v5227 = vpop.f32.mrf.mxu0
      %v5228 = vpop.f32.mrf.mxu0
      %v5229 = vadd.f32 %v5097, %v5228
      %v5230 = vpop.f32.mrf.mxu0
      %5231 = vmatprep.mubr.bf16.mxu0 0
      %5232 = vmatmul.mubr.bf16.gmra.mxu0 %v5134
      %v5233 = vpop.f32.mrf.mxu0
      %v5234 = vadd.f32 %v5098, %v5233
      %v5235 = vpop.f32.mrf.mxu0
      %v5236 = vpop.f32.mrf.mxu0
      %v5237 = vadd.f32 %v5099, %v5236
      %v5238 = vpop.f32.mrf.mxu0
      %5239 = vmatprep.mubr.bf16.mxu0 0
      %5240 = vmatmul.mubr.bf16.gmra.mxu0 %v5137
      %v5241 = vpop.f32.mrf.mxu0
      %v5242 = vadd.f32 %v5100, %v5241
      %v5243 = vpop.f32.mrf.mxu0
      %v5244 = vpop.f32.mrf.mxu0
      %v5245 = vadd.f32 %v5101, %v5244
      %v5246 = vpop.f32.mrf.mxu0
      %5247 = vmatprep.mubr.bf16.mxu0 0
      %5248 = vmatmul.mubr.bf16.gmra.mxu0 %v5140
      %v5249 = vpop.f32.mrf.mxu0
      %v5250 = vadd.f32 %v5102, %v5249
      %v5251 = vpop.f32.mrf.mxu0
      %v5252 = vpop.f32.mrf.mxu0
      %v5253 = vadd.f32 %v5103, %v5252
      %v5254 = vpop.f32.mrf.mxu0
      %5255 = vmatprep.mubr.bf16.mxu0 0
      %5256 = vmatmul.mubr.bf16.gmra.mxu0 %v5143
      %v5257 = vpop.f32.mrf.mxu0
      %v5258 = vadd.f32 %v5104, %v5257
      %v5259 = vpop.f32.mrf.mxu0
      %v5260 = vpop.f32.mrf.mxu0
      %v5261 = vadd.f32 %v5105, %v5260
      %v5262 = vpop.f32.mrf.mxu0
      %5263 = vmatprep.mubr.bf16.mxu0 0
      %5264 = vmatmul.mubr.bf16.gmra.mxu0 %v5146
      %v5265 = vpop.f32.mrf.mxu0
      %v5266 = vadd.f32 %v5106, %v5265
      %v5267 = vpop.f32.mrf.mxu0
      %v5268 = vpop.f32.mrf.mxu0
      %v5269 = vadd.f32 %v5107, %v5268
      %v5270 = vpop.f32.mrf.mxu0
      %5271 = vmatprep.mubr.bf16.mxu0 0
      %5272 = vmatmul.mubr.bf16.gmra.mxu0 %v5149
      %v5273 = vpop.f32.mrf.mxu0
      %v5274 = vadd.f32 %v5108, %v5273
      %v5275 = vpop.f32.mrf.mxu0
      %v5276 = vpop.f32.mrf.mxu0
      %v5277 = vadd.f32 %v5109, %v5276
      %v5278 = vpop.f32.mrf.mxu0
      %5279 = vmatprep.mubr.bf16.mxu0 0
      %5280 = vmatmul.mubr.bf16.gmra.mxu0 %v5152
      %v5281 = vpop.f32.mrf.mxu0
      %v5282 = vadd.f32 %v5110, %v5281
      %v5283 = vpop.f32.mrf.mxu0
      %v5284 = vpop.f32.mrf.mxu0
      %v5285 = vadd.f32 %v5111, %v5284
      %v5286 = vpop.f32.mrf.mxu0
      %5287 = vmatprep.mubr.bf16.mxu0 0
      %5288 = vmatmul.mubr.bf16.gmra.mxu0 %v5155
      %v5289 = vpop.f32.mrf.mxu0
      %v5290 = vadd.f32 %v5112, %v5289
      %v5291 = vpop.f32.mrf.mxu0
      %v5292 = vpop.f32.mrf.mxu0
      %v5293 = vadd.f32 %v5113, %v5292
      %v5294 = vpop.f32.mrf.mxu0
      %5295 = vmatprep.mubr.bf16.mxu0 0
      %5296 = vmatmul.mubr.bf16.gmra.mxu0 %v5158
      %v5297 = vpop.f32.mrf.mxu0
      %v5298 = vadd.f32 %v5114, %v5297
      %v5299 = vpop.f32.mrf.mxu0
      %v5300 = vpop.f32.mrf.mxu0
      %v5301 = vadd.f32 %v5115, %v5300
      %v5302 = vpop.f32.mrf.mxu0
      %5303 = vmatprep.mubr.bf16.mxu0 0
      %5304 = vmatmul.mubr.bf16.gmra.mxu0 %v5161
      %v5305 = vpop.f32.mrf.mxu0
      %v5306 = vadd.f32 %v5116, %v5305
      %v5307 = vpop.f32.mrf.mxu0
      %v5308 = vpop.f32.mrf.mxu0
      %v5309 = vadd.f32 %v5117, %v5308
      %v5310 = vpop.f32.mrf.mxu0
      %5311 = vmatprep.mubr.bf16.mxu0 0
      %5312 = vmatmul.mubr.bf16.gmra.mxu0 %v5164
      %v5313 = vpop.f32.mrf.mxu0
      %v5314 = vadd.f32 %v5118, %v5313
      %v5315 = vpop.f32.mrf.mxu0
      %v5316 = vpop.f32.mrf.mxu0
      %v5317 = vadd.f32 %v5119, %v5316
      %v5318 = vpop.f32.mrf.mxu0
      %5319 = vmatprep.mubr.bf16.mxu0 0
      %5320 = vmatmul.mubr.bf16.gmra.mxu0 %v5167
      %v5321 = vpop.f32.mrf.mxu0
      %v5322 = vadd.f32 %v5120, %v5321
      %v5323 = vpop.f32.mrf.mxu0
      %v5324 = vpop.f32.mrf.mxu0
      %v5325 = vadd.f32 %v5121, %v5324
      %v5326 = vpop.f32.mrf.mxu0
      %5327 = vmatprep.mubr.bf16.mxu0 0
      %5328 = vmatmul.mubr.bf16.gmra.mxu0 %v5170
      %v5329 = vpop.f32.mrf.mxu0
      %v5330 = vadd.f32 %v5122, %v5329
      %v5331 = vpop.f32.mrf.mxu0
      %v5332 = vpop.f32.mrf.mxu0
      %v5333 = vadd.f32 %v5123, %v5332
      %v5334 = vpop.f32.mrf.mxu0
      %5335 = vdwg.mxu0
      %v5336 = vmax.f32 %v5210, 0.0
      %v5337 = vmax.f32 %v5213, 0.0
      %v5338 = vmax.f32 %v5218, 0.0
      %v5339 = vmax.f32 %v5221, 0.0
      %v5340 = vmax.f32 %v5226, 0.0
      %v5341 = vmax.f32 %v5229, 0.0
      %v5342 = vmax.f32 %v5234, 0.0
      %v5343 = vmax.f32 %v5237, 0.0
      %v5344 = vmax.f32 %v5242, 0.0
      %v5345 = vmax.f32 %v5245, 0.0
      %v5346 = vmax.f32 %v5250, 0.0
      %v5347 = vmax.f32 %v5253, 0.0
      %v5348 = vmax.f32 %v5258, 0.0
      %v5349 = vmax.f32 %v5261, 0.0
      %v5350 = vmax.f32 %v5266, 0.0
      %v5351 = vmax.f32 %v5269, 0.0
      %v5352 = vmax.f32 %v5274, 0.0
      %v5353 = vmax.f32 %v5277, 0.0
      %v5354 = vmax.f32 %v5282, 0.0
      %v5355 = vmax.f32 %v5285, 0.0
      %v5356 = vmax.f32 %v5290, 0.0
      %v5357 = vmax.f32 %v5293, 0.0
      %v5358 = vmax.f32 %v5298, 0.0
      %v5359 = vmax.f32 %v5301, 0.0
      %v5360 = vmax.f32 %v5306, 0.0
      %v5361 = vmax.f32 %v5309, 0.0
      %v5362 = vmax.f32 %v5314, 0.0
      %v5363 = vmax.f32 %v5317, 0.0
      %v5364 = vmax.f32 %v5322, 0.0
      %v5365 = vmax.f32 %v5325, 0.0
      %v5366 = vmax.f32 %v5330, 0.0
      %v5367 = vmax.f32 %v5333, 0.0
      %v5368 = vpack.c.bf16 %v5337, %v5336
      %v5369 = vpack.c.bf16 %v5339, %v5338
      %v5370 = vpack.c.bf16 %v5341, %v5340
      %v5371 = vpack.c.bf16 %v5343, %v5342
      %v5372 = vpack.c.bf16 %v5345, %v5344
      %v5373 = vpack.c.bf16 %v5347, %v5346
      %v5374 = vpack.c.bf16 %v5349, %v5348
      %v5375 = vpack.c.bf16 %v5351, %v5350
      %v5376 = vpack.c.bf16 %v5353, %v5352
      %v5377 = vpack.c.bf16 %v5355, %v5354
      %v5378 = vpack.c.bf16 %v5357, %v5356
      %v5379 = vpack.c.bf16 %v5359, %v5358
      %v5380 = vpack.c.bf16 %v5361, %v5360
      %v5381 = vpack.c.bf16 %v5363, %v5362
      %v5382 = vpack.c.bf16 %v5365, %v5364
      %v5383 = vpack.c.bf16 %v5367, %v5366
      %v5400 = vunpack.c.l.b16 %v5368
      %v5401 = vunpack.c.h.b16 %v5368
      %v5402 = vunpack.c.l.b16 %v5369
      %v5403 = vunpack.c.h.b16 %v5369
      %v5404 = vunpack.c.l.b16 %v5370
      %v5405 = vunpack.c.h.b16 %v5370
      %v5406 = vunpack.c.l.b16 %v5371
      %v5407 = vunpack.c.h.b16 %v5371
      %v5408 = vunpack.c.l.b16 %v5372
      %v5409 = vunpack.c.h.b16 %v5372
      %v5410 = vunpack.c.l.b16 %v5373
      %v5411 = vunpack.c.h.b16 %v5373
      %v5412 = vunpack.c.l.b16 %v5374
      %v5413 = vunpack.c.h.b16 %v5374
      %v5414 = vunpack.c.l.b16 %v5375
      %v5415 = vunpack.c.h.b16 %v5375
      %v5416 = vunpack.c.l.b16 %v5376
      %v5417 = vunpack.c.h.b16 %v5376
      %v5418 = vunpack.c.l.b16 %v5377
      %v5419 = vunpack.c.h.b16 %v5377
      %v5420 = vunpack.c.l.b16 %v5378
      %v5421 = vunpack.c.h.b16 %v5378
      %v5422 = vunpack.c.l.b16 %v5379
      %v5423 = vunpack.c.h.b16 %v5379
      %v5424 = vunpack.c.l.b16 %v5380
      %v5425 = vunpack.c.h.b16 %v5380
      %v5426 = vunpack.c.l.b16 %v5381
      %v5427 = vunpack.c.h.b16 %v5381
      %v5428 = vunpack.c.l.b16 %v5382
      %v5429 = vunpack.c.h.b16 %v5382
      %v5430 = vunpack.c.l.b16 %v5383
      %v5431 = vunpack.c.h.b16 %v5383
      %v5432 = vpack.c.b16 %v5400, %v5400
      %v5433 = vpack.c.b16 %v5401, %v5401
      %v5434 = vpack.c.b16 %v5402, %v5402
      %v5435 = vpack.c.b16 %v5403, %v5403
      %v5436 = vpack.c.b16 %v5404, %v5404
      %v5437 = vpack.c.b16 %v5405, %v5405
      %v5438 = vpack.c.b16 %v5406, %v5406
      %v5439 = vpack.c.b16 %v5407, %v5407
      %v5440 = vpack.c.b16 %v5408, %v5408
      %v5441 = vpack.c.b16 %v5409, %v5409
      %v5442 = vpack.c.b16 %v5410, %v5410
      %v5443 = vpack.c.b16 %v5411, %v5411
      %v5444 = vpack.c.b16 %v5412, %v5412
      %v5445 = vpack.c.b16 %v5413, %v5413
      %v5446 = vpack.c.b16 %v5414, %v5414
      %v5447 = vpack.c.b16 %v5415, %v5415
      %v5448 = vpack.c.b16 %v5416, %v5416
      %v5449 = vpack.c.b16 %v5417, %v5417
      %v5450 = vpack.c.b16 %v5418, %v5418
      %v5451 = vpack.c.b16 %v5419, %v5419
      %v5452 = vpack.c.b16 %v5420, %v5420
      %v5453 = vpack.c.b16 %v5421, %v5421
      %v5454 = vpack.c.b16 %v5422, %v5422
      %v5455 = vpack.c.b16 %v5423, %v5423
      %v5456 = vpack.c.b16 %v5424, %v5424
      %v5457 = vpack.c.b16 %v5425, %v5425
      %v5458 = vpack.c.b16 %v5426, %v5426
      %v5459 = vpack.c.b16 %v5427, %v5427
      %v5460 = vpack.c.b16 %v5428, %v5428
      %v5461 = vpack.c.b16 %v5429, %v5429
      %v5462 = vpack.c.b16 %v5430, %v5430
      %v5463 = vpack.c.b16 %v5431, %v5431
      %5496 = vst.msk [vmem:[%s224] sm:$0xf] %vm585, %v5432
      %5497 = vst.msk [vmem:[%s224 + $0x4] sm:$0xf] %vm585, %v5433
      %5498 = vst.msk [vmem:[%s224 + $0x8] sm:$0xf] %vm585, %v5434
      %5499 = vst.msk [vmem:[%s224 + $0xc] sm:$0xf] %vm585, %v5435
      %5500 = vst.msk [vmem:[%s224 + $0x10] sm:$0xf] %vm585, %v5436
      %5501 = vst.msk [vmem:[%s224 + $0x14] sm:$0xf] %vm585, %v5437
      %5502 = vst.msk [vmem:[%s224 + $0x18] sm:$0xf] %vm585, %v5438
      %5503 = vst.msk [vmem:[%s224 + $0x1c] sm:$0xf] %vm585, %v5439
      %5504 = vst.msk [vmem:[%s224 + $0x20] sm:$0xf] %vm585, %v5440
      %5505 = vst.msk [vmem:[%s224 + $0x24] sm:$0xf] %vm585, %v5441
      %5506 = vst.msk [vmem:[%s224 + $0x28] sm:$0xf] %vm585, %v5442
      %5507 = vst.msk [vmem:[%s224 + $0x2c] sm:$0xf] %vm585, %v5443
      %5508 = vst.msk [vmem:[%s224 + $0x30] sm:$0xf] %vm585, %v5444
      %5509 = vst.msk [vmem:[%s224 + $0x34] sm:$0xf] %vm585, %v5445
      %5510 = vst.msk [vmem:[%s224 + $0x38] sm:$0xf] %vm585, %v5446
      %5511 = vst.msk [vmem:[%s224 + $0x3c] sm:$0xf] %vm585, %v5447
      %5512 = vst.msk [vmem:[%s224 + $0x40] sm:$0xf] %vm585, %v5448
      %5513 = vst.msk [vmem:[%s224 + $0x44] sm:$0xf] %vm585, %v5449
      %5514 = vst.msk [vmem:[%s224 + $0x48] sm:$0xf] %vm585, %v5450
      %5515 = vst.msk [vmem:[%s224 + $0x4c] sm:$0xf] %vm585, %v5451
      %5516 = vst.msk [vmem:[%s224 + $0x50] sm:$0xf] %vm585, %v5452
      %5517 = vst.msk [vmem:[%s224 + $0x54] sm:$0xf] %vm585, %v5453
      %5518 = vst.msk [vmem:[%s224 + $0x58] sm:$0xf] %vm585, %v5454
      %5519 = vst.msk [vmem:[%s224 + $0x5c] sm:$0xf] %vm585, %v5455
      %5520 = vst.msk [vmem:[%s224 + $0x60] sm:$0xf] %vm585, %v5456
      %5521 = vst.msk [vmem:[%s224 + $0x64] sm:$0xf] %vm585, %v5457
      %5522 = vst.msk [vmem:[%s224 + $0x68] sm:$0xf] %vm585, %v5458
      %5523 = vst.msk [vmem:[%s224 + $0x6c] sm:$0xf] %vm585, %v5459
      %5524 = vst.msk [vmem:[%s224 + $0x70] sm:$0xf] %vm585, %v5460
      %5525 = vst.msk [vmem:[%s224 + $0x74] sm:$0xf] %vm585, %v5461
      %5526 = vst.msk [vmem:[%s224 + $0x78] sm:$0xf] %vm585, %v5462
      %5527 = vst.msk [vmem:[%s224 + $0x7c] sm:$0xf] %vm585, %v5463
      %p5528 = scmp.lt.s32.totalorder %s16, 1
      %s5529 = scalar_select %p5528, %s16, 1
      %s5530 = smul.addr %s5529, 32
      %s5531 = smul.addr %s5530, 4
      %s5532 = scalar_lea.vmem %s5, %s5531
      // Predicated region
      $region41: #{partial_bottleneck.1} parent=39 // pred_check
        %p5533 = pneg %p144
      $region42: #{partial_bottleneck.1} parent=39 // pred_check_branch
        %5535 = sbr.rel (%p5533) target = $region44
      $region43: #{partial_bottleneck.1} parent=39 // pred_region
        _
      $region44: #{partial_bottleneck.1} parent=39 // pred_fallthru
        _
    $region40: #{partial_bottleneck.1} parent=5 // pred_fallthru
      _
    %p5536 = scmp.le.s32.totalorder 2, %s11
    // Predicated region
    $region45: #{partial_bottleneck.1} parent=5 // pred_check
      %p5537 = pneg %p5536
    $region46: #{partial_bottleneck.1} parent=5 // pred_check_branch
      %5539 = sbr.rel (%p5537) target = $region48
    $region47: #{partial_bottleneck.1} parent=5 // pred_region
      %s5540 = ssub.s32 %s11, 2
      // Predicated region
      $region49: #{partial_bottleneck.1} parent=47 // pred_check
        %p5541 = pneg %p150
      $region50: #{partial_bottleneck.1} parent=47 // pred_check_branch
        %5543 = sbr.rel (%p5541) target = $region52
      $region51: #{partial_bottleneck.1} parent=47 // pred_region
        %p5544 = scmp.lt.s32.totalorder %s17, 1
        %s5545 = scalar_select %p5544, %s17, 1
        %s5546 = smul.addr %s5545, 32
        %s5547 = smul.addr %s5546, 4
        %s5548 = scalar_lea.vmem %s5, %s5547
      $region52: #{partial_bottleneck.1} parent=47 // pred_fallthru
        _
    $region48: #{partial_bottleneck.1} parent=5 // pred_fallthru
      _
  $region6: #{partial_bottleneck.1} parent=0 // loop_footer
    %s15 = sadd.s32 1, %s11
  $region7: #{partial_bottleneck.1} parent=0 // loop_footer_branch
    %10 = sbr.rel target = $region3
  $region8: #{partial_bottleneck.1} parent=0 // loop_exit
    _

</llo_original>
